<compile_context>
chip_gen: v6e
topology: v6e:2x2x1
jax: 0.10.0
libtpu: 0.0.40
codegen_flags: <defaults>
</compile_context>

<pallas_src>
import functools
import math

import jax
import jax.numpy as jnp
from jax.experimental import pallas as pl
from jax.experimental.pallas import tpu as pltpu

# ---------------- hyper-parameters (module defaults: c2=c1, patch=(2,2), nhead=2) ---
C1 = 32
C2 = 32                    # c2 <= 0  ->  c2 = c1
PH, PW = 2, 2
P = PH * PW
NUM_HEADS = 2
D_MODEL = C2 * P           # 128  (lane-dense)
HEAD_DIM = D_MODEL // NUM_HEADS
FFN = 2048                 # nn.TransformerEncoderLayer default dim_feedforward
F_CHUNK = 512              # FFN hidden dim streamed over the grid in FFN//F_CHUNK chunks
B, H, W = 2, 16, 16
LN_EPS = 1e-5
BN_EPS = 1e-5


# ------------------------------- small helpers --------------------------------------
def _bn_fold(bn):
    """Inference BatchNorm -> per-channel (scale, bias)."""
    scale = bn["gamma"] * jax.lax.rsqrt(bn["var"] + BN_EPS)
    bias = bn["beta"] - bn["mean"] * scale
    return scale, bias


def _conv3x3_nhwc(x, w_oihw):
    """NHWC 3x3 conv, padding=1, no bias (TPU-native channels-last layout)."""
    w = jnp.transpose(w_oihw, (2, 3, 1, 0))            # OIHW -> HWIO
    return jax.lax.conv_general_dilated(
        x, w, window_strides=(1, 1), padding=((1, 1), (1, 1)),
        dimension_numbers=("NHWC", "HWIO", "NHWC"))


def _bn_apply_nhwc(x, bn):
    s, b = _bn_fold(bn)
    return x * s + b                                    # broadcast over channels-last


def _conv3x3_nchw(x, w):
    return jax.lax.conv_general_dilated(
        x, w, window_strides=(1, 1), padding=((1, 1), (1, 1)),
        dimension_numbers=("NCHW", "OIHW", "NCHW"))


def _bn_apply_nchw(x, bn):
    s, b = _bn_fold(bn)
    return x * s[None, :, None, None] + b[None, :, None, None]


def _layer_norm(x, gamma, beta, eps=LN_EPS):
    # Single-pass stats (sum / sum-of-squares). E[x^2] - mu^2 can cancel for
    # large-magnitude rows, so clamp at 0 before rsqrt (stability guard).
    inv_d = 1.0 / x.shape[-1]
    mu = jnp.sum(x, axis=-1, keepdims=True) * inv_d
    ms = jnp.sum(x * x, axis=-1, keepdims=True) * inv_d
    var = jnp.maximum(ms - mu * mu, 0.0)
    return (x - mu) * jax.lax.rsqrt(var + eps) * gamma + beta


# ------------------------------- the Pallas kernel -----------------------------------
def _encoder_kernel(
    x_ref,                       # (B, N, P*C1) bf16  patchified raw (post-`local`) channels
    wproj_ref,                   # (P*C1, D) bf16     block-diag 1x1 `proj` (pre-transposed)
    wqkv_ref, bqkv_ref,          # (D, 3D) bf16, (1, 3D) f32   in_proj^T, q-scale folded in
    wo_ref, bo_ref,              # (D, D) bf16, (1, D) f32     out_proj^T
    g1_ref, be1_ref,             # (1, D) f32                  norm1
    w1_ref, b1_ref,              # (D, Fc) bf16, (1, Fc) f32   linear1^T chunk
    w2_ref, b2_ref,              # (Fc, D) bf16, (1, D) f32    linear2^T chunk / bias
    g2_ref, be2_ref,             # (1, D) f32                  norm2
    wrep_ref, brep_ref,          # (D, P*C1) bf16, (1, P*C1) f32  block-diag reproj^T + BN
    o_ref,                       # (B, N, P*C1) f32
    y_scr,                       # (T, D) f32  LN1 output, carried across FFN chunks
    acc_scr,                     # (T, D) f32  FFN accumulator
    *, num_heads,
):
    kf = pl.program_id(0)
    nkf = pl.num_programs(0)
    bb, n, pc1 = x_ref.shape
    d = wqkv_ref.shape[0]
    hd = d // num_heads
    t = bb * n

    # ---------------- prologue (first FFN chunk): proj + attention + LN1 -------------
    @pl.when(kf == 0)
    def _prologue():
        x_tok = x_ref[...].reshape(t, pc1)                               # free merge, bf16

        # 1x1 `proj` conv == one lane-dense block-diagonal matmul (bf16 MXU, f32 acc)
        x2 = jnp.dot(x_tok, wproj_ref[...], preferred_element_type=jnp.float32)

        # multi-head self-attention (weights pre-transposed, q pre-scaled by 1/sqrt(hd))
        qkv = jnp.dot(x2.astype(jnp.bfloat16), wqkv_ref[...],
                      preferred_element_type=jnp.float32) + bqkv_ref[...]

        def to_groups(t2d):
            # (t, d) -> (num_heads*bb, n, hd). The head axis lives in the lane dim,
            # so packing it next to the batch axis is a relayout regardless of any
            # prep-time column permutation; at nh=2/hd=64 this is a few aligned
            # 32 KB copies, negligible vs. the weight DMA.
            t3 = t2d.reshape(bb, n, d)
            return jnp.concatenate(
                [t3[:, :, h_ * hd:(h_ + 1) * hd] for h_ in range(num_heads)], axis=0)

        q = to_groups(qkv[:, 0 * d:1 * d]).astype(jnp.bfloat16)
        k = to_groups(qkv[:, 1 * d:2 * d]).astype(jnp.bfloat16)
        v = to_groups(qkv[:, 2 * d:3 * d]).astype(jnp.bfloat16)

        s = jnp.einsum("gqd,gkd->gqk", q, k, preferred_element_type=jnp.float32)
        s = s - jnp.max(s, axis=-1, keepdims=True)
        p = jnp.exp(s)                                            # f32 softmax stats
        denom = jnp.sum(p, axis=-1, keepdims=True)
        o = jnp.einsum("gqk,gkd->gqd", p.astype(jnp.bfloat16), v,  # PV in bf16
                       preferred_element_type=jnp.float32)
        o = o * pl.reciprocal(denom, approx=False)                 # exact (DMA-bound anyway)

        # groups (g = head*bb + batch) -> (t, d): lane-concat heads back in head order.
        attn = jnp.concatenate(
            [o[h_ * bb:(h_ + 1) * bb] for h_ in range(num_heads)], axis=-1).reshape(t, d)
        attn = jnp.dot(attn.astype(jnp.bfloat16), wo_ref[...],
                       preferred_element_type=jnp.float32) + bo_ref[...]

        # residual + LayerNorm1 (post-norm encoder layer); carried across FFN chunks
        y_scr[...] = _layer_norm(x2 + attn, g1_ref[...], be1_ref[...])
        acc_scr[...] = jnp.zeros_like(acc_scr)

    # ---------------- FFN chunk: runs every grid step, overlaps w1/w2 chunk DMAs -----
    y_bf = y_scr[...].astype(jnp.bfloat16)
    h1 = jnp.dot(y_bf, w1_ref[...], preferred_element_type=jnp.float32) + b1_ref[...]
    h1 = jnp.maximum(h1, 0.0).astype(jnp.bfloat16)
    acc_scr[...] += jnp.dot(h1, w2_ref[...], preferred_element_type=jnp.float32)

    # ---------------- epilogue (last chunk): LN2 + reproj(+BN) + store ---------------
    @pl.when(kf == nkf - 1)
    def _epilogue():
        f = acc_scr[...] + b2_ref[...]
        z = _layer_norm(y_scr[...] + f, g2_ref[...], be2_ref[...])
        out = jnp.dot(z.astype(jnp.bfloat16), wrep_ref[...],
                      preferred_element_type=jnp.float32) + brep_ref[...]
        o_ref[...] = out.reshape(bb, n, pc1)


# ------------------------- wrapper-side parameter preparation ------------------------
def _prep_kernel_params(p):
    """Pre-transpose / block-diagonalize weights, fold attn scale + BatchNorm, cast bf16."""
    d = D_MODEL
    scale = 1.0 / math.sqrt(HEAD_DIM)          # power of two -> exact in bf16
    colscale = jnp.concatenate(
        [jnp.full((d,), scale, jnp.float32), jnp.ones((2 * d,), jnp.float32)])
    wqkv_t = p["attn_in_w"].T * colscale[None, :]                 # (D, 3D)
    bqkv = (p["attn_in_b"] * colscale)[None, :]                   # (1, 3D)

    eye_p = jnp.eye(P, dtype=jnp.float32)
    proj_bd = jnp.kron(eye_p, p["proj_w"].T)                      # (P*C1, D)

    s2, b2 = _bn_fold(p["bn2"])                                   # BN after reproj
    rep_bd = jnp.kron(eye_p, p["reproj_w"].T) * jnp.tile(s2, P)[None, :]   # (D, P*C1)
    rep_b = jnp.tile(b2, P)[None, :]                              # (1, P*C1)

    bf = lambda a: a.astype(jnp.bfloat16)      # matmul weights -> bf16 (halves weight DMA)
    return dict(
        proj=bf(proj_bd), wqkv=bf(wqkv_t), bqkv=bqkv,
        wo=bf(p["attn_out_w"].T), bo=p["attn_out_b"][None, :],
        g1=p["ln1_g"][None, :], be1=p["ln1_b"][None, :],
        w1=bf(p["lin1_w"].T), b1=p["lin1_b"][None, :],
        w2=bf(p["lin2_w"].T), b2=p["lin2_b"][None, :],
        g2=p["ln2_g"][None, :], be2=p["ln2_b"][None, :],
        wrep=bf(rep_bd), brep=rep_b,
    )


def _token_pipeline_pallas(tokens, kp):
    """tokens: (B, N, P*C1) bf16 -> (B, N, P*C1) f32 via the fused Pallas kernel."""
    b, n, pc1 = tokens.shape
    d = D_MODEL
    t = b * n
    n_chunks = FFN // F_CHUNK

    # Constant-index weight blocks: single-buffered (no dead second buffer / prefetch).
    def const_spec(arr):
        zeros = (0,) * arr.ndim
        return pl.BlockSpec(arr.shape, lambda k, _z=zeros: _z,
                            pipeline_mode=pl.Buffered(1))

    tok_in_spec = pl.BlockSpec((b, n, pc1), lambda k: (0, 0, 0))
    tok_out_spec = pl.BlockSpec((b, n, pc1), lambda k: (0, 0, 0))

    # FFN weight chunks stream along the grid (default double-buffering -> DMA overlap).
    chunk_specs = {
        "w1": pl.BlockSpec((d, F_CHUNK), lambda k: (0, k)),
        "b1": pl.BlockSpec((1, F_CHUNK), lambda k: (0, k)),
        "w2": pl.BlockSpec((F_CHUNK, d), lambda k: (k, 0)),
    }

    weight_order = ["proj", "wqkv", "bqkv", "wo", "bo", "g1", "be1",
                    "w1", "b1", "w2", "b2", "g2", "be2", "wrep", "brep"]
    weights = [kp[name] for name in weight_order]
    in_specs = [tok_in_spec] + [chunk_specs.get(name, const_spec(kp[name]))
                                for name in weight_order]

    g = NUM_HEADS * b
    matmul_flops = 2 * t * (pc1 * d + d * 3 * d + d * d + 2 * d * FFN + d * pc1)
    attn_flops = 2 * 2 * g * n * n * HEAD_DIM
    cost = pl.CostEstimate(
        flops=int(matmul_flops + attn_flops),
        transcendentals=int(g * n * n),
        bytes_accessed=int(sum(int(a.size) * a.dtype.itemsize for a in weights)
                           + int(tokens.size) * tokens.dtype.itemsize
                           + b * n * pc1 * 4))

    kernel = functools.partial(_encoder_kernel, num_heads=NUM_HEADS)
    return pl.pallas_call(
        kernel,
        out_shape=jax.ShapeDtypeStruct((b, n, pc1), jnp.float32),
        grid_spec=pltpu.PrefetchScalarGridSpec(
            num_scalar_prefetch=0,
            grid=(n_chunks,),                      # batch always folded; grid = FFN chunks
            in_specs=in_specs,
            out_specs=tok_out_spec,
            scratch_shapes=[pltpu.VMEM((t, d), jnp.float32),    # y  (LN1 output)
                            pltpu.VMEM((t, d), jnp.float32)],   # FFN accumulator
        ),
        compiler_params=pltpu.CompilerParams(
            dimension_semantics=("arbitrary",)),
        cost_estimate=cost,
    )(tokens, *weights)


# ----------------------------------- full forward ------------------------------------
def mobilevit_block(x, params):
    """x: (B, C1, H, W) float32 (NCHW, like PyTorch)  ->  (B, C1, H, W)."""
    b, c, h, w = x.shape

    # Spatial path runs channels-last (TPU-native); one transpose in, one out.
    xh = jnp.transpose(x, (0, 2, 3, 1))                           # NCHW -> NHWC

    # ---- `local`: Conv3x3 + BN + ReLU ----
    xl = jnp.maximum(
        _bn_apply_nhwc(_conv3x3_nhwc(xh, params["local_w"]), params["local_bn"]), 0.0)

    # ---- crop to patch multiples ----
    h2, w2 = h - h % PH, w - w % PW
    xc = xl[:, :h2, :w2, :]
    nh_, nw_ = h2 // PH, w2 // PW
    n_tok = nh_ * nw_

    # ---- patchify raw channels: (B, N, P*C1), feature order (ph, pw, c); 1x1 proj
    #      happens inside the kernel.  Cast tokens to bf16 for the kernel input.
    t = xc.reshape(b, nh_, PH, nw_, PW, c)
    t = jnp.transpose(t, (0, 1, 3, 2, 4, 5)).reshape(b, n_tok, P * c)
    t = t.astype(jnp.bfloat16)

    # ---- fused Pallas kernel: proj -> TransformerEncoderLayer -> reproj + BN ----
    kp = _prep_kernel_params(params)
    y_tok = _token_pipeline_pallas(t, kp)                         # (B, N, P*C1) f32

    # ---- unpatchify: (B, N, P*C1) -> (B, H2, W2, C1) ----
    y = y_tok.reshape(b, nh_, nw_, PH, PW, c)
    y = jnp.transpose(y, (0, 1, 3, 2, 4, 5)).reshape(b, h2, w2, c)

    # ---- pad back if cropped (no-op at these shapes) ----
    if h2 != h or w2 != w:
        y = jnp.pad(y, ((0, 0), (0, h - h2), (0, w - w2), (0, 0)))

    # ---- `fuse`: Conv3x3(concat) + BN + ReLU ----
    z = jnp.concatenate([xl, y], axis=-1)
    z = _bn_apply_nhwc(_conv3x3_nhwc(z, params["fuse_w"]), params["fuse_bn"])
    z = jnp.maximum(z, 0.0)
    return jnp.transpose(z, (0, 3, 1, 2))                         # NHWC -> NCHW


# ------------------------------- pure-JAX reference ----------------------------------
def _reference(x, p):
    hp = jax.lax.Precision.HIGHEST
    b, c, h, w = x.shape
    xl = jnp.maximum(_bn_apply_nchw(_conv3x3_nchw(x, p["local_w"]), p["local_bn"]), 0.0)
    h2, w2 = h - h % PH, w - w % PW
    xc = xl[:, :, :h2, :w2]
    x2 = jnp.einsum("bchw,oc->bohw", xc, p["proj_w"], precision=hp)      # 1x1 proj
    nh, nw = h2 // PH, w2 // PW
    d = D_MODEL
    t = x2.reshape(b, C2, nh, PH, nw, PW)
    t = jnp.transpose(t, (0, 2, 4, 3, 5, 1)).reshape(b, nh * nw, d)

    # TransformerEncoderLayer (batch_first, post-norm, ReLU, eval mode)
    qkv = jnp.einsum("bnd,ed->bne", t, p["attn_in_w"], precision=hp) + p["attn_in_b"]
    q, k, v = jnp.split(qkv, 3, axis=-1)

    def heads(a):
        return a.reshape(b, -1, NUM_HEADS, HEAD_DIM).transpose(0, 2, 1, 3)

    qh, kh, vh = heads(q), heads(k), heads(v)
    s = jnp.einsum("bhqd,bhkd->bhqk", qh, kh, precision=hp) / math.sqrt(HEAD_DIM)
    pr = jax.nn.softmax(s, axis=-1)
    a = jnp.einsum("bhqk,bhkd->bhqd", pr, vh, precision=hp)
    a = a.transpose(0, 2, 1, 3).reshape(b, -1, d)
    a = jnp.einsum("bnd,ed->bne", a, p["attn_out_w"], precision=hp) + p["attn_out_b"]

    def ln(u, g, be):
        mu = u.mean(-1, keepdims=True)
        var = ((u - mu) ** 2).mean(-1, keepdims=True)
        return (u - mu) * jax.lax.rsqrt(var + LN_EPS) * g + be

    y = ln(t + a, p["ln1_g"], p["ln1_b"])
    f = jnp.maximum(jnp.einsum("bnd,fd->bnf", y, p["lin1_w"], precision=hp) + p["lin1_b"], 0.0)
    f = jnp.einsum("bnf,df->bnd", f, p["lin2_w"], precision=hp) + p["lin2_b"]
    z = ln(y + f, p["ln2_g"], p["ln2_b"])

    z = z.reshape(b, nh, nw, PH, PW, C2)
    z = jnp.transpose(z, (0, 5, 1, 3, 2, 4)).reshape(b, C2, h2, w2)
    z = _bn_apply_nchw(jnp.einsum("bchw,oc->bohw", z, p["reproj_w"], precision=hp), p["bn2"])
    if h2 != h or w2 != w:
        z = jnp.pad(z, ((0, 0), (0, 0), (0, h - h2), (0, w - w2)))
    out = _bn_apply_nchw(_conv3x3_nchw(jnp.concatenate([xl, z], 1), p["fuse_w"]), p["fuse_bn"])
    return jnp.maximum(out, 0.0)


# --------------------------------- parameter init ------------------------------------
def init_params(key):
    ks = jax.random.split(key, 15)

    def nrm(k, shape, std):
        return std * jax.random.normal(k, shape, jnp.float32)

    def bn_params(k, ch):
        k1, k2, k3, k4 = jax.random.split(k, 4)
        return {"gamma": 1.0 + 0.1 * jax.random.normal(k1, (ch,), jnp.float32),
                "beta": 0.1 * jax.random.normal(k2, (ch,), jnp.float32),
                "mean": 0.1 * jax.random.normal(k3, (ch,), jnp.float32),
                "var": 1.0 + 0.1 * jnp.abs(jax.random.normal(k4, (ch,), jnp.float32))}

    d = D_MODEL
    return {
        "local_w": nrm(ks[0], (C1, C1, 3, 3), 0.06),
        "local_bn": bn_params(ks[1], C1),
        "proj_w": nrm(ks[2], (C2, C1), 0.18),
        "attn_in_w": nrm(ks[3], (3 * d, d), 0.05),
        "attn_in_b": nrm(ks[4], (3 * d,), 0.02),
        "attn_out_w": nrm(ks[5], (d, d), 0.05),
        "attn_out_b": nrm(ks[6], (d,), 0.02),
        "ln1_g": jnp.ones((d,), jnp.float32), "ln1_b": jnp.zeros((d,), jnp.float32),
        "lin1_w": nrm(ks[7], (FFN, d), 0.05),
        "lin1_b": nrm(ks[8], (FFN,), 0.02),
        "lin2_w": nrm(ks[9], (d, FFN), 0.02),
        "lin2_b": nrm(ks[10], (d,), 0.02),
        "ln2_g": jnp.ones((d,), jnp.float32), "ln2_b": jnp.zeros((d,), jnp.float32),
        "reproj_w": nrm(ks[11], (C1, C2), 0.18),
        "bn2": bn_params(ks[12], C1),
        "fuse_w": nrm(ks[13], (C1, 2 * C1, 3, 3), 0.05),
        "fuse_bn": bn_params(ks[14], C1),
    }


if __name__ == "__main__":
    key = jax.random.PRNGKey(0)
    k_x, k_p = jax.random.split(key)
    x = jax.random.normal(k_x, (B, C1, H, W), jnp.float32)   # NCHW, like PyTorch
    params = init_params(k_p)

    out = jax.block_until_ready(jax.jit(mobilevit_block)(x, params))
    assert out.shape == (B, C1, H, W), out.shape

    ref = jax.block_until_ready(jax.jit(_reference)(x, params))
    # tolerance accommodates the bf16 weights/activations on the matmul path
    # (f32 accumulation, f32 LayerNorm/softmax stats) vs. the f32 HIGHEST reference.
    err = float(jnp.max(jnp.abs(out - ref)))
    assert jnp.allclose(out, ref, rtol=5e-2, atol=1e-1), err

    print("KERNEL_OK")
</pallas_src>

<mosaic_0001>
module attributes {stable_mosaic.version = 11 : i64} {
  func.func @_encoder_kernel(%arg0: i32, %arg1: memref<2x64x128xbf16, #tpu.memory_space<vmem>>, %arg2: memref<128x128xbf16, #tpu.memory_space<vmem>>, %arg3: memref<128x384xbf16, #tpu.memory_space<vmem>>, %arg4: memref<1x384xf32, #tpu.memory_space<vmem>>, %arg5: memref<128x128xbf16, #tpu.memory_space<vmem>>, %arg6: memref<1x128xf32, #tpu.memory_space<vmem>>, %arg7: memref<1x128xf32, #tpu.memory_space<vmem>>, %arg8: memref<1x128xf32, #tpu.memory_space<vmem>>, %arg9: memref<128x512xbf16, #tpu.memory_space<vmem>>, %arg10: memref<1x512xf32, #tpu.memory_space<vmem>>, %arg11: memref<512x128xbf16, #tpu.memory_space<vmem>>, %arg12: memref<1x128xf32, #tpu.memory_space<vmem>>, %arg13: memref<1x128xf32, #tpu.memory_space<vmem>>, %arg14: memref<1x128xf32, #tpu.memory_space<vmem>>, %arg15: memref<128x128xbf16, #tpu.memory_space<vmem>>, %arg16: memref<1x128xf32, #tpu.memory_space<vmem>>, %arg17: memref<2x64x128xf32, #tpu.memory_space<vmem>>, %arg18: memref<128x128xf32, #tpu.memory_space<vmem>>, %arg19: memref<128x128xf32, #tpu.memory_space<vmem>>) attributes {dimension_semantics = [#tpu.dimension_semantics<arbitrary>], iteration_bounds = array<i64: 4>, scalar_prefetch = 0 : i64, scratch_operands = 2 : i64, tpu.core_type = #tpu.core_type<tc>, window_params = [{pipeline_mode = #tpu.pipeline_mode<synchronous>, transform_indices = @transform_0, window_bounds = array<i64: 2, 64, 128>}, {pipeline_mode = #tpu.pipeline_mode<synchronous>, transform_indices = @transform_1, window_bounds = array<i64: 128, 128>}, {pipeline_mode = #tpu.pipeline_mode<synchronous>, transform_indices = @transform_2, window_bounds = array<i64: 128, 384>}, {pipeline_mode = #tpu.pipeline_mode<synchronous>, transform_indices = @transform_3, window_bounds = array<i64: 1, 384>}, {pipeline_mode = #tpu.pipeline_mode<synchronous>, transform_indices = @transform_4, window_bounds = array<i64: 128, 128>}, {pipeline_mode = #tpu.pipeline_mode<synchronous>, transform_indices = @transform_5, window_bounds = array<i64: 1, 128>}, {pipeline_mode = #tpu.pipeline_mode<synchronous>, transform_indices = @transform_6, window_bounds = array<i64: 1, 128>}, {pipeline_mode = #tpu.pipeline_mode<synchronous>, transform_indices = @transform_7, window_bounds = array<i64: 1, 128>}, {transform_indices = @transform_8, window_bounds = array<i64: 128, 512>}, {transform_indices = @transform_9, window_bounds = array<i64: 1, 512>}, {transform_indices = @transform_10, window_bounds = array<i64: 512, 128>}, {pipeline_mode = #tpu.pipeline_mode<synchronous>, transform_indices = @transform_11, window_bounds = array<i64: 1, 128>}, {pipeline_mode = #tpu.pipeline_mode<synchronous>, transform_indices = @transform_12, window_bounds = array<i64: 1, 128>}, {pipeline_mode = #tpu.pipeline_mode<synchronous>, transform_indices = @transform_13, window_bounds = array<i64: 1, 128>}, {pipeline_mode = #tpu.pipeline_mode<synchronous>, transform_indices = @transform_14, window_bounds = array<i64: 128, 128>}, {pipeline_mode = #tpu.pipeline_mode<synchronous>, transform_indices = @transform_15, window_bounds = array<i64: 1, 128>}, {pipeline_mode = #tpu.pipeline_mode<synchronous>, transform_indices = @transform_16, window_bounds = array<i64: 2, 64, 128>}]} {
    %c0_i32 = arith.constant 0 : i32
    %0 = arith.cmpi eq, %arg0, %c0_i32 : i32
    %1 = arith.extui %0 : i1 to i32
    %c0_i32_0 = arith.constant 0 : i32
    %2 = arith.cmpi ne, %1, %c0_i32_0 : i32
    scf.if %2 {
      %c0_15 = arith.constant 0 : index
      %c0_16 = arith.constant 0 : index
      %c0_17 = arith.constant 0 : index
      %21 = vector.load %arg1[%c0_15, %c0_16, %c0_17] : memref<2x64x128xbf16, #tpu.memory_space<vmem>>, vector<2x64x128xbf16>
      %22 = vector.shape_cast %21 : vector<2x64x128xbf16> to vector<128x128xbf16>
      %c0_18 = arith.constant 0 : index
      %c0_19 = arith.constant 0 : index
      %23 = vector.load %arg2[%c0_18, %c0_19] : memref<128x128xbf16, #tpu.memory_space<vmem>>, vector<128x128xbf16>
      %cst_20 = arith.constant dense<0.000000e+00> : vector<128x128xf32>
      %24 = tpu.matmul %22, %23, %cst_20 {dimension_numbers = #tpu.dot_dimension_numbers<[1], [0], [0], [1], [0, 0, 1, 1], [], []>} : vector<128x128xbf16>, vector<128x128xbf16>, vector<128x128xf32> -> vector<128x128xf32>
      %25 = arith.truncf %24 : vector<128x128xf32> to vector<128x128xbf16>
      %c0_21 = arith.constant 0 : index
      %c0_22 = arith.constant 0 : index
      %26 = vector.load %arg3[%c0_21, %c0_22] : memref<128x384xbf16, #tpu.memory_space<vmem>>, vector<128x384xbf16>
      %cst_23 = arith.constant dense<0.000000e+00> : vector<128x384xf32>
      %27 = tpu.matmul %25, %26, %cst_23 {dimension_numbers = #tpu.dot_dimension_numbers<[1], [0], [0], [1], [0, 0, 1, 1], [], []>} : vector<128x128xbf16>, vector<128x384xbf16>, vector<128x384xf32> -> vector<128x384xf32>
      %c0_24 = arith.constant 0 : index
      %c0_25 = arith.constant 0 : index
      %28 = vector.load %arg4[%c0_24, %c0_25] : memref<1x384xf32, #tpu.memory_space<vmem>>, vector<1x384xf32>
      %29 = vector.broadcast %28 : vector<1x384xf32> to vector<128x384xf32>
      %30 = arith.addf %27, %29 : vector<128x384xf32>
      %31 = vector.extract_strided_slice %30 {offsets = [0, 0], sizes = [128, 128], strides = [1, 1]} : vector<128x384xf32> to vector<128x128xf32>
      %32 = vector.shape_cast %31 : vector<128x128xf32> to vector<2x64x128xf32>
      %33 = vector.extract_strided_slice %32 {offsets = [0, 0, 0], sizes = [2, 64, 64], strides = [1, 1, 1]} : vector<2x64x128xf32> to vector<2x64x64xf32>
      %34 = vector.extract_strided_slice %32 {offsets = [0, 0, 64], sizes = [2, 64, 64], strides = [1, 1, 1]} : vector<2x64x128xf32> to vector<2x64x64xf32>
      %35 = tpu.concatenate %33, %34 in 0 : vector<2x64x64xf32>, vector<2x64x64xf32> -> vector<4x64x64xf32>
      %36 = arith.truncf %35 : vector<4x64x64xf32> to vector<4x64x64xbf16>
      %37 = vector.extract_strided_slice %30 {offsets = [0, 128], sizes = [128, 128], strides = [1, 1]} : vector<128x384xf32> to vector<128x128xf32>
      %38 = vector.shape_cast %37 : vector<128x128xf32> to vector<2x64x128xf32>
      %39 = vector.extract_strided_slice %38 {offsets = [0, 0, 0], sizes = [2, 64, 64], strides = [1, 1, 1]} : vector<2x64x128xf32> to vector<2x64x64xf32>
      %40 = vector.extract_strided_slice %38 {offsets = [0, 0, 64], sizes = [2, 64, 64], strides = [1, 1, 1]} : vector<2x64x128xf32> to vector<2x64x64xf32>
      %41 = tpu.concatenate %39, %40 in 0 : vector<2x64x64xf32>, vector<2x64x64xf32> -> vector<4x64x64xf32>
      %42 = arith.truncf %41 : vector<4x64x64xf32> to vector<4x64x64xbf16>
      %43 = vector.extract_strided_slice %30 {offsets = [0, 256], sizes = [128, 128], strides = [1, 1]} : vector<128x384xf32> to vector<128x128xf32>
      %44 = vector.shape_cast %43 : vector<128x128xf32> to vector<2x64x128xf32>
      %45 = vector.extract_strided_slice %44 {offsets = [0, 0, 0], sizes = [2, 64, 64], strides = [1, 1, 1]} : vector<2x64x128xf32> to vector<2x64x64xf32>
      %46 = vector.extract_strided_slice %44 {offsets = [0, 0, 64], sizes = [2, 64, 64], strides = [1, 1, 1]} : vector<2x64x128xf32> to vector<2x64x64xf32>
      %47 = tpu.concatenate %45, %46 in 0 : vector<2x64x64xf32>, vector<2x64x64xf32> -> vector<4x64x64xf32>
      %48 = arith.truncf %47 : vector<4x64x64xf32> to vector<4x64x64xbf16>
      "tpu.trace_start"() <{level = 10 : i32, message = "gqd,gkd->gqk"}> : () -> ()
      %cst_26 = arith.constant dense<0.000000e+00> : vector<4x64x64xf32>
      %49 = tpu.matmul %36, %42, %cst_26 {dimension_numbers = #tpu.dot_dimension_numbers<[2], [2], [1], [1], [0, 0, 0, 1, 1, 1], [0], [0]>} : vector<4x64x64xbf16>, vector<4x64x64xbf16>, vector<4x64x64xf32> -> vector<4x64x64xf32>
      "tpu.trace_stop"() : () -> ()
      %cst_27 = arith.constant dense<0xFF800000> : vector<4x64xf32>
      %50 = vector.multi_reduction <maximumf>, %49, %cst_27 [2] : vector<4x64x64xf32> to vector<4x64xf32>
      %51 = vector.shape_cast %50 : vector<4x64xf32> to vector<4x64x1xf32>
      %52 = vector.broadcast %51 : vector<4x64x1xf32> to vector<4x64x64xf32>
      %53 = arith.subf %49, %52 : vector<4x64x64xf32>
      %54 = math.exp %53 : vector<4x64x64xf32>
      %cst_28 = arith.constant dense<0.000000e+00> : vector<4x64xf32>
      %55 = vector.multi_reduction <add>, %54, %cst_28 [2] : vector<4x64x64xf32> to vector<4x64xf32>
      %56 = vector.shape_cast %55 : vector<4x64xf32> to vector<4x64x1xf32>
      %57 = arith.truncf %54 : vector<4x64x64xf32> to vector<4x64x64xbf16>
      "tpu.trace_start"() <{level = 10 : i32, message = "gqk,gkd->gqd"}> : () -> ()
      %cst_29 = arith.constant dense<0.000000e+00> : vector<4x64x64xf32>
      %58 = tpu.matmul %57, %48, %cst_29 {dimension_numbers = #tpu.dot_dimension_numbers<[2], [1], [1], [2], [0, 0, 0, 1, 1, 2], [0], [0]>} : vector<4x64x64xbf16>, vector<4x64x64xbf16>, vector<4x64x64xf32> -> vector<4x64x64xf32>
      "tpu.trace_stop"() : () -> ()
      %59 = tpu.reciprocal %56 : vector<4x64x1xf32> -> vector<4x64x1xf32>
      %60 = vector.broadcast %59 : vector<4x64x1xf32> to vector<4x64x64xf32>
      %61 = arith.mulf %58, %60 : vector<4x64x64xf32>
      %62 = vector.extract_strided_slice %61 {offsets = [0, 0, 0], sizes = [2, 64, 64], strides = [1, 1, 1]} : vector<4x64x64xf32> to vector<2x64x64xf32>
      %63 = vector.extract_strided_slice %61 {offsets = [2, 0, 0], sizes = [2, 64, 64], strides = [1, 1, 1]} : vector<4x64x64xf32> to vector<2x64x64xf32>
      %64 = tpu.concatenate %62, %63 in 2 : vector<2x64x64xf32>, vector<2x64x64xf32> -> vector<2x64x128xf32>
      %65 = vector.shape_cast %64 : vector<2x64x128xf32> to vector<128x128xf32>
      %66 = arith.truncf %65 : vector<128x128xf32> to vector<128x128xbf16>
      %c0_30 = arith.constant 0 : index
      %c0_31 = arith.constant 0 : index
      %67 = vector.load %arg5[%c0_30, %c0_31] : memref<128x128xbf16, #tpu.memory_space<vmem>>, vector<128x128xbf16>
      %cst_32 = arith.constant dense<0.000000e+00> : vector<128x128xf32>
      %68 = tpu.matmul %66, %67, %cst_32 {dimension_numbers = #tpu.dot_dimension_numbers<[1], [0], [0], [1], [0, 0, 1, 1], [], []>} : vector<128x128xbf16>, vector<128x128xbf16>, vector<128x128xf32> -> vector<128x128xf32>
      %c0_33 = arith.constant 0 : index
      %c0_34 = arith.constant 0 : index
      %69 = vector.load %arg6[%c0_33, %c0_34] : memref<1x128xf32, #tpu.memory_space<vmem>>, vector<1x128xf32>
      %70 = vector.broadcast %69 : vector<1x128xf32> to vector<128x128xf32>
      %71 = arith.addf %68, %70 : vector<128x128xf32>
      %72 = arith.addf %24, %71 : vector<128x128xf32>
      %c0_35 = arith.constant 0 : index
      %c0_36 = arith.constant 0 : index
      %73 = vector.load %arg7[%c0_35, %c0_36] : memref<1x128xf32, #tpu.memory_space<vmem>>, vector<1x128xf32>
      %c0_37 = arith.constant 0 : index
      %c0_38 = arith.constant 0 : index
      %74 = vector.load %arg8[%c0_37, %c0_38] : memref<1x128xf32, #tpu.memory_space<vmem>>, vector<1x128xf32>
      %cst_39 = arith.constant dense<0.000000e+00> : vector<128xf32>
      %75 = vector.multi_reduction <add>, %72, %cst_39 [1] : vector<128x128xf32> to vector<128xf32>
      %76 = vector.shape_cast %75 : vector<128xf32> to vector<128x1xf32>
      %cst_40 = arith.constant 7.812500e-03 : f32
      %77 = vector.broadcast %cst_40 : f32 to vector<128x1xf32>
      %78 = arith.mulf %76, %77 : vector<128x1xf32>
      %79 = arith.mulf %72, %72 : vector<128x128xf32>
      %cst_41 = arith.constant dense<0.000000e+00> : vector<128xf32>
      %80 = vector.multi_reduction <add>, %79, %cst_41 [1] : vector<128x128xf32> to vector<128xf32>
      %81 = vector.shape_cast %80 : vector<128xf32> to vector<128x1xf32>
      %cst_42 = arith.constant 7.812500e-03 : f32
      %82 = vector.broadcast %cst_42 : f32 to vector<128x1xf32>
      %83 = arith.mulf %81, %82 : vector<128x1xf32>
      %84 = arith.mulf %78, %78 : vector<128x1xf32>
      %85 = arith.subf %83, %84 : vector<128x1xf32>
      %cst_43 = arith.constant 0.000000e+00 : f32
      %86 = vector.broadcast %cst_43 : f32 to vector<128x1xf32>
      %87 = arith.maximumf %85, %86 : vector<128x1xf32>
      %88 = vector.broadcast %78 : vector<128x1xf32> to vector<128x128xf32>
      %89 = arith.subf %72, %88 : vector<128x128xf32>
      %cst_44 = arith.constant 9.99999974E-6 : f32
      %90 = vector.broadcast %cst_44 : f32 to vector<128x1xf32>
      %91 = arith.addf %87, %90 : vector<128x1xf32>
      %92 = math.rsqrt %91 : vector<128x1xf32>
      %93 = vector.broadcast %92 : vector<128x1xf32> to vector<128x128xf32>
      %94 = arith.mulf %89, %93 : vector<128x128xf32>
      %95 = vector.broadcast %73 : vector<1x128xf32> to vector<128x128xf32>
      %96 = arith.mulf %94, %95 : vector<128x128xf32>
      %97 = vector.broadcast %74 : vector<1x128xf32> to vector<128x128xf32>
      %98 = arith.addf %96, %97 : vector<128x128xf32>
      %c0_45 = arith.constant 0 : index
      %c0_46 = arith.constant 0 : index
      %99 = vector.load %arg18[%c0_45, %c0_46] : memref<128x128xf32, #tpu.memory_space<vmem>>, vector<128x128xf32>
      tpu.vector_store %arg18[%c0_45, %c0_46], %98 {strides = array<i32>} : memref<128x128xf32, #tpu.memory_space<vmem>>, vector<128x128xf32>,
      %cst_47 = arith.constant 0.000000e+00 : f32
      %100 = vector.broadcast %cst_47 : f32 to vector<128x128xf32>
      %c0_48 = arith.constant 0 : index
      %c0_49 = arith.constant 0 : index
      %101 = vector.load %arg19[%c0_48, %c0_49] : memref<128x128xf32, #tpu.memory_space<vmem>>, vector<128x128xf32>
      tpu.vector_store %arg19[%c0_48, %c0_49], %100 {strides = array<i32>} : memref<128x128xf32, #tpu.memory_space<vmem>>, vector<128x128xf32>,
    } else {
    }
    %c0 = arith.constant 0 : index
    %c0_1 = arith.constant 0 : index
    %3 = vector.load %arg18[%c0, %c0_1] : memref<128x128xf32, #tpu.memory_space<vmem>>, vector<128x128xf32>
    %4 = arith.truncf %3 : vector<128x128xf32> to vector<128x128xbf16>
    %c0_2 = arith.constant 0 : index
    %c0_3 = arith.constant 0 : index
    %5 = vector.load %arg9[%c0_2, %c0_3] : memref<128x512xbf16, #tpu.memory_space<vmem>>, vector<128x512xbf16>
    %cst = arith.constant dense<0.000000e+00> : vector<128x512xf32>
    %6 = tpu.matmul %4, %5, %cst {dimension_numbers = #tpu.dot_dimension_numbers<[1], [0], [0], [1], [0, 0, 1, 1], [], []>} : vector<128x128xbf16>, vector<128x512xbf16>, vector<128x512xf32> -> vector<128x512xf32>
    %c0_4 = arith.constant 0 : index
    %c0_5 = arith.constant 0 : index
    %7 = vector.load %arg10[%c0_4, %c0_5] : memref<1x512xf32, #tpu.memory_space<vmem>>, vector<1x512xf32>
    %8 = vector.broadcast %7 : vector<1x512xf32> to vector<128x512xf32>
    %9 = arith.addf %6, %8 : vector<128x512xf32>
    %cst_6 = arith.constant 0.000000e+00 : f32
    %10 = vector.broadcast %cst_6 : f32 to vector<128x512xf32>
    %11 = arith.maximumf %9, %10 : vector<128x512xf32>
    %12 = arith.truncf %11 : vector<128x512xf32> to vector<128x512xbf16>
    %c0_7 = arith.constant 0 : index
    %c0_8 = arith.constant 0 : index
    %13 = vector.load %arg19[%c0_7, %c0_8] : memref<128x128xf32, #tpu.memory_space<vmem>>, vector<128x128xf32>
    %c0_9 = arith.constant 0 : index
    %c0_10 = arith.constant 0 : index
    %14 = vector.load %arg11[%c0_9, %c0_10] : memref<512x128xbf16, #tpu.memory_space<vmem>>, vector<512x128xbf16>
    %cst_11 = arith.constant dense<0.000000e+00> : vector<128x128xf32>
    %15 = tpu.matmul %12, %14, %cst_11 {dimension_numbers = #tpu.dot_dimension_numbers<[1], [0], [0], [1], [0, 0, 1, 1], [], []>} : vector<128x512xbf16>, vector<512x128xbf16>, vector<128x128xf32> -> vector<128x128xf32>
    %16 = arith.addf %13, %15 : vector<128x128xf32>
    %c0_12 = arith.constant 0 : index
    %c0_13 = arith.constant 0 : index
    %17 = vector.load %arg19[%c0_12, %c0_13] : memref<128x128xf32, #tpu.memory_space<vmem>>, vector<128x128xf32>
    tpu.vector_store %arg19[%c0_12, %c0_13], %16 {strides = array<i32>} : memref<128x128xf32, #tpu.memory_space<vmem>>, vector<128x128xf32>,
    %c3_i32 = arith.constant 3 : i32
    %18 = arith.cmpi eq, %arg0, %c3_i32 : i32
    %19 = arith.extui %18 : i1 to i32
    %c0_i32_14 = arith.constant 0 : i32
    %20 = arith.cmpi ne, %19, %c0_i32_14 : i32
    scf.if %20 {
      %c0_15 = arith.constant 0 : index
      %c0_16 = arith.constant 0 : index
      %21 = vector.load %arg19[%c0_15, %c0_16] : memref<128x128xf32, #tpu.memory_space<vmem>>, vector<128x128xf32>
      %c0_17 = arith.constant 0 : index
      %c0_18 = arith.constant 0 : index
      %22 = vector.load %arg12[%c0_17, %c0_18] : memref<1x128xf32, #tpu.memory_space<vmem>>, vector<1x128xf32>
      %23 = vector.broadcast %22 : vector<1x128xf32> to vector<128x128xf32>
      %24 = arith.addf %21, %23 : vector<128x128xf32>
      %c0_19 = arith.constant 0 : index
      %c0_20 = arith.constant 0 : index
      %25 = vector.load %arg18[%c0_19, %c0_20] : memref<128x128xf32, #tpu.memory_space<vmem>>, vector<128x128xf32>
      %26 = arith.addf %25, %24 : vector<128x128xf32>
      %c0_21 = arith.constant 0 : index
      %c0_22 = arith.constant 0 : index
      %27 = vector.load %arg13[%c0_21, %c0_22] : memref<1x128xf32, #tpu.memory_space<vmem>>, vector<1x128xf32>
      %c0_23 = arith.constant 0 : index
      %c0_24 = arith.constant 0 : index
      %28 = vector.load %arg14[%c0_23, %c0_24] : memref<1x128xf32, #tpu.memory_space<vmem>>, vector<1x128xf32>
      %cst_25 = arith.constant dense<0.000000e+00> : vector<128xf32>
      %29 = vector.multi_reduction <add>, %26, %cst_25 [1] : vector<128x128xf32> to vector<128xf32>
      %30 = vector.shape_cast %29 : vector<128xf32> to vector<128x1xf32>
      %cst_26 = arith.constant 7.812500e-03 : f32
      %31 = vector.broadcast %cst_26 : f32 to vector<128x1xf32>
      %32 = arith.mulf %30, %31 : vector<128x1xf32>
      %33 = arith.mulf %26, %26 : vector<128x128xf32>
      %cst_27 = arith.constant dense<0.000000e+00> : vector<128xf32>
      %34 = vector.multi_reduction <add>, %33, %cst_27 [1] : vector<128x128xf32> to vector<128xf32>
      %35 = vector.shape_cast %34 : vector<128xf32> to vector<128x1xf32>
      %cst_28 = arith.constant 7.812500e-03 : f32
      %36 = vector.broadcast %cst_28 : f32 to vector<128x1xf32>
      %37 = arith.mulf %35, %36 : vector<128x1xf32>
      %38 = arith.mulf %32, %32 : vector<128x1xf32>
      %39 = arith.subf %37, %38 : vector<128x1xf32>
      %cst_29 = arith.constant 0.000000e+00 : f32
      %40 = vector.broadcast %cst_29 : f32 to vector<128x1xf32>
      %41 = arith.maximumf %39, %40 : vector<128x1xf32>
      %42 = vector.broadcast %32 : vector<128x1xf32> to vector<128x128xf32>
      %43 = arith.subf %26, %42 : vector<128x128xf32>
      %cst_30 = arith.constant 9.99999974E-6 : f32
      %44 = vector.broadcast %cst_30 : f32 to vector<128x1xf32>
      %45 = arith.addf %41, %44 : vector<128x1xf32>
      %46 = math.rsqrt %45 : vector<128x1xf32>
      %47 = vector.broadcast %46 : vector<128x1xf32> to vector<128x128xf32>
      %48 = arith.mulf %43, %47 : vector<128x128xf32>
      %49 = vector.broadcast %27 : vector<1x128xf32> to vector<128x128xf32>
      %50 = arith.mulf %48, %49 : vector<128x128xf32>
      %51 = vector.broadcast %28 : vector<1x128xf32> to vector<128x128xf32>
      %52 = arith.addf %50, %51 : vector<128x128xf32>
      %53 = arith.truncf %52 : vector<128x128xf32> to vector<128x128xbf16>
      %c0_31 = arith.constant 0 : index
      %c0_32 = arith.constant 0 : index
      %54 = vector.load %arg15[%c0_31, %c0_32] : memref<128x128xbf16, #tpu.memory_space<vmem>>, vector<128x128xbf16>
      %cst_33 = arith.constant dense<0.000000e+00> : vector<128x128xf32>
      %55 = tpu.matmul %53, %54, %cst_33 {dimension_numbers = #tpu.dot_dimension_numbers<[1], [0], [0], [1], [0, 0, 1, 1], [], []>} : vector<128x128xbf16>, vector<128x128xbf16>, vector<128x128xf32> -> vector<128x128xf32>
      %c0_34 = arith.constant 0 : index
      %c0_35 = arith.constant 0 : index
      %56 = vector.load %arg16[%c0_34, %c0_35] : memref<1x128xf32, #tpu.memory_space<vmem>>, vector<1x128xf32>
      %57 = vector.broadcast %56 : vector<1x128xf32> to vector<128x128xf32>
      %58 = arith.addf %55, %57 : vector<128x128xf32>
      %59 = vector.shape_cast %58 : vector<128x128xf32> to vector<2x64x128xf32>
      %c0_36 = arith.constant 0 : index
      %c0_37 = arith.constant 0 : index
      %c0_38 = arith.constant 0 : index
      %60 = vector.load %arg17[%c0_36, %c0_37, %c0_38] : memref<2x64x128xf32, #tpu.memory_space<vmem>>, vector<2x64x128xf32>
      tpu.vector_store %arg17[%c0_36, %c0_37, %c0_38], %59 {strides = array<i32>} : memref<2x64x128xf32, #tpu.memory_space<vmem>>, vector<2x64x128xf32>,
    } else {
    }
    return
  }
  func.func @transform_0(%arg0: i32) -> (i32, i32, i32) {
    %c0_i32 = arith.constant 0 : i32
    %c0_i32_0 = arith.constant 0 : i32
    %c0_i32_1 = arith.constant 0 : i32
    %c0_i32_2 = arith.constant 0 : i32
    return %c0_i32, %c0_i32_0, %c0_i32_1 : i32, i32, i32
  }
  func.func @transform_1(%arg0: i32) -> (i32, i32) {
    %c0_i32 = arith.constant 0 : i32
    %c0_i32_0 = arith.constant 0 : i32
    %c0_i32_1 = arith.constant 0 : i32
    return %c0_i32, %c0_i32_0 : i32, i32
  }
  func.func @transform_2(%arg0: i32) -> (i32, i32) {
    %c0_i32 = arith.constant 0 : i32
    %c0_i32_0 = arith.constant 0 : i32
    %c0_i32_1 = arith.constant 0 : i32
    return %c0_i32, %c0_i32_0 : i32, i32
  }
  func.func @transform_3(%arg0: i32) -> (i32, i32) {
    %c0_i32 = arith.constant 0 : i32
    %c0_i32_0 = arith.constant 0 : i32
    %c0_i32_1 = arith.constant 0 : i32
    return %c0_i32, %c0_i32_0 : i32, i32
  }
  func.func @transform_4(%arg0: i32) -> (i32, i32) {
    %c0_i32 = arith.constant 0 : i32
    %c0_i32_0 = arith.constant 0 : i32
    %c0_i32_1 = arith.constant 0 : i32
    return %c0_i32, %c0_i32_0 : i32, i32
  }
  func.func @transform_5(%arg0: i32) -> (i32, i32) {
    %c0_i32 = arith.constant 0 : i32
    %c0_i32_0 = arith.constant 0 : i32
    %c0_i32_1 = arith.constant 0 : i32
    return %c0_i32, %c0_i32_0 : i32, i32
  }
  func.func @transform_6(%arg0: i32) -> (i32, i32) {
    %c0_i32 = arith.constant 0 : i32
    %c0_i32_0 = arith.constant 0 : i32
    %c0_i32_1 = arith.constant 0 : i32
    return %c0_i32, %c0_i32_0 : i32, i32
  }
  func.func @transform_7(%arg0: i32) -> (i32, i32) {
    %c0_i32 = arith.constant 0 : i32
    %c0_i32_0 = arith.constant 0 : i32
    %c0_i32_1 = arith.constant 0 : i32
    return %c0_i32, %c0_i32_0 : i32, i32
  }
  func.func @transform_8(%arg0: i32) -> (i32, i32) {
    %c0_i32 = arith.constant 0 : i32
    %c0_i32_0 = arith.constant 0 : i32
    return %c0_i32, %arg0 : i32, i32
  }
  func.func @transform_9(%arg0: i32) -> (i32, i32) {
    %c0_i32 = arith.constant 0 : i32
    %c0_i32_0 = arith.constant 0 : i32
    return %c0_i32, %arg0 : i32, i32
  }
  func.func @transform_10(%arg0: i32) -> (i32, i32) {
    %c0_i32 = arith.constant 0 : i32
    %c0_i32_0 = arith.constant 0 : i32
    return %arg0, %c0_i32 : i32, i32
  }
  func.func @transform_11(%arg0: i32) -> (i32, i32) {
    %c0_i32 = arith.constant 0 : i32
    %c0_i32_0 = arith.constant 0 : i32
    %c0_i32_1 = arith.constant 0 : i32
    return %c0_i32, %c0_i32_0 : i32, i32
  }
  func.func @transform_12(%arg0: i32) -> (i32, i32) {
    %c0_i32 = arith.constant 0 : i32
    %c0_i32_0 = arith.constant 0 : i32
    %c0_i32_1 = arith.constant 0 : i32
    return %c0_i32, %c0_i32_0 : i32, i32
  }
  func.func @transform_13(%arg0: i32) -> (i32, i32) {
    %c0_i32 = arith.constant 0 : i32
    %c0_i32_0 = arith.constant 0 : i32
    %c0_i32_1 = arith.constant 0 : i32
    return %c0_i32, %c0_i32_0 : i32, i32
  }
  func.func @transform_14(%arg0: i32) -> (i32, i32) {
    %c0_i32 = arith.constant 0 : i32
    %c0_i32_0 = arith.constant 0 : i32
    %c0_i32_1 = arith.constant 0 : i32
    return %c0_i32, %c0_i32_0 : i32, i32
  }
  func.func @transform_15(%arg0: i32) -> (i32, i32) {
    %c0_i32 = arith.constant 0 : i32
    %c0_i32_0 = arith.constant 0 : i32
    %c0_i32_1 = arith.constant 0 : i32
    return %c0_i32, %c0_i32_0 : i32, i32
  }
  func.func @transform_16(%arg0: i32) -> (i32, i32, i32) {
    %c0_i32 = arith.constant 0 : i32
    %c0_i32_0 = arith.constant 0 : i32
    %c0_i32_1 = arith.constant 0 : i32
    %c0_i32_2 = arith.constant 0 : i32
    return %c0_i32, %c0_i32_0, %c0_i32_1 : i32, i32, i32
  }
}

</mosaic_0001>

<llo_original>
// kernel: tile.18
$region0: #{tile.18}
  #allocation0 [shape = 's32[1]{0}', space=sflag, size = 0x4, scoped, tag = 'scoped memory for tile.18']
  %s0 = inlined_call_operand.vmem [shape: f32[32], index: 0, kind: input, shape index: {}]
  %s1 = inlined_call_operand.vmem [shape: f32[4,32], index: 1, kind: output, shape index: {}]
  // Predicated region
  $region2: #{tile.18} parent=0 // pred_check
    _
  $region3: #{tile.18} parent=0 // pred_check_branch
    %3 = sbr.rel (0) target = $region5
  $region4: #{tile.18} parent=0 // pred_region
    _
  $region5: #{tile.18} parent=0 // pred_fallthru
    _
  %v4 = vld [vmem:[%s0] ss:$0 sm:$0xff]
  %5 = vst [vmem:[%s1] sm:$0xf] %v4

// kernel: tile.19
$region0: #{tile.19}
  %s0 = inlined_call_operand.vmem [shape: f32[4,32], index: 0, kind: input, shape index: {}]
  %s1 = inlined_call_operand.vmem [shape: f32[1,128], index: 1, kind: output, shape index: {}]
  $region1: #{tile.19} parent=0
    #allocation0 [shape = 'u8[4096]{0}', space=vmem, size = 0x1000, scoped, tag = 'scoped mem for output reshape']
    #allocation1 [shape = 'u8[4096]{0}', space=vmem, size = 0x1000, scoped, tag = 'scoped mem for input reshape']
    %s3 = sshll.u32 1, 4
    %s4 = ssub.s32 %s3, 1
    %v5 = vld [vmem:[%s0] sm:%s4]
    %6 = vst [vmem:[#allocation1] sm:%s4] %v5
    %v7 = vld [vmem:[#allocation1] sm:$0x1]
    %vm8 = vcmask 261120
    %9 = vst.msk [vmem:[#allocation0] sm:$0x1] %vm8, %v7
    %s10 = scalar_lea.vmem [#allocation1], 3
    %v11 = vld [vmem:[%s10] sm:$0x1]
    %12 = vrot.lane.b32.xlu0 %v11, 96
    %v13 = vpop.permute.xlu0 %12
    %vm14 = vcmask 1048320
    %15 = vst.msk [vmem:[#allocation0] sm:$0x1] %vm14, %v13
    %s16 = scalar_lea.vmem [#allocation1], 2
    %v17 = vld [vmem:[%s16] sm:$0x1]
    %18 = vrot.lane.b32.xlu0 %v17, 64
    %v19 = vpop.permute.xlu0 %18
    %vm20 = vcmask 785920
    %21 = vst.msk [vmem:[#allocation0] sm:$0x1] %vm20, %v19
    %s22 = scalar_lea.vmem [#allocation1], 1
    %v23 = vld [vmem:[%s22] sm:$0x1]
    %24 = vrot.lane.b32.xlu0 %v23, 32
    %v25 = vpop.permute.xlu0 %24
    %vm26 = vcmask 523520
    %27 = vst.msk [vmem:[#allocation0] sm:$0x1] %vm26, %v25
    %s29 = sshll.u32 1, 1
    %s30 = ssub.s32 %s29, 1
    %v32 = vld [vmem:[#allocation0] sm:%s30]
    %s33 = sshll.u32 1, 1
    %s34 = ssub.s32 %s33, 1
    %35 = vst [vmem:[%s1] sm:%s34] %v32

// kernel: mul.51
$region0: #{mul.51}
  %s0 = inlined_call_operand.vmem [shape: f32[4,32], index: 0, kind: input, shape index: {}]
  %s1 = inlined_call_operand.vmem [shape: f32[128], index: 1, kind: output, shape index: {}]
  $region1: #{mul.51} parent=0
    #allocation0 [shape = 'u8[4096]{0}', space=vmem, size = 0x1000, scoped, tag = 'scoped mem for output reshape']
    #allocation1 [shape = 'u8[4096]{0}', space=vmem, size = 0x1000, scoped, tag = 'scoped mem for input reshape']
    %s3 = sshll.u32 1, 4
    %s4 = ssub.s32 %s3, 1
    %v5 = vld [vmem:[%s0] sm:%s4]
    %6 = vst [vmem:[#allocation1] sm:%s4] %v5
    %v7 = vld [vmem:[#allocation1] sm:$0x1]
    %vm8 = vcmask 261120
    %9 = vst.msk [vmem:[#allocation0] sm:$0x1] %vm8, %v7
    %s10 = scalar_lea.vmem [#allocation1], 3
    %v11 = vld [vmem:[%s10] sm:$0x1]
    %12 = vrot.lane.b32.xlu0 %v11, 96
    %v13 = vpop.permute.xlu0 %12
    %vm14 = vcmask 1048320
    %15 = vst.msk [vmem:[#allocation0] sm:$0x1] %vm14, %v13
    %s16 = scalar_lea.vmem [#allocation1], 2
    %v17 = vld [vmem:[%s16] sm:$0x1]
    %18 = vrot.lane.b32.xlu0 %v17, 64
    %v19 = vpop.permute.xlu0 %18
    %vm20 = vcmask 785920
    %21 = vst.msk [vmem:[#allocation0] sm:$0x1] %vm20, %v19
    %s22 = scalar_lea.vmem [#allocation1], 1
    %v23 = vld [vmem:[%s22] sm:$0x1]
    %24 = vrot.lane.b32.xlu0 %v23, 32
    %v25 = vpop.permute.xlu0 %24
    %vm26 = vcmask 523520
    %27 = vst.msk [vmem:[#allocation0] sm:$0x1] %vm26, %v25
    %s29 = sshll.u32 1, 1
    %s30 = ssub.s32 %s29, 1
    %v32 = vld [vmem:[#allocation0] sm:%s30]
    %s33 = sshll.u32 1, 1
    %s34 = ssub.s32 %s33, 1
    %35 = vst [vmem:[%s1] sm:%s34] %v32

// kernel: mul.47
$region0: #{mul.47}
  #allocation2 [shape = 's32[1]{0}', space=sflag, size = 0x4, scoped, tag = 'scoped memory for mul.47']
  %s0 = inlined_call_operand.hbm [shape: f32[384], index: 0, kind: input, shape index: {}]
  %s1 = inlined_call_operand.vmem [shape: f32[384], index: 1, kind: input, shape index: {}]
  %s2 = inlined_call_operand.vmem [shape: f32[384], index: 2, kind: output, shape index: {}]
  $region1: #{mul.47} parent=0
    #allocation0 [shape = 'u8[2048]{0}', space=vmem, size = 0x800, scoped, tag = 'operand span for operand 0']
    #allocation1 [shape = 's32[1]{0}', space=sflag, size = 0x4, scoped, tag = 'scoped memory for mul.47']
    %3 = vsyncpa [#allocation1], 0
    %s5 = ssub.s32 64, 64
    %6 = vsyncadd [#allocation1], %s5
    %s8 = sshll.u32 [#allocation0], 4
    %s9 = int_to_ptr.vmem [resolvable:$true] %s8
    %11 = dma.hbm_to_vmem [thread:$0]  %s0, 64, %s9, [#allocation1]
    %12 = dma.done [#allocation1], 64
    %v13 = vld [vmem:[#allocation0] sm:$0x7]
    %v14 = vld [vmem:[%s1] sm:$0x7]
    %15 = xla_tuple %v13, %v14
    %16 = xla_tuple %15
    %v17 = vmul.f32 %v13, %v14
    %18 = xla_tuple %v17
    %19 = vst [vmem:[%s2] sm:$0xf] %v17
    %20 = vsyncpa [#allocation1], 1

// kernel: mobilevit_block.1
$region0: #{mobilevit_block.1}
  #allocation0 [shape = 'u32[]', space=smem, size = 0x4, offset = 0x4, fixed_abs, tag = 'smem constant byte address 0x4 - core index']
  #allocation1 [shape = 'u32[144,128]{1,0:T(1,128)}', space=vmem, size = 0x12000, scoped, tag = 'internal scratch']
  #allocation2 [shape = 'f32[128,128]{1,0:T(8,128)}', space=vmem, size = 0x10000, scoped, tag = 'scratch operand']
  #allocation3 [shape = 'f32[128,128]{1,0:T(8,128)}', space=vmem, size = 0x10000, scoped, tag = 'scratch operand']
  %s0 = inlined_call_operand.vmem [shape: bf16[2,64,128], index: 0, kind: input, shape index: {}]
  %s1 = inlined_call_operand.vmem [shape: bf16[128,128], index: 1, kind: input, shape index: {}]
  %s2 = inlined_call_operand.vmem [shape: bf16[128,384], index: 2, kind: input, shape index: {}]
  %s3 = inlined_call_operand.vmem [shape: f32[1,384], index: 3, kind: input, shape index: {}]
  %s4 = inlined_call_operand.vmem [shape: bf16[128,128], index: 4, kind: input, shape index: {}]
  %s5 = inlined_call_operand.vmem [shape: f32[1,128], index: 5, kind: input, shape index: {}]
  %s6 = inlined_call_operand.vmem [shape: f32[1,128], index: 6, kind: input, shape index: {}]
  %s7 = inlined_call_operand.vmem [shape: f32[1,128], index: 7, kind: input, shape index: {}]
  %s8 = inlined_call_operand.vmem [shape: bf16[128,2048], index: 8, kind: input, shape index: {}]
  %s9 = inlined_call_operand.vmem [shape: f32[1,2048], index: 9, kind: input, shape index: {}]
  %s10 = inlined_call_operand.vmem [shape: bf16[2048,128], index: 10, kind: input, shape index: {}]
  %s11 = inlined_call_operand.vmem [shape: f32[1,128], index: 11, kind: input, shape index: {}]
  %s12 = inlined_call_operand.vmem [shape: f32[1,128], index: 12, kind: input, shape index: {}]
  %s13 = inlined_call_operand.vmem [shape: f32[1,128], index: 13, kind: input, shape index: {}]
  %s14 = inlined_call_operand.vmem [shape: bf16[128,128], index: 14, kind: input, shape index: {}]
  %s15 = inlined_call_operand.vmem [shape: f32[1,128], index: 15, kind: input, shape index: {}]
  %s16 = inlined_call_operand.vmem [shape: f32[2,64,128], index: 16, kind: output, shape index: {}]
  %s17 = sld [smem:[#allocation0]]
  $region128: #{mobilevit_block.1} parent=0
    _
  %s19 = ssub.s32 1, %s17
  %s20 = scalar_select 0, %s19, %s17
  $region1: #{mobilevit_block.1} parent=0
    #allocation4 [shape = 'u8[262144]{0}', space=vmem, size = 0x40000, scoped, tag = 'input window, operand 8']
    loop: start=0, step=1, limit=6
    $region2: #{mobilevit_block.1} parent=1 // loop_pre_header
      _
    $region3: #{mobilevit_block.1} parent=1 // loop_header
      %s22 = sphi 0, %s26
      %p23 = scmp.ge.s32.totalorder %s22, 6
      %s30 = sphi 0, %s30
      %s32 = sphi 0, %s30
      %s33 = sphi 0, %s32
      %s47 = sphi 0, %s33
      %s51 = sphi 0, %s51
      %s53 = sphi 0, %s51
      %s54 = sphi 0, %s53
      %s68 = sphi 0, %s54
      %s72 = sphi 0, %s72
      %s74 = sphi 0, %s72
      %s75 = sphi 0, %s74
      %s89 = sphi 0, %s75
      %s93 = sphi 0, %s93
      %s95 = sphi 0, %s93
      %s96 = sphi 0, %s95
      %s110 = sphi 0, %s96
      %s114 = sphi 0, %s114
      %s116 = sphi 0, %s114
      %s117 = sphi 0, %s116
      %s131 = sphi 0, %s117
      %s135 = sphi 0, %s135
      %s137 = sphi 0, %s135
      %s138 = sphi 0, %s137
      %s152 = sphi 0, %s138
      %s156 = sphi 0, %s156
      %s158 = sphi 0, %s156
      %s159 = sphi 0, %s158
      %s173 = sphi 0, %s159
      %s177 = sphi 0, %s177
      %s179 = sphi 0, %s177
      %s180 = sphi 0, %s179
      %s194 = sphi 0, %s180
      %s200 = sphi 0, %s202
      %s203 = sphi 0, %s200
      %s204 = sphi 0, %s203
      %s220 = sphi 0, %s204
      %s226 = sphi 0, %s228
      %s229 = sphi 0, %s226
      %s230 = sphi 0, %s229
      %s246 = sphi 0, %s230
      %s252 = sphi 0, %s254
      %s255 = sphi 0, %s252
      %s256 = sphi 0, %s255
      %s272 = sphi 0, %s256
      %s276 = sphi 0, %s276
      %s278 = sphi 0, %s276
      %s279 = sphi 0, %s278
      %s293 = sphi 0, %s279
      %s297 = sphi 0, %s297
      %s299 = sphi 0, %s297
      %s300 = sphi 0, %s299
      %s314 = sphi 0, %s300
      %s318 = sphi 0, %s318
      %s320 = sphi 0, %s318
      %s321 = sphi 0, %s320
      %s335 = sphi 0, %s321
      %s339 = sphi 0, %s339
      %s341 = sphi 0, %s339
      %s342 = sphi 0, %s341
      %s356 = sphi 0, %s342
      %s360 = sphi 0, %s360
      %s362 = sphi 0, %s360
      %s363 = sphi 0, %s362
      %s377 = sphi 0, %s363
      %s381 = sphi 0, %s381
      %s383 = sphi 0, %s381
      %s384 = sphi 0, %s383
      %s398 = sphi 0, %s384
    $region4: #{mobilevit_block.1} parent=1 // loop_header_branch
      %25 = sbr.rel (%p23) target = $region8
    $region5: #{mobilevit_block.1} parent=1 // loop_body
      %s27 = ssub.s32 %s22, 1
      %s28 = ssub.s32 %s22, 2
      %s29 = sadd.s32 %s22, 1
      %s31 = sadd.s32 %s30, 1
      %p34 = scmp.eq.s32.totalorder %s22, 3
      %p35 = scmp.ne.s32.totalorder %s30, %s32
      %p36 = scmp.eq.s32.totalorder %s22, 0
      %p37 = por %p35, %p36
      %p38 = scmp.ne.s32.totalorder %s30, %s32
      %p39 = scmp.eq.s32.totalorder %s27, 3
      %p40 = por %p38, %p39
      %p41 = scmp.ne.s32.totalorder %s32, %s33
      %p42 = scmp.eq.s32.totalorder %s27, 0
      %p43 = por %p41, %p42
      %p44 = scmp.ne.s32.totalorder %s32, %s33
      %p45 = scmp.eq.s32.totalorder %s28, 3
      %p46 = por %p44, %p45
      %p48 = scmp.ne.s32.totalorder %s33, %s47
      %p49 = scmp.eq.s32.totalorder %s28, 0
      %p50 = por %p48, %p49
      %s52 = sadd.s32 %s51, 1
      %p55 = scmp.eq.s32.totalorder %s22, 3
      %p56 = scmp.ne.s32.totalorder %s51, %s53
      %p57 = scmp.eq.s32.totalorder %s22, 0
      %p58 = por %p56, %p57
      %p59 = scmp.ne.s32.totalorder %s51, %s53
      %p60 = scmp.eq.s32.totalorder %s27, 3
      %p61 = por %p59, %p60
      %p62 = scmp.ne.s32.totalorder %s53, %s54
      %p63 = scmp.eq.s32.totalorder %s27, 0
      %p64 = por %p62, %p63
      %p65 = scmp.ne.s32.totalorder %s53, %s54
      %p66 = scmp.eq.s32.totalorder %s28, 3
      %p67 = por %p65, %p66
      %p69 = scmp.ne.s32.totalorder %s54, %s68
      %p70 = scmp.eq.s32.totalorder %s28, 0
      %p71 = por %p69, %p70
      %s73 = sadd.s32 %s72, 1
      %p76 = scmp.eq.s32.totalorder %s22, 3
      %p77 = scmp.ne.s32.totalorder %s72, %s74
      %p78 = scmp.eq.s32.totalorder %s22, 0
      %p79 = por %p77, %p78
      %p80 = scmp.ne.s32.totalorder %s72, %s74
      %p81 = scmp.eq.s32.totalorder %s27, 3
      %p82 = por %p80, %p81
      %p83 = scmp.ne.s32.totalorder %s74, %s75
      %p84 = scmp.eq.s32.totalorder %s27, 0
      %p85 = por %p83, %p84
      %p86 = scmp.ne.s32.totalorder %s74, %s75
      %p87 = scmp.eq.s32.totalorder %s28, 3
      %p88 = por %p86, %p87
      %p90 = scmp.ne.s32.totalorder %s75, %s89
      %p91 = scmp.eq.s32.totalorder %s28, 0
      %p92 = por %p90, %p91
      %s94 = sadd.s32 %s93, 1
      %p97 = scmp.eq.s32.totalorder %s22, 3
      %p98 = scmp.ne.s32.totalorder %s93, %s95
      %p99 = scmp.eq.s32.totalorder %s22, 0
      %p100 = por %p98, %p99
      %p101 = scmp.ne.s32.totalorder %s93, %s95
      %p102 = scmp.eq.s32.totalorder %s27, 3
      %p103 = por %p101, %p102
      %p104 = scmp.ne.s32.totalorder %s95, %s96
      %p105 = scmp.eq.s32.totalorder %s27, 0
      %p106 = por %p104, %p105
      %p107 = scmp.ne.s32.totalorder %s95, %s96
      %p108 = scmp.eq.s32.totalorder %s28, 3
      %p109 = por %p107, %p108
      %p111 = scmp.ne.s32.totalorder %s96, %s110
      %p112 = scmp.eq.s32.totalorder %s28, 0
      %p113 = por %p111, %p112
      %s115 = sadd.s32 %s114, 1
      %p118 = scmp.eq.s32.totalorder %s22, 3
      %p119 = scmp.ne.s32.totalorder %s114, %s116
      %p120 = scmp.eq.s32.totalorder %s22, 0
      %p121 = por %p119, %p120
      %p122 = scmp.ne.s32.totalorder %s114, %s116
      %p123 = scmp.eq.s32.totalorder %s27, 3
      %p124 = por %p122, %p123
      %p125 = scmp.ne.s32.totalorder %s116, %s117
      %p126 = scmp.eq.s32.totalorder %s27, 0
      %p127 = por %p125, %p126
      %p128 = scmp.ne.s32.totalorder %s116, %s117
      %p129 = scmp.eq.s32.totalorder %s28, 3
      %p130 = por %p128, %p129
      %p132 = scmp.ne.s32.totalorder %s117, %s131
      %p133 = scmp.eq.s32.totalorder %s28, 0
      %p134 = por %p132, %p133
      %s136 = sadd.s32 %s135, 1
      %p139 = scmp.eq.s32.totalorder %s22, 3
      %p140 = scmp.ne.s32.totalorder %s135, %s137
      %p141 = scmp.eq.s32.totalorder %s22, 0
      %p142 = por %p140, %p141
      %p143 = scmp.ne.s32.totalorder %s135, %s137
      %p144 = scmp.eq.s32.totalorder %s27, 3
      %p145 = por %p143, %p144
      %p146 = scmp.ne.s32.totalorder %s137, %s138
      %p147 = scmp.eq.s32.totalorder %s27, 0
      %p148 = por %p146, %p147
      %p149 = scmp.ne.s32.totalorder %s137, %s138
      %p150 = scmp.eq.s32.totalorder %s28, 3
      %p151 = por %p149, %p150
      %p153 = scmp.ne.s32.totalorder %s138, %s152
      %p154 = scmp.eq.s32.totalorder %s28, 0
      %p155 = por %p153, %p154
      %s157 = sadd.s32 %s156, 1
      %p160 = scmp.eq.s32.totalorder %s22, 3
      %p161 = scmp.ne.s32.totalorder %s156, %s158
      %p162 = scmp.eq.s32.totalorder %s22, 0
      %p163 = por %p161, %p162
      %p164 = scmp.ne.s32.totalorder %s156, %s158
      %p165 = scmp.eq.s32.totalorder %s27, 3
      %p166 = por %p164, %p165
      %p167 = scmp.ne.s32.totalorder %s158, %s159
      %p168 = scmp.eq.s32.totalorder %s27, 0
      %p169 = por %p167, %p168
      %p170 = scmp.ne.s32.totalorder %s158, %s159
      %p171 = scmp.eq.s32.totalorder %s28, 3
      %p172 = por %p170, %p171
      %p174 = scmp.ne.s32.totalorder %s159, %s173
      %p175 = scmp.eq.s32.totalorder %s28, 0
      %p176 = por %p174, %p175
      %s178 = sadd.s32 %s177, 1
      %p181 = scmp.eq.s32.totalorder %s22, 3
      %p182 = scmp.ne.s32.totalorder %s177, %s179
      %p183 = scmp.eq.s32.totalorder %s22, 0
      %p184 = por %p182, %p183
      %p185 = scmp.ne.s32.totalorder %s177, %s179
      %p186 = scmp.eq.s32.totalorder %s27, 3
      %p187 = por %p185, %p186
      %p188 = scmp.ne.s32.totalorder %s179, %s180
      %p189 = scmp.eq.s32.totalorder %s27, 0
      %p190 = por %p188, %p189
      %p191 = scmp.ne.s32.totalorder %s179, %s180
      %p192 = scmp.eq.s32.totalorder %s28, 3
      %p193 = por %p191, %p192
      %p195 = scmp.ne.s32.totalorder %s180, %s194
      %p196 = scmp.eq.s32.totalorder %s28, 0
      %p197 = por %p195, %p196
      %s198 = ssub.s32 %s22, %s29
      %p199 = scmp.eq.s32.totalorder %s198, 0
      %s201 = sadd.s32 %s200, 1
      %s202 = scalar_select %p199, %s200, %s201
      %p205 = pneg %p199
      %p206 = scmp.eq.s32.totalorder %s22, 3
      %p207 = por %p205, %p206
      %p208 = scmp.ne.s32.totalorder %s200, %s203
      %p209 = scmp.eq.s32.totalorder %s22, 0
      %p210 = por %p208, %p209
      %p211 = scmp.ne.s32.totalorder %s200, %s203
      %p212 = scmp.eq.s32.totalorder %s27, 3
      %p213 = por %p211, %p212
      %p214 = scmp.ne.s32.totalorder %s203, %s204
      %p215 = scmp.eq.s32.totalorder %s27, 0
      %p216 = por %p214, %p215
      %p217 = scmp.ne.s32.totalorder %s203, %s204
      %p218 = scmp.eq.s32.totalorder %s28, 3
      %p219 = por %p217, %p218
      %p221 = scmp.ne.s32.totalorder %s204, %s220
      %p222 = scmp.eq.s32.totalorder %s28, 0
      %p223 = por %p221, %p222
      %s224 = ssub.s32 %s22, %s29
      %p225 = scmp.eq.s32.totalorder %s224, 0
      %s227 = sadd.s32 %s226, 1
      %s228 = scalar_select %p225, %s226, %s227
      %p231 = pneg %p225
      %p232 = scmp.eq.s32.totalorder %s22, 3
      %p233 = por %p231, %p232
      %p234 = scmp.ne.s32.totalorder %s226, %s229
      %p235 = scmp.eq.s32.totalorder %s22, 0
      %p236 = por %p234, %p235
      %p237 = scmp.ne.s32.totalorder %s226, %s229
      %p238 = scmp.eq.s32.totalorder %s27, 3
      %p239 = por %p237, %p238
      %p240 = scmp.ne.s32.totalorder %s229, %s230
      %p241 = scmp.eq.s32.totalorder %s27, 0
      %p242 = por %p240, %p241
      %p243 = scmp.ne.s32.totalorder %s229, %s230
      %p244 = scmp.eq.s32.totalorder %s28, 3
      %p245 = por %p243, %p244
      %p247 = scmp.ne.s32.totalorder %s230, %s246
      %p248 = scmp.eq.s32.totalorder %s28, 0
      %p249 = por %p247, %p248
      %s250 = ssub.s32 %s22, %s29
      %p251 = scmp.eq.s32.totalorder %s250, 0
      %s253 = sadd.s32 %s252, 1
      %s254 = scalar_select %p251, %s252, %s253
      %p257 = pneg %p251
      %p258 = scmp.eq.s32.totalorder %s22, 3
      %p259 = por %p257, %p258
      %p260 = scmp.ne.s32.totalorder %s252, %s255
      %p261 = scmp.eq.s32.totalorder %s22, 0
      %p262 = por %p260, %p261
      %p263 = scmp.ne.s32.totalorder %s252, %s255
      %p264 = scmp.eq.s32.totalorder %s27, 3
      %p265 = por %p263, %p264
      %p266 = scmp.ne.s32.totalorder %s255, %s256
      %p267 = scmp.eq.s32.totalorder %s27, 0
      %p268 = por %p266, %p267
      %p269 = scmp.ne.s32.totalorder %s255, %s256
      %p270 = scmp.eq.s32.totalorder %s28, 3
      %p271 = por %p269, %p270
      %p273 = scmp.ne.s32.totalorder %s256, %s272
      %p274 = scmp.eq.s32.totalorder %s28, 0
      %p275 = por %p273, %p274
      %s277 = sadd.s32 %s276, 1
      %p280 = scmp.eq.s32.totalorder %s22, 3
      %p281 = scmp.ne.s32.totalorder %s276, %s278
      %p282 = scmp.eq.s32.totalorder %s22, 0
      %p283 = por %p281, %p282
      %p284 = scmp.ne.s32.totalorder %s276, %s278
      %p285 = scmp.eq.s32.totalorder %s27, 3
      %p286 = por %p284, %p285
      %p287 = scmp.ne.s32.totalorder %s278, %s279
      %p288 = scmp.eq.s32.totalorder %s27, 0
      %p289 = por %p287, %p288
      %p290 = scmp.ne.s32.totalorder %s278, %s279
      %p291 = scmp.eq.s32.totalorder %s28, 3
      %p292 = por %p290, %p291
      %p294 = scmp.ne.s32.totalorder %s279, %s293
      %p295 = scmp.eq.s32.totalorder %s28, 0
      %p296 = por %p294, %p295
      %s298 = sadd.s32 %s297, 1
      %p301 = scmp.eq.s32.totalorder %s22, 3
      %p302 = scmp.ne.s32.totalorder %s297, %s299
      %p303 = scmp.eq.s32.totalorder %s22, 0
      %p304 = por %p302, %p303
      %p305 = scmp.ne.s32.totalorder %s297, %s299
      %p306 = scmp.eq.s32.totalorder %s27, 3
      %p307 = por %p305, %p306
      %p308 = scmp.ne.s32.totalorder %s299, %s300
      %p309 = scmp.eq.s32.totalorder %s27, 0
      %p310 = por %p308, %p309
      %p311 = scmp.ne.s32.totalorder %s299, %s300
      %p312 = scmp.eq.s32.totalorder %s28, 3
      %p313 = por %p311, %p312
      %p315 = scmp.ne.s32.totalorder %s300, %s314
      %p316 = scmp.eq.s32.totalorder %s28, 0
      %p317 = por %p315, %p316
      %s319 = sadd.s32 %s318, 1
      %p322 = scmp.eq.s32.totalorder %s22, 3
      %p323 = scmp.ne.s32.totalorder %s318, %s320
      %p324 = scmp.eq.s32.totalorder %s22, 0
      %p325 = por %p323, %p324
      %p326 = scmp.ne.s32.totalorder %s318, %s320
      %p327 = scmp.eq.s32.totalorder %s27, 3
      %p328 = por %p326, %p327
      %p329 = scmp.ne.s32.totalorder %s320, %s321
      %p330 = scmp.eq.s32.totalorder %s27, 0
      %p331 = por %p329, %p330
      %p332 = scmp.ne.s32.totalorder %s320, %s321
      %p333 = scmp.eq.s32.totalorder %s28, 3
      %p334 = por %p332, %p333
      %p336 = scmp.ne.s32.totalorder %s321, %s335
      %p337 = scmp.eq.s32.totalorder %s28, 0
      %p338 = por %p336, %p337
      %s340 = sadd.s32 %s339, 1
      %p343 = scmp.eq.s32.totalorder %s22, 3
      %p344 = scmp.ne.s32.totalorder %s339, %s341
      %p345 = scmp.eq.s32.totalorder %s22, 0
      %p346 = por %p344, %p345
      %p347 = scmp.ne.s32.totalorder %s339, %s341
      %p348 = scmp.eq.s32.totalorder %s27, 3
      %p349 = por %p347, %p348
      %p350 = scmp.ne.s32.totalorder %s341, %s342
      %p351 = scmp.eq.s32.totalorder %s27, 0
      %p352 = por %p350, %p351
      %p353 = scmp.ne.s32.totalorder %s341, %s342
      %p354 = scmp.eq.s32.totalorder %s28, 3
      %p355 = por %p353, %p354
      %p357 = scmp.ne.s32.totalorder %s342, %s356
      %p358 = scmp.eq.s32.totalorder %s28, 0
      %p359 = por %p357, %p358
      %s361 = sadd.s32 %s360, 1
      %p364 = scmp.eq.s32.totalorder %s22, 3
      %p365 = scmp.ne.s32.totalorder %s360, %s362
      %p366 = scmp.eq.s32.totalorder %s22, 0
      %p367 = por %p365, %p366
      %p368 = scmp.ne.s32.totalorder %s360, %s362
      %p369 = scmp.eq.s32.totalorder %s27, 3
      %p370 = por %p368, %p369
      %p371 = scmp.ne.s32.totalorder %s362, %s363
      %p372 = scmp.eq.s32.totalorder %s27, 0
      %p373 = por %p371, %p372
      %p374 = scmp.ne.s32.totalorder %s362, %s363
      %p375 = scmp.eq.s32.totalorder %s28, 3
      %p376 = por %p374, %p375
      %p378 = scmp.ne.s32.totalorder %s363, %s377
      %p379 = scmp.eq.s32.totalorder %s28, 0
      %p380 = por %p378, %p379
      %s382 = sadd.s32 %s381, 1
      %p385 = scmp.eq.s32.totalorder %s22, 3
      %p386 = scmp.ne.s32.totalorder %s381, %s383
      %p387 = scmp.eq.s32.totalorder %s22, 0
      %p388 = por %p386, %p387
      %p389 = scmp.ne.s32.totalorder %s381, %s383
      %p390 = scmp.eq.s32.totalorder %s27, 3
      %p391 = por %p389, %p390
      %p392 = scmp.ne.s32.totalorder %s383, %s384
      %p393 = scmp.eq.s32.totalorder %s27, 0
      %p394 = por %p392, %p393
      %p395 = scmp.ne.s32.totalorder %s383, %s384
      %p396 = scmp.eq.s32.totalorder %s28, 3
      %p397 = por %p395, %p396
      %p399 = scmp.ne.s32.totalorder %s384, %s398
      %p400 = scmp.eq.s32.totalorder %s28, 0
      %p401 = por %p399, %p400
      %p402 = scmp.le.s32.totalorder 1, %s22
      %p403 = scmp.lt.s32.totalorder %s22, 5
      %p404 = pnand %p402, %p403
      %p405 = pneg %p404
      // Predicated region
      $region9: #{mobilevit_block.1} parent=5 // pred_check
        _
      $region10: #{mobilevit_block.1} parent=5 // pred_check_branch
        %407 = sbr.rel (%p404) target = $region12
      $region11: #{mobilevit_block.1} parent=5 // pred_region
        %s408 = ssub.s32 %s22, 1
        // Predicated region
        $region13: #{mobilevit_block.1} parent=11 // pred_check
          %p409 = pneg %p43
        $region14: #{mobilevit_block.1} parent=11 // pred_check_branch
          %411 = sbr.rel (%p409) target = $region16
        $region15: #{mobilevit_block.1} parent=11 // pred_region
          _
        $region16: #{mobilevit_block.1} parent=11 // pred_fallthru
          _
        // Predicated region
        $region17: #{mobilevit_block.1} parent=11 // pred_check
          %p412 = pneg %p64
        $region18: #{mobilevit_block.1} parent=11 // pred_check_branch
          %414 = sbr.rel (%p412) target = $region20
        $region19: #{mobilevit_block.1} parent=11 // pred_region
          _
        $region20: #{mobilevit_block.1} parent=11 // pred_fallthru
          _
        // Predicated region
        $region21: #{mobilevit_block.1} parent=11 // pred_check
          %p415 = pneg %p85
        $region22: #{mobilevit_block.1} parent=11 // pred_check_branch
          %417 = sbr.rel (%p415) target = $region24
        $region23: #{mobilevit_block.1} parent=11 // pred_region
          _
        $region24: #{mobilevit_block.1} parent=11 // pred_fallthru
          _
        // Predicated region
        $region25: #{mobilevit_block.1} parent=11 // pred_check
          %p418 = pneg %p106
        $region26: #{mobilevit_block.1} parent=11 // pred_check_branch
          %420 = sbr.rel (%p418) target = $region28
        $region27: #{mobilevit_block.1} parent=11 // pred_region
          _
        $region28: #{mobilevit_block.1} parent=11 // pred_fallthru
          _
        // Predicated region
        $region29: #{mobilevit_block.1} parent=11 // pred_check
          %p421 = pneg %p127
        $region30: #{mobilevit_block.1} parent=11 // pred_check_branch
          %423 = sbr.rel (%p421) target = $region32
        $region31: #{mobilevit_block.1} parent=11 // pred_region
          _
        $region32: #{mobilevit_block.1} parent=11 // pred_fallthru
          _
        // Predicated region
        $region33: #{mobilevit_block.1} parent=11 // pred_check
          %p424 = pneg %p148
        $region34: #{mobilevit_block.1} parent=11 // pred_check_branch
          %426 = sbr.rel (%p424) target = $region36
        $region35: #{mobilevit_block.1} parent=11 // pred_region
          _
        $region36: #{mobilevit_block.1} parent=11 // pred_fallthru
          _
        // Predicated region
        $region37: #{mobilevit_block.1} parent=11 // pred_check
          %p427 = pneg %p169
        $region38: #{mobilevit_block.1} parent=11 // pred_check_branch
          %429 = sbr.rel (%p427) target = $region40
        $region39: #{mobilevit_block.1} parent=11 // pred_region
          _
        $region40: #{mobilevit_block.1} parent=11 // pred_fallthru
          _
        // Predicated region
        $region41: #{mobilevit_block.1} parent=11 // pred_check
          %p430 = pneg %p190
        $region42: #{mobilevit_block.1} parent=11 // pred_check_branch
          %432 = sbr.rel (%p430) target = $region44
        $region43: #{mobilevit_block.1} parent=11 // pred_region
          _
        $region44: #{mobilevit_block.1} parent=11 // pred_fallthru
          _
        // Predicated region
        $region45: #{mobilevit_block.1} parent=11 // pred_check
          %p433 = pneg %p289
        $region46: #{mobilevit_block.1} parent=11 // pred_check_branch
          %435 = sbr.rel (%p433) target = $region48
        $region47: #{mobilevit_block.1} parent=11 // pred_region
          _
        $region48: #{mobilevit_block.1} parent=11 // pred_fallthru
          _
        // Predicated region
        $region49: #{mobilevit_block.1} parent=11 // pred_check
          %p436 = pneg %p310
        $region50: #{mobilevit_block.1} parent=11 // pred_check_branch
          %438 = sbr.rel (%p436) target = $region52
        $region51: #{mobilevit_block.1} parent=11 // pred_region
          _
        $region52: #{mobilevit_block.1} parent=11 // pred_fallthru
          _
        // Predicated region
        $region53: #{mobilevit_block.1} parent=11 // pred_check
          %p439 = pneg %p331
        $region54: #{mobilevit_block.1} parent=11 // pred_check_branch
          %441 = sbr.rel (%p439) target = $region56
        $region55: #{mobilevit_block.1} parent=11 // pred_region
          _
        $region56: #{mobilevit_block.1} parent=11 // pred_fallthru
          _
        // Predicated region
        $region57: #{mobilevit_block.1} parent=11 // pred_check
          %p442 = pneg %p352
        $region58: #{mobilevit_block.1} parent=11 // pred_check_branch
          %444 = sbr.rel (%p442) target = $region60
        $region59: #{mobilevit_block.1} parent=11 // pred_region
          _
        $region60: #{mobilevit_block.1} parent=11 // pred_fallthru
          _
        // Predicated region
        $region61: #{mobilevit_block.1} parent=11 // pred_check
          %p445 = pneg %p373
        $region62: #{mobilevit_block.1} parent=11 // pred_check_branch
          %447 = sbr.rel (%p445) target = $region64
        $region63: #{mobilevit_block.1} parent=11 // pred_region
          _
        $region64: #{mobilevit_block.1} parent=11 // pred_fallthru
          _
      $region12: #{mobilevit_block.1} parent=5 // pred_fallthru
        _
      %p448 = scmp.lt.s32.totalorder %s22, 4
      // Predicated region
      $region65: #{mobilevit_block.1} parent=5 // pred_check
        %p449 = pneg %p448
      $region66: #{mobilevit_block.1} parent=5 // pred_check_branch
        %451 = sbr.rel (%p449) target = $region68
      $region67: #{mobilevit_block.1} parent=5 // pred_region
        // Predicated region
        $region69: #{mobilevit_block.1} parent=67 // pred_check
          %p452 = pneg %p210
        $region70: #{mobilevit_block.1} parent=67 // pred_check_branch
          %454 = sbr.rel (%p452) target = $region72
        $region71: #{mobilevit_block.1} parent=67 // pred_region
          %s455 = sand.u32 %s200, 1
          %s456 = sand.u32 %s200, 1
          %s457 = smul.addr %s456, 256
          %s458 = scalar_lea.vmem [#allocation4], %s457
          %s459 = smul.u32 4, %s22
          %s460 = smul.addr %s459, 4
          %s461 = scalar_lea.vmem %s8, %s460
          // Predicated region
          $region73: #{mobilevit_block.1} parent=71 // pred_check
            _
          $region74: #{mobilevit_block.1} parent=71 // pred_check_branch
            %463 = sbr.rel (0) target = $region76
          $region75: #{mobilevit_block.1} parent=71 // pred_region
            // Predicated region
            $region77: #{mobilevit_block.1} parent=75 // pred_check
              _
            $region78: #{mobilevit_block.1} parent=75 // pred_check_branch
              %465 = sbr.rel (0) target = $region80
            $region79: #{mobilevit_block.1} parent=75 // pred_region
              loop: start=0, step=1, limit=1
              $region81: #{mobilevit_block.1} parent=79 // loop_pre_header
                _
              $region82: #{mobilevit_block.1} parent=79 // loop_header
                %s467 = sphi 0, %s471
                %p468 = scmp.ge.s32.totalorder %s467, 1
                %s472 = sphi %s461, %s461
                %s473 = sphi %s458, %s458
              $region83: #{mobilevit_block.1} parent=79 // loop_header_branch
                %470 = sbr.rel (%p468) target = $region87
              $region84: #{mobilevit_block.1} parent=79 // loop_body
                %v474 = vld [vmem:[%s472] sm:$0xff]
                %475 = vst [vmem:[%s473] sm:$0xff] %v474
                %v476 = vld [vmem:[%s472 + $0x8] sm:$0xff]
                %477 = vst [vmem:[%s473 + $0x8] sm:$0xff] %v476
                %v478 = vld [vmem:[%s472 + $0x40] sm:$0xff]
                %479 = vst [vmem:[%s473 + $0x10] sm:$0xff] %v478
                %v480 = vld [vmem:[%s472 + $0x48] sm:$0xff]
                %481 = vst [vmem:[%s473 + $0x18] sm:$0xff] %v480
                %v482 = vld [vmem:[%s472 + $0x80] sm:$0xff]
                %483 = vst [vmem:[%s473 + $0x20] sm:$0xff] %v482
                %v484 = vld [vmem:[%s472 + $0x88] sm:$0xff]
                %485 = vst [vmem:[%s473 + $0x28] sm:$0xff] %v484
                %v486 = vld [vmem:[%s472 + $0xc0] sm:$0xff]
                %487 = vst [vmem:[%s473 + $0x30] sm:$0xff] %v486
                %v488 = vld [vmem:[%s472 + $0xc8] sm:$0xff]
                %489 = vst [vmem:[%s473 + $0x38] sm:$0xff] %v488
                %v490 = vld [vmem:[%s472 + $0x100] sm:$0xff]
                %491 = vst [vmem:[%s473 + $0x40] sm:$0xff] %v490
                %v492 = vld [vmem:[%s472 + $0x108] sm:$0xff]
                %493 = vst [vmem:[%s473 + $0x48] sm:$0xff] %v492
                %v494 = vld [vmem:[%s472 + $0x140] sm:$0xff]
                %495 = vst [vmem:[%s473 + $0x50] sm:$0xff] %v494
                %v496 = vld [vmem:[%s472 + $0x148] sm:$0xff]
                %497 = vst [vmem:[%s473 + $0x58] sm:$0xff] %v496
                %v498 = vld [vmem:[%s472 + $0x180] sm:$0xff]
                %499 = vst [vmem:[%s473 + $0x60] sm:$0xff] %v498
                %v500 = vld [vmem:[%s472 + $0x188] sm:$0xff]
                %501 = vst [vmem:[%s473 + $0x68] sm:$0xff] %v500
                %v502 = vld [vmem:[%s472 + $0x1c0] sm:$0xff]
                %503 = vst [vmem:[%s473 + $0x70] sm:$0xff] %v502
                %v504 = vld [vmem:[%s472 + $0x1c8] sm:$0xff]
                %505 = vst [vmem:[%s473 + $0x78] sm:$0xff] %v504
                %v506 = vld [vmem:[%s472 + $0x200] sm:$0xff]
                %507 = vst [vmem:[%s473 + $0x80] sm:$0xff] %v506
                %v508 = vld [vmem:[%s472 + $0x208] sm:$0xff]
                %509 = vst [vmem:[%s473 + $0x88] sm:$0xff] %v508
                %v510 = vld [vmem:[%s472 + $0x240] sm:$0xff]
                %511 = vst [vmem:[%s473 + $0x90] sm:$0xff] %v510
                %v512 = vld [vmem:[%s472 + $0x248] sm:$0xff]
                %513 = vst [vmem:[%s473 + $0x98] sm:$0xff] %v512
                %v514 = vld [vmem:[%s472 + $0x280] sm:$0xff]
                %515 = vst [vmem:[%s473 + $0xa0] sm:$0xff] %v514
                %v516 = vld [vmem:[%s472 + $0x288] sm:$0xff]
                %517 = vst [vmem:[%s473 + $0xa8] sm:$0xff] %v516
                %v518 = vld [vmem:[%s472 + $0x2c0] sm:$0xff]
                %519 = vst [vmem:[%s473 + $0xb0] sm:$0xff] %v518
                %v520 = vld [vmem:[%s472 + $0x2c8] sm:$0xff]
                %521 = vst [vmem:[%s473 + $0xb8] sm:$0xff] %v520
                %v522 = vld [vmem:[%s472 + $0x300] sm:$0xff]
                %523 = vst [vmem:[%s473 + $0xc0] sm:$0xff] %v522
                %v524 = vld [vmem:[%s472 + $0x308] sm:$0xff]
                %525 = vst [vmem:[%s473 + $0xc8] sm:$0xff] %v524
                %v526 = vld [vmem:[%s472 + $0x340] sm:$0xff]
                %527 = vst [vmem:[%s473 + $0xd0] sm:$0xff] %v526
                %v528 = vld [vmem:[%s472 + $0x348] sm:$0xff]
                %529 = vst [vmem:[%s473 + $0xd8] sm:$0xff] %v528
                %v530 = vld [vmem:[%s472 + $0x380] sm:$0xff]
                %531 = vst [vmem:[%s473 + $0xe0] sm:$0xff] %v530
                %v532 = vld [vmem:[%s472 + $0x388] sm:$0xff]
                %533 = vst [vmem:[%s473 + $0xe8] sm:$0xff] %v532
                %v534 = vld [vmem:[%s472 + $0x3c0] sm:$0xff]
                %535 = vst [vmem:[%s473 + $0xf0] sm:$0xff] %v534
                %v536 = vld [vmem:[%s472 + $0x3c8] sm:$0xff]
                %537 = vst [vmem:[%s473 + $0xf8] sm:$0xff] %v536
              $region85: #{mobilevit_block.1} parent=79 // loop_footer
                %s471 = sadd.s32 1, %s467
              $region86: #{mobilevit_block.1} parent=79 // loop_footer_branch
                %466 = sbr.rel target = $region82
              $region87: #{mobilevit_block.1} parent=79 // loop_exit
                _
            $region80: #{mobilevit_block.1} parent=75 // pred_fallthru
              _
            // Predicated region
            $region88: #{mobilevit_block.1} parent=75 // pred_check
              _
            $region89: #{mobilevit_block.1} parent=75 // pred_check_branch
              %539 = sbr.rel target = $region91
            $region90: #{mobilevit_block.1} parent=75 // pred_region
              _
            $region91: #{mobilevit_block.1} parent=75 // pred_fallthru
              _
          $region76: #{mobilevit_block.1} parent=71 // pred_fallthru
            _
          %540 = vnop
        $region72: #{mobilevit_block.1} parent=67 // pred_fallthru
          _
        // Predicated region
        $region92: #{mobilevit_block.1} parent=67 // pred_check
          %p541 = pneg %p236
        $region93: #{mobilevit_block.1} parent=67 // pred_check_branch
          %543 = sbr.rel (%p541) target = $region95
        $region94: #{mobilevit_block.1} parent=67 // pred_region
          %s544 = smul.u32 4, %s22
          %p545 = scmp.lt.s32.totalorder %s544, 15
          %s546 = scalar_select %p545, %s544, 15
          %s547 = scalar_lea.vmem %s9, %s546
          %s548 = smul.u32 4, %s22
        $region95: #{mobilevit_block.1} parent=67 // pred_fallthru
          _
        // Predicated region
        $region96: #{mobilevit_block.1} parent=67 // pred_check
          %p549 = pneg %p262
        $region97: #{mobilevit_block.1} parent=67 // pred_check_branch
          %551 = sbr.rel (%p549) target = $region99
        $region98: #{mobilevit_block.1} parent=67 // pred_region
          %s552 = smul.u32 64, %s22
          %p553 = scmp.lt.s32.totalorder %s552, 255
          %s554 = scalar_select %p553, %s552, 255
          %s555 = smul.addr %s554, 4
          %s556 = scalar_lea.vmem %s10, %s555
          %s557 = smul.u32 64, %s22
        $region99: #{mobilevit_block.1} parent=67 // pred_fallthru
          _
      $region68: #{mobilevit_block.1} parent=5 // pred_fallthru
        _
      %p558 = scmp.le.s32.totalorder 1, %s22
      %p559 = scmp.lt.s32.totalorder %s22, 5
      %p560 = pnand %p558, %p559
      %p561 = pneg %p560
      // Predicated region
      $region100: #{mobilevit_block.1} parent=5 // pred_check
        _
      $region101: #{mobilevit_block.1} parent=5 // pred_check_branch
        %563 = sbr.rel (%p560) target = $region103
      $region102: #{mobilevit_block.1} parent=5 // pred_region
        %s564 = ssub.s32 %s22, 1
        %s565 = sand.u32 %s203, 1
        %s566 = sand.u32 %s203, 1
        %s567 = smul.addr %s566, 256
        %s568 = scalar_lea.vmem [#allocation4], %s567
        // Predicated region
        $region104: #{mobilevit_block.1} parent=102 // pred_check
          %p569 = pneg %p216
        $region105: #{mobilevit_block.1} parent=102 // pred_check_branch
          %571 = sbr.rel (%p569) target = $region107
        $region106: #{mobilevit_block.1} parent=102 // pred_region
          _
        $region107: #{mobilevit_block.1} parent=102 // pred_fallthru
          _
        %p572 = pneg %p43
        %p573 = pneg %p40
        %p574 = pneg %p64
        %p575 = pneg %p61
        %p576 = pneg %p85
        %p577 = pneg %p82
        %p578 = pneg %p106
        %p579 = pneg %p103
        %p580 = pneg %p127
        %p581 = pneg %p124
        %p582 = pneg %p148
        %p583 = pneg %p145
        %p584 = pneg %p169
        %p585 = pneg %p166
        %p586 = pneg %p190
        %p587 = pneg %p187
        %s588 = sand.u32 %s203, 1
        %s589 = sand.u32 %s203, 1
        %s590 = smul.addr %s589, 256
        %s591 = scalar_lea.vmem [#allocation4], %s590
        %p592 = pneg %p216
        %p593 = pneg %p213
        %s594 = smul.u32 4, %s27
        %p595 = scmp.lt.s32.totalorder %s594, 15
        %s596 = scalar_select %p595, %s594, 15
        %s597 = scalar_lea.vmem %s9, %s596
        %p598 = pneg %p242
        %p599 = pneg %p239
        %s600 = smul.u32 64, %s27
        %p601 = scmp.lt.s32.totalorder %s600, 255
        %s602 = scalar_select %p601, %s600, 255
        %s603 = smul.addr %s602, 4
        %s604 = scalar_lea.vmem %s10, %s603
        %p605 = pneg %p268
        %p606 = pneg %p265
        %p607 = pneg %p289
        %p608 = pneg %p286
        %p609 = pneg %p310
        %p610 = pneg %p307
        %p611 = pneg %p331
        %p612 = pneg %p328
        %p613 = pneg %p352
        %p614 = pneg %p349
        %p615 = pneg %p373
        %p616 = pneg %p370
        %p617 = pneg %p394
        %p618 = pneg %p391
        %s619 = smul.u32 4, %s27
        %s620 = smul.u32 4, %s27
        %p621 = scmp.lt.s32.totalorder %s620, 15
        %s622 = scalar_select %p621, %s620, 15
        %s623 = scalar_lea.vmem %s9, %s622
        %s624 = smul.u32 4, %s27
        %s625 = smul.u32 64, %s27
        %p626 = scmp.lt.s32.totalorder %s625, 255
        %s627 = scalar_select %p626, %s625, 255
        %s628 = smul.addr %s627, 4
        %s629 = scalar_lea.vmem %s10, %s628
        %s630 = smul.u32 64, %s27
        %p632 = scmp.eq.s32.totalorder %s27, 0
        // Predicated region
        $region108: #{mobilevit_block.1} parent=102 // pred_check
          %p633 = pneg %p632
        $region109: #{mobilevit_block.1} parent=102 // pred_check_branch
          %635 = sbr.rel (%p633) target = $region111
        $region110: #{mobilevit_block.1} parent=102 // pred_region
          %v636 = vld [vmem:[%s0] sm:$0xf]
          %v637 = vld [vmem:[%s0 + $0x4] sm:$0xf]
          %v638 = vld [vmem:[%s0 + $0x8] sm:$0xf]
          %v639 = vld [vmem:[%s0 + $0xc] sm:$0xf]
          %v640 = vld [vmem:[%s0 + $0x10] sm:$0xf]
          %v641 = vld [vmem:[%s0 + $0x14] sm:$0xf]
          %v642 = vld [vmem:[%s0 + $0x18] sm:$0xf]
          %v643 = vld [vmem:[%s0 + $0x1c] sm:$0xf]
          %v644 = vld [vmem:[%s0 + $0x20] sm:$0xf]
          %v645 = vld [vmem:[%s0 + $0x24] sm:$0xf]
          %v646 = vld [vmem:[%s0 + $0x28] sm:$0xf]
          %v647 = vld [vmem:[%s0 + $0x2c] sm:$0xf]
          %v648 = vld [vmem:[%s0 + $0x30] sm:$0xf]
          %v649 = vld [vmem:[%s0 + $0x34] sm:$0xf]
          %v650 = vld [vmem:[%s0 + $0x38] sm:$0xf]
          %v651 = vld [vmem:[%s0 + $0x3c] sm:$0xf]
          %v652 = vld [vmem:[%s1] sm:$0xf]
          %v653 = vld [vmem:[%s1 + $0x4] sm:$0xf]
          %v654 = vld [vmem:[%s1 + $0x8] sm:$0xf]
          %v655 = vld [vmem:[%s1 + $0xc] sm:$0xf]
          %v656 = vld [vmem:[%s1 + $0x10] sm:$0xf]
          %v657 = vld [vmem:[%s1 + $0x14] sm:$0xf]
          %v658 = vld [vmem:[%s1 + $0x18] sm:$0xf]
          %v659 = vld [vmem:[%s1 + $0x1c] sm:$0xf]
          %v660 = vld [vmem:[%s1 + $0x20] sm:$0xf]
          %v661 = vld [vmem:[%s1 + $0x24] sm:$0xf]
          %v662 = vld [vmem:[%s1 + $0x28] sm:$0xf]
          %v663 = vld [vmem:[%s1 + $0x2c] sm:$0xf]
          %v664 = vld [vmem:[%s1 + $0x30] sm:$0xf]
          %v665 = vld [vmem:[%s1 + $0x34] sm:$0xf]
          %v666 = vld [vmem:[%s1 + $0x38] sm:$0xf]
          %v667 = vld [vmem:[%s1 + $0x3c] sm:$0xf]
          %v684 = vunpack.c.l.b16 %v636
          %v685 = vunpack.c.l.b16 %v637
          %v686 = vunpack.c.l.b16 %v638
          %v687 = vunpack.c.l.b16 %v639
          %v688 = vunpack.c.l.b16 %v640
          %v689 = vunpack.c.l.b16 %v641
          %v690 = vunpack.c.l.b16 %v642
          %v691 = vunpack.c.l.b16 %v643
          %v692 = vunpack.c.l.b16 %v644
          %v693 = vunpack.c.l.b16 %v645
          %v694 = vunpack.c.l.b16 %v646
          %v695 = vunpack.c.l.b16 %v647
          %v696 = vunpack.c.l.b16 %v648
          %v697 = vunpack.c.l.b16 %v649
          %v698 = vunpack.c.l.b16 %v650
          %v699 = vunpack.c.l.b16 %v651
          %v700 = vpack.c.b16 %v685, %v684
          %v701 = vpack.c.b16 %v687, %v686
          %v702 = vpack.c.b16 %v689, %v688
          %v703 = vpack.c.b16 %v691, %v690
          %v704 = vpack.c.b16 %v693, %v692
          %v705 = vpack.c.b16 %v695, %v694
          %v706 = vpack.c.b16 %v697, %v696
          %v707 = vpack.c.b16 %v699, %v698
          %v732 = vunpack.c.l.b16 %v652
          %v733 = vunpack.c.l.b16 %v653
          %v734 = vunpack.c.l.b16 %v654
          %v735 = vunpack.c.l.b16 %v655
          %v736 = vunpack.c.l.b16 %v656
          %v737 = vunpack.c.l.b16 %v657
          %v738 = vunpack.c.l.b16 %v658
          %v739 = vunpack.c.l.b16 %v659
          %v740 = vunpack.c.l.b16 %v660
          %v741 = vunpack.c.l.b16 %v661
          %v742 = vunpack.c.l.b16 %v662
          %v743 = vunpack.c.l.b16 %v663
          %v744 = vunpack.c.l.b16 %v664
          %v745 = vunpack.c.l.b16 %v665
          %v746 = vunpack.c.l.b16 %v666
          %v747 = vunpack.c.l.b16 %v667
          %v748 = vpack.c.b16 %v733, %v732
          %v749 = vpack.c.b16 %v735, %v734
          %v750 = vpack.c.b16 %v737, %v736
          %v751 = vpack.c.b16 %v739, %v738
          %v752 = vpack.c.b16 %v741, %v740
          %v753 = vpack.c.b16 %v743, %v742
          %v754 = vpack.c.b16 %v745, %v744
          %v755 = vpack.c.b16 %v747, %v746
          %764 = vmatprep.subr.bf16.mxu0 0
          %765 = vmatpush1.bf16.msra.mxu0 %v755
          %766 = vmatprep.subr.bf16.mxu0 0
          %767 = vmatpush1.bf16.msra.mxu0 %v754
          %768 = vmatprep.subr.bf16.mxu0 0
          %769 = vmatpush1.bf16.msra.mxu0 %v753
          %770 = vmatprep.subr.bf16.mxu0 0
          %771 = vmatpush1.bf16.msra.mxu0 %v752
          %772 = vmatprep.subr.bf16.mxu0 0
          %773 = vmatpush1.bf16.msra.mxu0 %v751
          %774 = vmatprep.subr.bf16.mxu0 0
          %775 = vmatpush1.bf16.msra.mxu0 %v750
          %776 = vmatprep.subr.bf16.mxu0 0
          %777 = vmatpush1.bf16.msra.mxu0 %v749
          %778 = vmatprep.subr.bf16.mxu0 0
          %779 = vmatpush1.bf16.msra.mxu0 %v748
          %780 = vmatprep.subr.bf16.mxu0 0
          %781 = vmatpush2.bf16.msra.mxu0 0
          %782 = vmatprep.subr.bf16.mxu0 0
          %783 = vmatpush2.bf16.msra.mxu0 0
          %784 = vmatprep.subr.bf16.mxu0 0
          %785 = vmatpush2.bf16.msra.mxu0 0
          %786 = vmatprep.subr.bf16.mxu0 0
          %787 = vmatpush2.bf16.msra.mxu0 0
          %788 = vmatprep.subr.bf16.mxu0 0
          %789 = vmatpush2.bf16.msra.mxu0 0
          %790 = vmatprep.subr.bf16.mxu0 0
          %791 = vmatpush2.bf16.msra.mxu0 0
          %792 = vmatprep.subr.bf16.mxu0 0
          %793 = vmatpush2.bf16.msra.mxu0 0
          %794 = vmatprep.subr.bf16.mxu0 0
          %795 = vmatpush2.bf16.msra.mxu0 0
          %796 = vmatprep.mubr.bf16.mxu0 0
          %797 = vmatmul.mubr.bf16.gmra.mxu0 %v700
          %v798 = vpop.f32.mrf.mxu0
          %v799 = vadd.f32 0.0, %v798
          %v800 = vpop.f32.mrf.mxu0
          %v801 = vpop.f32.mrf.mxu0
          %v802 = vadd.f32 0.0, %v801
          %v803 = vpop.f32.mrf.mxu0
          %804 = vmatprep.mubr.bf16.mxu0 0
          %805 = vmatmul.mubr.bf16.gmra.mxu0 %v701
          %v806 = vpop.f32.mrf.mxu0
          %v807 = vadd.f32 0.0, %v806
          %v808 = vpop.f32.mrf.mxu0
          %v809 = vpop.f32.mrf.mxu0
          %v810 = vadd.f32 0.0, %v809
          %v811 = vpop.f32.mrf.mxu0
          %812 = vmatprep.mubr.bf16.mxu0 0
          %813 = vmatmul.mubr.bf16.gmra.mxu0 %v702
          %v814 = vpop.f32.mrf.mxu0
          %v815 = vadd.f32 0.0, %v814
          %v816 = vpop.f32.mrf.mxu0
          %v817 = vpop.f32.mrf.mxu0
          %v818 = vadd.f32 0.0, %v817
          %v819 = vpop.f32.mrf.mxu0
          %820 = vmatprep.mubr.bf16.mxu0 0
          %821 = vmatmul.mubr.bf16.gmra.mxu0 %v703
          %v822 = vpop.f32.mrf.mxu0
          %v823 = vadd.f32 0.0, %v822
          %v824 = vpop.f32.mrf.mxu0
          %v825 = vpop.f32.mrf.mxu0
          %v826 = vadd.f32 0.0, %v825
          %v827 = vpop.f32.mrf.mxu0
          %828 = vmatprep.mubr.bf16.mxu0 0
          %829 = vmatmul.mubr.bf16.gmra.mxu0 %v704
          %v830 = vpop.f32.mrf.mxu0
          %v831 = vadd.f32 0.0, %v830
          %v832 = vpop.f32.mrf.mxu0
          %v833 = vpop.f32.mrf.mxu0
          %v834 = vadd.f32 0.0, %v833
          %v835 = vpop.f32.mrf.mxu0
          %836 = vmatprep.mubr.bf16.mxu0 0
          %837 = vmatmul.mubr.bf16.gmra.mxu0 %v705
          %v838 = vpop.f32.mrf.mxu0
          %v839 = vadd.f32 0.0, %v838
          %v840 = vpop.f32.mrf.mxu0
          %v841 = vpop.f32.mrf.mxu0
          %v842 = vadd.f32 0.0, %v841
          %v843 = vpop.f32.mrf.mxu0
          %844 = vmatprep.mubr.bf16.mxu0 0
          %845 = vmatmul.mubr.bf16.gmra.mxu0 %v706
          %v846 = vpop.f32.mrf.mxu0
          %v847 = vadd.f32 0.0, %v846
          %v848 = vpop.f32.mrf.mxu0
          %v849 = vpop.f32.mrf.mxu0
          %v850 = vadd.f32 0.0, %v849
          %v851 = vpop.f32.mrf.mxu0
          %852 = vmatprep.mubr.bf16.mxu0 0
          %853 = vmatmul.mubr.bf16.gmra.mxu0 %v707
          %v854 = vpop.f32.mrf.mxu0
          %v855 = vadd.f32 0.0, %v854
          %v856 = vpop.f32.mrf.mxu0
          %v857 = vpop.f32.mrf.mxu0
          %v858 = vadd.f32 0.0, %v857
          %v859 = vpop.f32.mrf.mxu0
          %860 = vdwg.mxu0
          %v861 = vpack.c.bf16 %v802, %v799
          %v862 = vpack.c.bf16 %v810, %v807
          %v863 = vpack.c.bf16 %v818, %v815
          %v864 = vpack.c.bf16 %v826, %v823
          %v865 = vpack.c.bf16 %v834, %v831
          %v866 = vpack.c.bf16 %v842, %v839
          %v867 = vpack.c.bf16 %v850, %v847
          %v868 = vpack.c.bf16 %v858, %v855
          %v869 = vld [vmem:[%s2] sm:$0xff]
          %v870 = vld [vmem:[%s2 + $0x8] sm:$0xf]
          %v871 = vld [vmem:[%s2 + $0xc] sm:$0xff]
          %v872 = vld [vmem:[%s2 + $0x14] sm:$0xf]
          %v873 = vld [vmem:[%s2 + $0x18] sm:$0xff]
          %v874 = vld [vmem:[%s2 + $0x20] sm:$0xf]
          %v875 = vld [vmem:[%s2 + $0x24] sm:$0xff]
          %v876 = vld [vmem:[%s2 + $0x2c] sm:$0xf]
          %v877 = vld [vmem:[%s2 + $0x30] sm:$0xff]
          %v878 = vld [vmem:[%s2 + $0x38] sm:$0xf]
          %v879 = vld [vmem:[%s2 + $0x3c] sm:$0xff]
          %v880 = vld [vmem:[%s2 + $0x44] sm:$0xf]
          %v881 = vld [vmem:[%s2 + $0x48] sm:$0xff]
          %v882 = vld [vmem:[%s2 + $0x50] sm:$0xf]
          %v883 = vld [vmem:[%s2 + $0x54] sm:$0xff]
          %v884 = vld [vmem:[%s2 + $0x5c] sm:$0xf]
          %v885 = vld [vmem:[%s2 + $0x60] sm:$0xff]
          %v886 = vld [vmem:[%s2 + $0x68] sm:$0xf]
          %v887 = vld [vmem:[%s2 + $0x6c] sm:$0xff]
          %v888 = vld [vmem:[%s2 + $0x74] sm:$0xf]
          %v889 = vld [vmem:[%s2 + $0x78] sm:$0xff]
          %v890 = vld [vmem:[%s2 + $0x80] sm:$0xf]
          %v891 = vld [vmem:[%s2 + $0x84] sm:$0xff]
          %v892 = vld [vmem:[%s2 + $0x8c] sm:$0xf]
          %v893 = vld [vmem:[%s2 + $0x90] sm:$0xff]
          %v894 = vld [vmem:[%s2 + $0x98] sm:$0xf]
          %v895 = vld [vmem:[%s2 + $0x9c] sm:$0xff]
          %v896 = vld [vmem:[%s2 + $0xa4] sm:$0xf]
          %v897 = vld [vmem:[%s2 + $0xa8] sm:$0xff]
          %v898 = vld [vmem:[%s2 + $0xb0] sm:$0xf]
          %v899 = vld [vmem:[%s2 + $0xb4] sm:$0xff]
          %v900 = vld [vmem:[%s2 + $0xbc] sm:$0xf]
          %v901 = vld [vmem:[%s3] sm:$0x7]
          %v903 = vlaneseq
          %v904 = vshrl.u32 %v903, 7
          %v905 = vsub.s32 0, %v904
          %v906 = vrot.slane %v901, %v905
          %v907 = vlaneseq
          %v908 = vshrl.u32 %v907, 7
          %v909 = vsub.s32 1, %v908
          %v910 = vrot.slane %v901, %v909
          %v911 = vlaneseq
          %v912 = vshrl.u32 %v911, 7
          %v913 = vsub.s32 2, %v912
          %v914 = vrot.slane %v901, %v913
          %v950 = vunpack.c.l.b16 %v869
          %v951 = vunpack.c.h.b16 %v869
          %v952 = vunpack.c.l.b16 %v870
          %v953 = vunpack.c.l.b16 %v871
          %v954 = vunpack.c.h.b16 %v871
          %v955 = vunpack.c.l.b16 %v872
          %v956 = vunpack.c.l.b16 %v873
          %v957 = vunpack.c.h.b16 %v873
          %v958 = vunpack.c.l.b16 %v874
          %v959 = vunpack.c.l.b16 %v875
          %v960 = vunpack.c.h.b16 %v875
          %v961 = vunpack.c.l.b16 %v876
          %v962 = vunpack.c.l.b16 %v877
          %v963 = vunpack.c.h.b16 %v877
          %v964 = vunpack.c.l.b16 %v878
          %v965 = vunpack.c.l.b16 %v879
          %v966 = vunpack.c.h.b16 %v879
          %v967 = vunpack.c.l.b16 %v880
          %v968 = vunpack.c.l.b16 %v881
          %v969 = vunpack.c.h.b16 %v881
          %v970 = vunpack.c.l.b16 %v882
          %v971 = vunpack.c.l.b16 %v883
          %v972 = vunpack.c.h.b16 %v883
          %v973 = vunpack.c.l.b16 %v884
          %v974 = vunpack.c.l.b16 %v885
          %v975 = vunpack.c.h.b16 %v885
          %v976 = vunpack.c.l.b16 %v886
          %v977 = vunpack.c.l.b16 %v887
          %v978 = vunpack.c.h.b16 %v887
          %v979 = vunpack.c.l.b16 %v888
          %v980 = vunpack.c.l.b16 %v889
          %v981 = vunpack.c.h.b16 %v889
          %v982 = vunpack.c.l.b16 %v890
          %v983 = vunpack.c.l.b16 %v891
          %v984 = vunpack.c.h.b16 %v891
          %v985 = vunpack.c.l.b16 %v892
          %v986 = vunpack.c.l.b16 %v893
          %v987 = vunpack.c.h.b16 %v893
          %v988 = vunpack.c.l.b16 %v894
          %v989 = vunpack.c.l.b16 %v895
          %v990 = vunpack.c.h.b16 %v895
          %v991 = vunpack.c.l.b16 %v896
          %v992 = vunpack.c.l.b16 %v897
          %v993 = vunpack.c.h.b16 %v897
          %v994 = vunpack.c.l.b16 %v898
          %v995 = vunpack.c.l.b16 %v899
          %v996 = vunpack.c.h.b16 %v899
          %v997 = vunpack.c.l.b16 %v900
          %v998 = vpack.c.b16 %v953, %v950
          %v999 = vpack.c.b16 %v954, %v951
          %v1000 = vpack.c.b16 %v955, %v952
          %v1001 = vpack.c.b16 %v959, %v956
          %v1002 = vpack.c.b16 %v960, %v957
          %v1003 = vpack.c.b16 %v961, %v958
          %v1004 = vpack.c.b16 %v965, %v962
          %v1005 = vpack.c.b16 %v966, %v963
          %v1006 = vpack.c.b16 %v967, %v964
          %v1007 = vpack.c.b16 %v971, %v968
          %v1008 = vpack.c.b16 %v972, %v969
          %v1009 = vpack.c.b16 %v973, %v970
          %v1010 = vpack.c.b16 %v977, %v974
          %v1011 = vpack.c.b16 %v978, %v975
          %v1012 = vpack.c.b16 %v979, %v976
          %v1013 = vpack.c.b16 %v983, %v980
          %v1014 = vpack.c.b16 %v984, %v981
          %v1015 = vpack.c.b16 %v985, %v982
          %v1016 = vpack.c.b16 %v989, %v986
          %v1017 = vpack.c.b16 %v990, %v987
          %v1018 = vpack.c.b16 %v991, %v988
          %v1019 = vpack.c.b16 %v995, %v992
          %v1020 = vpack.c.b16 %v996, %v993
          %v1021 = vpack.c.b16 %v997, %v994
          %1046 = vmatprep.subr.bf16.mxu0 %v1020
          %1047 = vmatpush1.bf16.msra.mxu0 %v1019
          %1048 = vmatprep.subr.bf16.mxu0 %v1017
          %1049 = vmatpush1.bf16.msra.mxu0 %v1016
          %1050 = vmatprep.subr.bf16.mxu0 %v1014
          %1051 = vmatpush1.bf16.msra.mxu0 %v1013
          %1052 = vmatprep.subr.bf16.mxu0 %v1011
          %1053 = vmatpush1.bf16.msra.mxu0 %v1010
          %1054 = vmatprep.subr.bf16.mxu0 %v1008
          %1055 = vmatpush1.bf16.msra.mxu0 %v1007
          %1056 = vmatprep.subr.bf16.mxu0 %v1005
          %1057 = vmatpush1.bf16.msra.mxu0 %v1004
          %1058 = vmatprep.subr.bf16.mxu0 %v1002
          %1059 = vmatpush1.bf16.msra.mxu0 %v1001
          %1060 = vmatprep.subr.bf16.mxu0 %v999
          %1061 = vmatpush1.bf16.msra.mxu0 %v998
          %1062 = vmatprep.subr.bf16.mxu0 0
          %1063 = vmatpush2.bf16.msra.mxu0 0
          %1064 = vmatprep.subr.bf16.mxu0 0
          %1065 = vmatpush2.bf16.msra.mxu0 0
          %1066 = vmatprep.subr.bf16.mxu0 0
          %1067 = vmatpush2.bf16.msra.mxu0 0
          %1068 = vmatprep.subr.bf16.mxu0 0
          %1069 = vmatpush2.bf16.msra.mxu0 0
          %1070 = vmatprep.subr.bf16.mxu0 0
          %1071 = vmatpush2.bf16.msra.mxu0 0
          %1072 = vmatprep.subr.bf16.mxu0 0
          %1073 = vmatpush2.bf16.msra.mxu0 0
          %1074 = vmatprep.subr.bf16.mxu0 0
          %1075 = vmatpush2.bf16.msra.mxu0 0
          %1076 = vmatprep.subr.bf16.mxu0 0
          %1077 = vmatpush2.bf16.msra.mxu0 0
          %1078 = vmatprep.mubr.bf16.mxu0 0
          %1079 = vmatmul.mubr.bf16.gmra.mxu0 %v861
          %v1080 = vpop.f32.mrf.mxu0
          %v1081 = vadd.f32 %v906, %v1080
          %v1082 = vpop.f32.mrf.mxu0
          %v1083 = vadd.f32 %v910, %v1082
          %v1084 = vpop.f32.mrf.mxu0
          %v1085 = vadd.f32 %v906, %v1084
          %v1086 = vpop.f32.mrf.mxu0
          %v1087 = vadd.f32 %v910, %v1086
          %1088 = vmatprep.mubr.bf16.mxu0 0
          %1089 = vmatmul.mubr.bf16.gmra.mxu0 %v862
          %v1090 = vpop.f32.mrf.mxu0
          %v1091 = vadd.f32 %v906, %v1090
          %v1092 = vpop.f32.mrf.mxu0
          %v1093 = vadd.f32 %v910, %v1092
          %v1094 = vpop.f32.mrf.mxu0
          %v1095 = vadd.f32 %v906, %v1094
          %v1096 = vpop.f32.mrf.mxu0
          %v1097 = vadd.f32 %v910, %v1096
          %1098 = vmatprep.mubr.bf16.mxu0 0
          %1099 = vmatmul.mubr.bf16.gmra.mxu0 %v863
          %v1100 = vpop.f32.mrf.mxu0
          %v1101 = vadd.f32 %v906, %v1100
          %v1102 = vpop.f32.mrf.mxu0
          %v1103 = vadd.f32 %v910, %v1102
          %v1104 = vpop.f32.mrf.mxu0
          %v1105 = vadd.f32 %v906, %v1104
          %v1106 = vpop.f32.mrf.mxu0
          %v1107 = vadd.f32 %v910, %v1106
          %1108 = vmatprep.mubr.bf16.mxu0 0
          %1109 = vmatmul.mubr.bf16.gmra.mxu0 %v864
          %v1110 = vpop.f32.mrf.mxu0
          %v1111 = vadd.f32 %v906, %v1110
          %v1112 = vpop.f32.mrf.mxu0
          %v1113 = vadd.f32 %v910, %v1112
          %v1114 = vpop.f32.mrf.mxu0
          %v1115 = vadd.f32 %v906, %v1114
          %v1116 = vpop.f32.mrf.mxu0
          %v1117 = vadd.f32 %v910, %v1116
          %1118 = vmatprep.mubr.bf16.mxu0 0
          %1119 = vmatmul.mubr.bf16.gmra.mxu0 %v865
          %v1120 = vpop.f32.mrf.mxu0
          %v1121 = vadd.f32 %v906, %v1120
          %v1122 = vpop.f32.mrf.mxu0
          %v1123 = vadd.f32 %v910, %v1122
          %v1124 = vpop.f32.mrf.mxu0
          %v1125 = vadd.f32 %v906, %v1124
          %v1126 = vpop.f32.mrf.mxu0
          %v1127 = vadd.f32 %v910, %v1126
          %1128 = vmatprep.mubr.bf16.mxu0 0
          %1129 = vmatmul.mubr.bf16.gmra.mxu0 %v866
          %v1130 = vpop.f32.mrf.mxu0
          %v1131 = vadd.f32 %v906, %v1130
          %v1132 = vpop.f32.mrf.mxu0
          %v1133 = vadd.f32 %v910, %v1132
          %v1134 = vpop.f32.mrf.mxu0
          %v1135 = vadd.f32 %v906, %v1134
          %v1136 = vpop.f32.mrf.mxu0
          %v1137 = vadd.f32 %v910, %v1136
          %1138 = vmatprep.mubr.bf16.mxu0 0
          %1139 = vmatmul.mubr.bf16.gmra.mxu0 %v867
          %v1140 = vpop.f32.mrf.mxu0
          %v1141 = vadd.f32 %v906, %v1140
          %v1142 = vpop.f32.mrf.mxu0
          %v1143 = vadd.f32 %v910, %v1142
          %v1144 = vpop.f32.mrf.mxu0
          %v1145 = vadd.f32 %v906, %v1144
          %v1146 = vpop.f32.mrf.mxu0
          %v1147 = vadd.f32 %v910, %v1146
          %1148 = vmatprep.mubr.bf16.mxu0 0
          %1149 = vmatmul.mubr.bf16.gmra.mxu0 %v868
          %v1150 = vpop.f32.mrf.mxu0
          %v1151 = vadd.f32 %v906, %v1150
          %v1152 = vpop.f32.mrf.mxu0
          %v1153 = vadd.f32 %v910, %v1152
          %v1154 = vpop.f32.mrf.mxu0
          %v1155 = vadd.f32 %v906, %v1154
          %v1156 = vpop.f32.mrf.mxu0
          %v1157 = vadd.f32 %v910, %v1156
          %1158 = vdwg.mxu0
          %1159 = vmatprep.subr.bf16.mxu0 0
          %1160 = vmatpush1.bf16.msra.mxu0 %v1021
          %1161 = vmatprep.subr.bf16.mxu0 0
          %1162 = vmatpush1.bf16.msra.mxu0 %v1018
          %1163 = vmatprep.subr.bf16.mxu0 0
          %1164 = vmatpush1.bf16.msra.mxu0 %v1015
          %1165 = vmatprep.subr.bf16.mxu0 0
          %1166 = vmatpush1.bf16.msra.mxu0 %v1012
          %1167 = vmatprep.subr.bf16.mxu0 0
          %1168 = vmatpush1.bf16.msra.mxu0 %v1009
          %1169 = vmatprep.subr.bf16.mxu0 0
          %1170 = vmatpush1.bf16.msra.mxu0 %v1006
          %1171 = vmatprep.subr.bf16.mxu0 0
          %1172 = vmatpush1.bf16.msra.mxu0 %v1003
          %1173 = vmatprep.subr.bf16.mxu0 0
          %1174 = vmatpush1.bf16.msra.mxu0 %v1000
          %1175 = vmatprep.subr.bf16.mxu0 0
          %1176 = vmatpush2.bf16.msra.mxu0 0
          %1177 = vmatprep.subr.bf16.mxu0 0
          %1178 = vmatpush2.bf16.msra.mxu0 0
          %1179 = vmatprep.subr.bf16.mxu0 0
          %1180 = vmatpush2.bf16.msra.mxu0 0
          %1181 = vmatprep.subr.bf16.mxu0 0
          %1182 = vmatpush2.bf16.msra.mxu0 0
          %1183 = vmatprep.subr.bf16.mxu0 0
          %1184 = vmatpush2.bf16.msra.mxu0 0
          %1185 = vmatprep.subr.bf16.mxu0 0
          %1186 = vmatpush2.bf16.msra.mxu0 0
          %1187 = vmatprep.subr.bf16.mxu0 0
          %1188 = vmatpush2.bf16.msra.mxu0 0
          %1189 = vmatprep.subr.bf16.mxu0 0
          %1190 = vmatpush2.bf16.msra.mxu0 0
          %1191 = vmatprep.mubr.bf16.mxu0 0
          %1192 = vmatmul.mubr.bf16.gmra.mxu0 %v861
          %v1193 = vpop.f32.mrf.mxu0
          %v1194 = vadd.f32 %v914, %v1193
          %v1195 = vpop.f32.mrf.mxu0
          %v1196 = vpop.f32.mrf.mxu0
          %v1197 = vadd.f32 %v914, %v1196
          %v1198 = vpop.f32.mrf.mxu0
          %1199 = vmatprep.mubr.bf16.mxu0 0
          %1200 = vmatmul.mubr.bf16.gmra.mxu0 %v862
          %v1201 = vpop.f32.mrf.mxu0
          %v1202 = vadd.f32 %v914, %v1201
          %v1203 = vpop.f32.mrf.mxu0
          %v1204 = vpop.f32.mrf.mxu0
          %v1205 = vadd.f32 %v914, %v1204
          %v1206 = vpop.f32.mrf.mxu0
          %1207 = vmatprep.mubr.bf16.mxu0 0
          %1208 = vmatmul.mubr.bf16.gmra.mxu0 %v863
          %v1209 = vpop.f32.mrf.mxu0
          %v1210 = vadd.f32 %v914, %v1209
          %v1211 = vpop.f32.mrf.mxu0
          %v1212 = vpop.f32.mrf.mxu0
          %v1213 = vadd.f32 %v914, %v1212
          %v1214 = vpop.f32.mrf.mxu0
          %1215 = vmatprep.mubr.bf16.mxu0 0
          %1216 = vmatmul.mubr.bf16.gmra.mxu0 %v864
          %v1217 = vpop.f32.mrf.mxu0
          %v1218 = vadd.f32 %v914, %v1217
          %v1219 = vpop.f32.mrf.mxu0
          %v1220 = vpop.f32.mrf.mxu0
          %v1221 = vadd.f32 %v914, %v1220
          %v1222 = vpop.f32.mrf.mxu0
          %1223 = vmatprep.mubr.bf16.mxu0 0
          %1224 = vmatmul.mubr.bf16.gmra.mxu0 %v865
          %v1225 = vpop.f32.mrf.mxu0
          %v1226 = vadd.f32 %v914, %v1225
          %v1227 = vpop.f32.mrf.mxu0
          %v1228 = vpop.f32.mrf.mxu0
          %v1229 = vadd.f32 %v914, %v1228
          %v1230 = vpop.f32.mrf.mxu0
          %1231 = vmatprep.mubr.bf16.mxu0 0
          %1232 = vmatmul.mubr.bf16.gmra.mxu0 %v866
          %v1233 = vpop.f32.mrf.mxu0
          %v1234 = vadd.f32 %v914, %v1233
          %v1235 = vpop.f32.mrf.mxu0
          %v1236 = vpop.f32.mrf.mxu0
          %v1237 = vadd.f32 %v914, %v1236
          %v1238 = vpop.f32.mrf.mxu0
          %1239 = vmatprep.mubr.bf16.mxu0 0
          %1240 = vmatmul.mubr.bf16.gmra.mxu0 %v867
          %v1241 = vpop.f32.mrf.mxu0
          %v1242 = vadd.f32 %v914, %v1241
          %v1243 = vpop.f32.mrf.mxu0
          %v1244 = vpop.f32.mrf.mxu0
          %v1245 = vadd.f32 %v914, %v1244
          %v1246 = vpop.f32.mrf.mxu0
          %1247 = vmatprep.mubr.bf16.mxu0 0
          %1248 = vmatmul.mubr.bf16.gmra.mxu0 %v868
          %v1249 = vpop.f32.mrf.mxu0
          %v1250 = vadd.f32 %v914, %v1249
          %v1251 = vpop.f32.mrf.mxu0
          %v1252 = vpop.f32.mrf.mxu0
          %v1253 = vadd.f32 %v914, %v1252
          %v1254 = vpop.f32.mrf.mxu0
          %1255 = vdwg.mxu0
          %1272 = vrot.lane.b32.xlu0 %v1081, 64
          %v1273 = vpop.permute.xlu0 %1272
          %1274 = vrot.lane.b32.xlu0 %v1085, 64
          %v1275 = vpop.permute.xlu0 %1274
          %1276 = vrot.lane.b32.xlu0 %v1091, 64
          %v1277 = vpop.permute.xlu0 %1276
          %1278 = vrot.lane.b32.xlu0 %v1095, 64
          %v1279 = vpop.permute.xlu0 %1278
          %1280 = vrot.lane.b32.xlu0 %v1101, 64
          %v1281 = vpop.permute.xlu0 %1280
          %1282 = vrot.lane.b32.xlu0 %v1105, 64
          %v1283 = vpop.permute.xlu0 %1282
          %1284 = vrot.lane.b32.xlu0 %v1111, 64
          %v1285 = vpop.permute.xlu0 %1284
          %1286 = vrot.lane.b32.xlu0 %v1115, 64
          %v1287 = vpop.permute.xlu0 %1286
          %1288 = vrot.lane.b32.xlu0 %v1121, 64
          %v1289 = vpop.permute.xlu0 %1288
          %1290 = vrot.lane.b32.xlu0 %v1125, 64
          %v1291 = vpop.permute.xlu0 %1290
          %1292 = vrot.lane.b32.xlu0 %v1131, 64
          %v1293 = vpop.permute.xlu0 %1292
          %1294 = vrot.lane.b32.xlu0 %v1135, 64
          %v1295 = vpop.permute.xlu0 %1294
          %1296 = vrot.lane.b32.xlu0 %v1141, 64
          %v1297 = vpop.permute.xlu0 %1296
          %1298 = vrot.lane.b32.xlu0 %v1145, 64
          %v1299 = vpop.permute.xlu0 %1298
          %1300 = vrot.lane.b32.xlu0 %v1151, 64
          %v1301 = vpop.permute.xlu0 %1300
          %1302 = vrot.lane.b32.xlu0 %v1155, 64
          %v1303 = vpop.permute.xlu0 %1302
          %v1320 = vpack.c.bf16 %v1085, %v1081
          %v1321 = vpack.c.bf16 %v1095, %v1091
          %v1322 = vpack.c.bf16 %v1105, %v1101
          %v1323 = vpack.c.bf16 %v1115, %v1111
          %v1324 = vpack.c.bf16 %v1125, %v1121
          %v1325 = vpack.c.bf16 %v1135, %v1131
          %v1326 = vpack.c.bf16 %v1145, %v1141
          %v1327 = vpack.c.bf16 %v1155, %v1151
          %v1328 = vpack.c.bf16 %v1275, %v1273
          %v1329 = vpack.c.bf16 %v1279, %v1277
          %v1330 = vpack.c.bf16 %v1283, %v1281
          %v1331 = vpack.c.bf16 %v1287, %v1285
          %v1332 = vpack.c.bf16 %v1291, %v1289
          %v1333 = vpack.c.bf16 %v1295, %v1293
          %v1334 = vpack.c.bf16 %v1299, %v1297
          %v1335 = vpack.c.bf16 %v1303, %v1301
          %1352 = vrot.lane.b32.xlu0 %v1083, 64
          %v1353 = vpop.permute.xlu0 %1352
          %1354 = vrot.lane.b32.xlu0 %v1087, 64
          %v1355 = vpop.permute.xlu0 %1354
          %1356 = vrot.lane.b32.xlu0 %v1093, 64
          %v1357 = vpop.permute.xlu0 %1356
          %1358 = vrot.lane.b32.xlu0 %v1097, 64
          %v1359 = vpop.permute.xlu0 %1358
          %1360 = vrot.lane.b32.xlu0 %v1103, 64
          %v1361 = vpop.permute.xlu0 %1360
          %1362 = vrot.lane.b32.xlu0 %v1107, 64
          %v1363 = vpop.permute.xlu0 %1362
          %1364 = vrot.lane.b32.xlu0 %v1113, 64
          %v1365 = vpop.permute.xlu0 %1364
          %1366 = vrot.lane.b32.xlu0 %v1117, 64
          %v1367 = vpop.permute.xlu0 %1366
          %1368 = vrot.lane.b32.xlu0 %v1123, 64
          %v1369 = vpop.permute.xlu0 %1368
          %1370 = vrot.lane.b32.xlu0 %v1127, 64
          %v1371 = vpop.permute.xlu0 %1370
          %1372 = vrot.lane.b32.xlu0 %v1133, 64
          %v1373 = vpop.permute.xlu0 %1372
          %1374 = vrot.lane.b32.xlu0 %v1137, 64
          %v1375 = vpop.permute.xlu0 %1374
          %1376 = vrot.lane.b32.xlu0 %v1143, 64
          %v1377 = vpop.permute.xlu0 %1376
          %1378 = vrot.lane.b32.xlu0 %v1147, 64
          %v1379 = vpop.permute.xlu0 %1378
          %1380 = vrot.lane.b32.xlu0 %v1153, 64
          %v1381 = vpop.permute.xlu0 %1380
          %1382 = vrot.lane.b32.xlu0 %v1157, 64
          %v1383 = vpop.permute.xlu0 %1382
          %v1400 = vpack.c.bf16 %v1087, %v1083
          %v1401 = vpack.c.bf16 %v1097, %v1093
          %v1402 = vpack.c.bf16 %v1107, %v1103
          %v1403 = vpack.c.bf16 %v1117, %v1113
          %v1404 = vpack.c.bf16 %v1127, %v1123
          %v1405 = vpack.c.bf16 %v1137, %v1133
          %v1406 = vpack.c.bf16 %v1147, %v1143
          %v1407 = vpack.c.bf16 %v1157, %v1153
          %v1408 = vpack.c.bf16 %v1355, %v1353
          %v1409 = vpack.c.bf16 %v1359, %v1357
          %v1410 = vpack.c.bf16 %v1363, %v1361
          %v1411 = vpack.c.bf16 %v1367, %v1365
          %v1412 = vpack.c.bf16 %v1371, %v1369
          %v1413 = vpack.c.bf16 %v1375, %v1373
          %v1414 = vpack.c.bf16 %v1379, %v1377
          %v1415 = vpack.c.bf16 %v1383, %v1381
          %1432 = vrot.lane.b32.xlu0 %v1194, 64
          %v1433 = vpop.permute.xlu0 %1432
          %1434 = vrot.lane.b32.xlu0 %v1197, 64
          %v1435 = vpop.permute.xlu0 %1434
          %1436 = vrot.lane.b32.xlu0 %v1202, 64
          %v1437 = vpop.permute.xlu0 %1436
          %1438 = vrot.lane.b32.xlu0 %v1205, 64
          %v1439 = vpop.permute.xlu0 %1438
          %1440 = vrot.lane.b32.xlu0 %v1210, 64
          %v1441 = vpop.permute.xlu0 %1440
          %1442 = vrot.lane.b32.xlu0 %v1213, 64
          %v1443 = vpop.permute.xlu0 %1442
          %1444 = vrot.lane.b32.xlu0 %v1218, 64
          %v1445 = vpop.permute.xlu0 %1444
          %1446 = vrot.lane.b32.xlu0 %v1221, 64
          %v1447 = vpop.permute.xlu0 %1446
          %1448 = vrot.lane.b32.xlu0 %v1226, 64
          %v1449 = vpop.permute.xlu0 %1448
          %1450 = vrot.lane.b32.xlu0 %v1229, 64
          %v1451 = vpop.permute.xlu0 %1450
          %1452 = vrot.lane.b32.xlu0 %v1234, 64
          %v1453 = vpop.permute.xlu0 %1452
          %1454 = vrot.lane.b32.xlu0 %v1237, 64
          %v1455 = vpop.permute.xlu0 %1454
          %1456 = vrot.lane.b32.xlu0 %v1242, 64
          %v1457 = vpop.permute.xlu0 %1456
          %1458 = vrot.lane.b32.xlu0 %v1245, 64
          %v1459 = vpop.permute.xlu0 %1458
          %1460 = vrot.lane.b32.xlu0 %v1250, 64
          %v1461 = vpop.permute.xlu0 %1460
          %1462 = vrot.lane.b32.xlu0 %v1253, 64
          %v1463 = vpop.permute.xlu0 %1462
          %v1480 = vpack.c.bf16 %v1197, %v1194
          %v1481 = vpack.c.bf16 %v1205, %v1202
          %v1482 = vpack.c.bf16 %v1213, %v1210
          %v1483 = vpack.c.bf16 %v1221, %v1218
          %v1484 = vpack.c.bf16 %v1229, %v1226
          %v1485 = vpack.c.bf16 %v1237, %v1234
          %v1486 = vpack.c.bf16 %v1245, %v1242
          %v1487 = vpack.c.bf16 %v1253, %v1250
          %v1488 = vpack.c.bf16 %v1435, %v1433
          %v1489 = vpack.c.bf16 %v1439, %v1437
          %v1490 = vpack.c.bf16 %v1443, %v1441
          %v1491 = vpack.c.bf16 %v1447, %v1445
          %v1492 = vpack.c.bf16 %v1451, %v1449
          %v1493 = vpack.c.bf16 %v1455, %v1453
          %v1494 = vpack.c.bf16 %v1459, %v1457
          %v1495 = vpack.c.bf16 %v1463, %v1461
          %vm1496 = vcmask 523264
          %v1498 = vsel %vm1496, %v1320, 0
          %v1501 = vsel %vm1496, %v1321, 0
          %v1504 = vsel %vm1496, %v1322, 0
          %v1507 = vsel %vm1496, %v1323, 0
          %v1510 = vsel %vm1496, %v1400, 0
          %v1513 = vsel %vm1496, %v1401, 0
          %v1516 = vsel %vm1496, %v1402, 0
          %v1519 = vsel %vm1496, %v1403, 0
          %1521 = vmatprep.subr.bf16.mxu0 0
          %1522 = vmatpush1.bf16.xpose.msra.mxu0 0
          %1523 = vmatprep.subr.bf16.mxu0 0
          %1524 = vmatpush1.bf16.xpose.msra.mxu0 0
          %1525 = vmatprep.subr.bf16.mxu0 0
          %1526 = vmatpush1.bf16.xpose.msra.mxu0 0
          %1527 = vmatprep.subr.bf16.mxu0 0
          %1528 = vmatpush1.bf16.xpose.msra.mxu0 0
          %1529 = vmatprep.subr.bf16.mxu0 0
          %1530 = vmatpush1.bf16.xpose.msra.mxu0 %v1519
          %1531 = vmatprep.subr.bf16.mxu0 0
          %1532 = vmatpush1.bf16.xpose.msra.mxu0 %v1516
          %1533 = vmatprep.subr.bf16.mxu0 0
          %1534 = vmatpush1.bf16.xpose.msra.mxu0 %v1513
          %1535 = vmatprep.subr.bf16.mxu0 0
          %1536 = vmatpush1.bf16.xpose.msra.mxu0 %v1510
          %1537 = vmatprep.subr.bf16.mxu0 0
          %1538 = vmatpush2.bf16.xpose.msra.mxu0 0
          %1539 = vmatprep.subr.bf16.mxu0 0
          %1540 = vmatpush2.bf16.xpose.msra.mxu0 0
          %1541 = vmatprep.subr.bf16.mxu0 0
          %1542 = vmatpush2.bf16.xpose.msra.mxu0 0
          %1543 = vmatprep.subr.bf16.mxu0 0
          %1544 = vmatpush2.bf16.xpose.msra.mxu0 0
          %1545 = vmatprep.subr.bf16.mxu0 0
          %1546 = vmatpush2.bf16.xpose.msra.mxu0 0
          %1547 = vmatprep.subr.bf16.mxu0 0
          %1548 = vmatpush2.bf16.xpose.msra.mxu0 0
          %1549 = vmatprep.subr.bf16.mxu0 0
          %1550 = vmatpush2.bf16.xpose.msra.mxu0 0
          %1551 = vmatprep.subr.bf16.mxu0 0
          %1552 = vmatpush2.bf16.xpose.msra.mxu0 0
          %1553 = vmatprep.mubr.bf16.mxu0 0
          %1554 = vmatmul.mubr.bf16.gmra.mxu0 %v1498
          %v1555 = vpop.f32.mrf.mxu0
          %v1556 = vadd.f32 0.0, %v1555
          %v1557 = vpop.f32.mrf.mxu0
          %v1558 = vpop.f32.mrf.mxu0
          %v1559 = vadd.f32 0.0, %v1558
          %v1560 = vpop.f32.mrf.mxu0
          %1561 = vmatprep.mubr.bf16.mxu0 0
          %1562 = vmatmul.mubr.bf16.gmra.mxu0 %v1501
          %v1563 = vpop.f32.mrf.mxu0
          %v1564 = vadd.f32 0.0, %v1563
          %v1565 = vpop.f32.mrf.mxu0
          %v1566 = vpop.f32.mrf.mxu0
          %v1567 = vadd.f32 0.0, %v1566
          %v1568 = vpop.f32.mrf.mxu0
          %1569 = vmatprep.mubr.bf16.mxu0 0
          %1570 = vmatmul.mubr.bf16.gmra.mxu0 %v1504
          %v1571 = vpop.f32.mrf.mxu0
          %v1572 = vadd.f32 0.0, %v1571
          %v1573 = vpop.f32.mrf.mxu0
          %v1574 = vpop.f32.mrf.mxu0
          %v1575 = vadd.f32 0.0, %v1574
          %v1576 = vpop.f32.mrf.mxu0
          %1577 = vmatprep.mubr.bf16.mxu0 0
          %1578 = vmatmul.mubr.bf16.gmra.mxu0 %v1507
          %v1579 = vpop.f32.mrf.mxu0
          %v1580 = vadd.f32 0.0, %v1579
          %v1581 = vpop.f32.mrf.mxu0
          %v1582 = vpop.f32.mrf.mxu0
          %v1583 = vadd.f32 0.0, %v1582
          %v1584 = vpop.f32.mrf.mxu0
          %1585 = vdwg.mxu0
          %v1587 = vsel %vm1496, %v1324, 0
          %v1590 = vsel %vm1496, %v1325, 0
          %v1593 = vsel %vm1496, %v1326, 0
          %v1596 = vsel %vm1496, %v1327, 0
          %v1599 = vsel %vm1496, %v1404, 0
          %v1602 = vsel %vm1496, %v1405, 0
          %v1605 = vsel %vm1496, %v1406, 0
          %v1608 = vsel %vm1496, %v1407, 0
          %1610 = vmatprep.subr.bf16.mxu0 0
          %1611 = vmatpush1.bf16.xpose.msra.mxu0 0
          %1612 = vmatprep.subr.bf16.mxu0 0
          %1613 = vmatpush1.bf16.xpose.msra.mxu0 0
          %1614 = vmatprep.subr.bf16.mxu0 0
          %1615 = vmatpush1.bf16.xpose.msra.mxu0 0
          %1616 = vmatprep.subr.bf16.mxu0 0
          %1617 = vmatpush1.bf16.xpose.msra.mxu0 0
          %1618 = vmatprep.subr.bf16.mxu0 0
          %1619 = vmatpush1.bf16.xpose.msra.mxu0 %v1608
          %1620 = vmatprep.subr.bf16.mxu0 0
          %1621 = vmatpush1.bf16.xpose.msra.mxu0 %v1605
          %1622 = vmatprep.subr.bf16.mxu0 0
          %1623 = vmatpush1.bf16.xpose.msra.mxu0 %v1602
          %1624 = vmatprep.subr.bf16.mxu0 0
          %1625 = vmatpush1.bf16.xpose.msra.mxu0 %v1599
          %1626 = vmatprep.subr.bf16.mxu0 0
          %1627 = vmatpush2.bf16.xpose.msra.mxu0 0
          %1628 = vmatprep.subr.bf16.mxu0 0
          %1629 = vmatpush2.bf16.xpose.msra.mxu0 0
          %1630 = vmatprep.subr.bf16.mxu0 0
          %1631 = vmatpush2.bf16.xpose.msra.mxu0 0
          %1632 = vmatprep.subr.bf16.mxu0 0
          %1633 = vmatpush2.bf16.xpose.msra.mxu0 0
          %1634 = vmatprep.subr.bf16.mxu0 0
          %1635 = vmatpush2.bf16.xpose.msra.mxu0 0
          %1636 = vmatprep.subr.bf16.mxu0 0
          %1637 = vmatpush2.bf16.xpose.msra.mxu0 0
          %1638 = vmatprep.subr.bf16.mxu0 0
          %1639 = vmatpush2.bf16.xpose.msra.mxu0 0
          %1640 = vmatprep.subr.bf16.mxu0 0
          %1641 = vmatpush2.bf16.xpose.msra.mxu0 0
          %1642 = vmatprep.mubr.bf16.mxu0 0
          %1643 = vmatmul.mubr.bf16.gmra.mxu0 %v1587
          %v1644 = vpop.f32.mrf.mxu0
          %v1645 = vadd.f32 0.0, %v1644
          %v1646 = vpop.f32.mrf.mxu0
          %v1647 = vpop.f32.mrf.mxu0
          %v1648 = vadd.f32 0.0, %v1647
          %v1649 = vpop.f32.mrf.mxu0
          %1650 = vmatprep.mubr.bf16.mxu0 0
          %1651 = vmatmul.mubr.bf16.gmra.mxu0 %v1590
          %v1652 = vpop.f32.mrf.mxu0
          %v1653 = vadd.f32 0.0, %v1652
          %v1654 = vpop.f32.mrf.mxu0
          %v1655 = vpop.f32.mrf.mxu0
          %v1656 = vadd.f32 0.0, %v1655
          %v1657 = vpop.f32.mrf.mxu0
          %1658 = vmatprep.mubr.bf16.mxu0 0
          %1659 = vmatmul.mubr.bf16.gmra.mxu0 %v1593
          %v1660 = vpop.f32.mrf.mxu0
          %v1661 = vadd.f32 0.0, %v1660
          %v1662 = vpop.f32.mrf.mxu0
          %v1663 = vpop.f32.mrf.mxu0
          %v1664 = vadd.f32 0.0, %v1663
          %v1665 = vpop.f32.mrf.mxu0
          %1666 = vmatprep.mubr.bf16.mxu0 0
          %1667 = vmatmul.mubr.bf16.gmra.mxu0 %v1596
          %v1668 = vpop.f32.mrf.mxu0
          %v1669 = vadd.f32 0.0, %v1668
          %v1670 = vpop.f32.mrf.mxu0
          %v1671 = vpop.f32.mrf.mxu0
          %v1672 = vadd.f32 0.0, %v1671
          %v1673 = vpop.f32.mrf.mxu0
          %1674 = vdwg.mxu0
          %v1676 = vsel %vm1496, %v1328, 0
          %v1679 = vsel %vm1496, %v1329, 0
          %v1682 = vsel %vm1496, %v1330, 0
          %v1685 = vsel %vm1496, %v1331, 0
          %v1688 = vsel %vm1496, %v1408, 0
          %v1691 = vsel %vm1496, %v1409, 0
          %v1694 = vsel %vm1496, %v1410, 0
          %v1697 = vsel %vm1496, %v1411, 0
          %1699 = vmatprep.subr.bf16.mxu0 0
          %1700 = vmatpush1.bf16.xpose.msra.mxu0 0
          %1701 = vmatprep.subr.bf16.mxu0 0
          %1702 = vmatpush1.bf16.xpose.msra.mxu0 0
          %1703 = vmatprep.subr.bf16.mxu0 0
          %1704 = vmatpush1.bf16.xpose.msra.mxu0 0
          %1705 = vmatprep.subr.bf16.mxu0 0
          %1706 = vmatpush1.bf16.xpose.msra.mxu0 0
          %1707 = vmatprep.subr.bf16.mxu0 0
          %1708 = vmatpush1.bf16.xpose.msra.mxu0 %v1697
          %1709 = vmatprep.subr.bf16.mxu0 0
          %1710 = vmatpush1.bf16.xpose.msra.mxu0 %v1694
          %1711 = vmatprep.subr.bf16.mxu0 0
          %1712 = vmatpush1.bf16.xpose.msra.mxu0 %v1691
          %1713 = vmatprep.subr.bf16.mxu0 0
          %1714 = vmatpush1.bf16.xpose.msra.mxu0 %v1688
          %1715 = vmatprep.subr.bf16.mxu0 0
          %1716 = vmatpush2.bf16.xpose.msra.mxu0 0
          %1717 = vmatprep.subr.bf16.mxu0 0
          %1718 = vmatpush2.bf16.xpose.msra.mxu0 0
          %1719 = vmatprep.subr.bf16.mxu0 0
          %1720 = vmatpush2.bf16.xpose.msra.mxu0 0
          %1721 = vmatprep.subr.bf16.mxu0 0
          %1722 = vmatpush2.bf16.xpose.msra.mxu0 0
          %1723 = vmatprep.subr.bf16.mxu0 0
          %1724 = vmatpush2.bf16.xpose.msra.mxu0 0
          %1725 = vmatprep.subr.bf16.mxu0 0
          %1726 = vmatpush2.bf16.xpose.msra.mxu0 0
          %1727 = vmatprep.subr.bf16.mxu0 0
          %1728 = vmatpush2.bf16.xpose.msra.mxu0 0
          %1729 = vmatprep.subr.bf16.mxu0 0
          %1730 = vmatpush2.bf16.xpose.msra.mxu0 0
          %1731 = vmatprep.mubr.bf16.mxu0 0
          %1732 = vmatmul.mubr.bf16.gmra.mxu0 %v1676
          %v1733 = vpop.f32.mrf.mxu0
          %v1734 = vadd.f32 0.0, %v1733
          %v1735 = vpop.f32.mrf.mxu0
          %v1736 = vpop.f32.mrf.mxu0
          %v1737 = vadd.f32 0.0, %v1736
          %v1738 = vpop.f32.mrf.mxu0
          %1739 = vmatprep.mubr.bf16.mxu0 0
          %1740 = vmatmul.mubr.bf16.gmra.mxu0 %v1679
          %v1741 = vpop.f32.mrf.mxu0
          %v1742 = vadd.f32 0.0, %v1741
          %v1743 = vpop.f32.mrf.mxu0
          %v1744 = vpop.f32.mrf.mxu0
          %v1745 = vadd.f32 0.0, %v1744
          %v1746 = vpop.f32.mrf.mxu0
          %1747 = vmatprep.mubr.bf16.mxu0 0
          %1748 = vmatmul.mubr.bf16.gmra.mxu0 %v1682
          %v1749 = vpop.f32.mrf.mxu0
          %v1750 = vadd.f32 0.0, %v1749
          %v1751 = vpop.f32.mrf.mxu0
          %v1752 = vpop.f32.mrf.mxu0
          %v1753 = vadd.f32 0.0, %v1752
          %v1754 = vpop.f32.mrf.mxu0
          %1755 = vmatprep.mubr.bf16.mxu0 0
          %1756 = vmatmul.mubr.bf16.gmra.mxu0 %v1685
          %v1757 = vpop.f32.mrf.mxu0
          %v1758 = vadd.f32 0.0, %v1757
          %v1759 = vpop.f32.mrf.mxu0
          %v1760 = vpop.f32.mrf.mxu0
          %v1761 = vadd.f32 0.0, %v1760
          %v1762 = vpop.f32.mrf.mxu0
          %1763 = vdwg.mxu0
          %v1765 = vsel %vm1496, %v1332, 0
          %v1768 = vsel %vm1496, %v1333, 0
          %v1771 = vsel %vm1496, %v1334, 0
          %v1774 = vsel %vm1496, %v1335, 0
          %v1777 = vsel %vm1496, %v1412, 0
          %v1780 = vsel %vm1496, %v1413, 0
          %v1783 = vsel %vm1496, %v1414, 0
          %v1786 = vsel %vm1496, %v1415, 0
          %1788 = vmatprep.subr.bf16.mxu0 0
          %1789 = vmatpush1.bf16.xpose.msra.mxu0 0
          %1790 = vmatprep.subr.bf16.mxu0 0
          %1791 = vmatpush1.bf16.xpose.msra.mxu0 0
          %1792 = vmatprep.subr.bf16.mxu0 0
          %1793 = vmatpush1.bf16.xpose.msra.mxu0 0
          %1794 = vmatprep.subr.bf16.mxu0 0
          %1795 = vmatpush1.bf16.xpose.msra.mxu0 0
          %1796 = vmatprep.subr.bf16.mxu0 0
          %1797 = vmatpush1.bf16.xpose.msra.mxu0 %v1786
          %1798 = vmatprep.subr.bf16.mxu0 0
          %1799 = vmatpush1.bf16.xpose.msra.mxu0 %v1783
          %1800 = vmatprep.subr.bf16.mxu0 0
          %1801 = vmatpush1.bf16.xpose.msra.mxu0 %v1780
          %1802 = vmatprep.subr.bf16.mxu0 0
          %1803 = vmatpush1.bf16.xpose.msra.mxu0 %v1777
          %1804 = vmatprep.subr.bf16.mxu0 0
          %1805 = vmatpush2.bf16.xpose.msra.mxu0 0
          %1806 = vmatprep.subr.bf16.mxu0 0
          %1807 = vmatpush2.bf16.xpose.msra.mxu0 0
          %1808 = vmatprep.subr.bf16.mxu0 0
          %1809 = vmatpush2.bf16.xpose.msra.mxu0 0
          %1810 = vmatprep.subr.bf16.mxu0 0
          %1811 = vmatpush2.bf16.xpose.msra.mxu0 0
          %1812 = vmatprep.subr.bf16.mxu0 0
          %1813 = vmatpush2.bf16.xpose.msra.mxu0 0
          %1814 = vmatprep.subr.bf16.mxu0 0
          %1815 = vmatpush2.bf16.xpose.msra.mxu0 0
          %1816 = vmatprep.subr.bf16.mxu0 0
          %1817 = vmatpush2.bf16.xpose.msra.mxu0 0
          %1818 = vmatprep.subr.bf16.mxu0 0
          %1819 = vmatpush2.bf16.xpose.msra.mxu0 0
          %1820 = vmatprep.mubr.bf16.mxu0 0
          %1821 = vmatmul.mubr.bf16.gmra.mxu0 %v1765
          %v1822 = vpop.f32.mrf.mxu0
          %v1823 = vadd.f32 0.0, %v1822
          %v1824 = vpop.f32.mrf.mxu0
          %v1825 = vpop.f32.mrf.mxu0
          %v1826 = vadd.f32 0.0, %v1825
          %v1827 = vpop.f32.mrf.mxu0
          %1828 = vmatprep.mubr.bf16.mxu0 0
          %1829 = vmatmul.mubr.bf16.gmra.mxu0 %v1768
          %v1830 = vpop.f32.mrf.mxu0
          %v1831 = vadd.f32 0.0, %v1830
          %v1832 = vpop.f32.mrf.mxu0
          %v1833 = vpop.f32.mrf.mxu0
          %v1834 = vadd.f32 0.0, %v1833
          %v1835 = vpop.f32.mrf.mxu0
          %1836 = vmatprep.mubr.bf16.mxu0 0
          %1837 = vmatmul.mubr.bf16.gmra.mxu0 %v1771
          %v1838 = vpop.f32.mrf.mxu0
          %v1839 = vadd.f32 0.0, %v1838
          %v1840 = vpop.f32.mrf.mxu0
          %v1841 = vpop.f32.mrf.mxu0
          %v1842 = vadd.f32 0.0, %v1841
          %v1843 = vpop.f32.mrf.mxu0
          %1844 = vmatprep.mubr.bf16.mxu0 0
          %1845 = vmatmul.mubr.bf16.gmra.mxu0 %v1774
          %v1846 = vpop.f32.mrf.mxu0
          %v1847 = vadd.f32 0.0, %v1846
          %v1848 = vpop.f32.mrf.mxu0
          %v1849 = vpop.f32.mrf.mxu0
          %v1850 = vadd.f32 0.0, %v1849
          %v1851 = vpop.f32.mrf.mxu0
          %1852 = vdwg.mxu0
          %v1853 = vsel %vm1496, %v1556, -inf
          %1854 = vmax.xlane.f32.xlu0 %v1853
          %v1855 = vpop.xlane.xlu0 %1854
          %v1856 = vsel %vm1496, %v1559, -inf
          %1857 = vmax.xlane.f32.xlu0 %v1856
          %v1858 = vpop.xlane.xlu0 %1857
          %v1859 = vsel %vm1496, %v1564, -inf
          %1860 = vmax.xlane.f32.xlu0 %v1859
          %v1861 = vpop.xlane.xlu0 %1860
          %v1862 = vsel %vm1496, %v1567, -inf
          %1863 = vmax.xlane.f32.xlu0 %v1862
          %v1864 = vpop.xlane.xlu0 %1863
          %v1865 = vsel %vm1496, %v1572, -inf
          %1866 = vmax.xlane.f32.xlu0 %v1865
          %v1867 = vpop.xlane.xlu0 %1866
          %v1868 = vsel %vm1496, %v1575, -inf
          %1869 = vmax.xlane.f32.xlu0 %v1868
          %v1870 = vpop.xlane.xlu0 %1869
          %v1871 = vsel %vm1496, %v1580, -inf
          %1872 = vmax.xlane.f32.xlu0 %v1871
          %v1873 = vpop.xlane.xlu0 %1872
          %v1874 = vsel %vm1496, %v1583, -inf
          %1875 = vmax.xlane.f32.xlu0 %v1874
          %v1876 = vpop.xlane.xlu0 %1875
          %v1877 = vsel %vm1496, %v1645, -inf
          %1878 = vmax.xlane.f32.xlu0 %v1877
          %v1879 = vpop.xlane.xlu0 %1878
          %v1880 = vsel %vm1496, %v1648, -inf
          %1881 = vmax.xlane.f32.xlu0 %v1880
          %v1882 = vpop.xlane.xlu0 %1881
          %v1883 = vsel %vm1496, %v1653, -inf
          %1884 = vmax.xlane.f32.xlu0 %v1883
          %v1885 = vpop.xlane.xlu0 %1884
          %v1886 = vsel %vm1496, %v1656, -inf
          %1887 = vmax.xlane.f32.xlu0 %v1886
          %v1888 = vpop.xlane.xlu0 %1887
          %v1889 = vsel %vm1496, %v1661, -inf
          %1890 = vmax.xlane.f32.xlu0 %v1889
          %v1891 = vpop.xlane.xlu0 %1890
          %v1892 = vsel %vm1496, %v1664, -inf
          %1893 = vmax.xlane.f32.xlu0 %v1892
          %v1894 = vpop.xlane.xlu0 %1893
          %v1895 = vsel %vm1496, %v1669, -inf
          %1896 = vmax.xlane.f32.xlu0 %v1895
          %v1897 = vpop.xlane.xlu0 %1896
          %v1898 = vsel %vm1496, %v1672, -inf
          %1899 = vmax.xlane.f32.xlu0 %v1898
          %v1900 = vpop.xlane.xlu0 %1899
          %v1901 = vsel %vm1496, %v1734, -inf
          %1902 = vmax.xlane.f32.xlu0 %v1901
          %v1903 = vpop.xlane.xlu0 %1902
          %v1904 = vsel %vm1496, %v1737, -inf
          %1905 = vmax.xlane.f32.xlu0 %v1904
          %v1906 = vpop.xlane.xlu0 %1905
          %v1907 = vsel %vm1496, %v1742, -inf
          %1908 = vmax.xlane.f32.xlu0 %v1907
          %v1909 = vpop.xlane.xlu0 %1908
          %v1910 = vsel %vm1496, %v1745, -inf
          %1911 = vmax.xlane.f32.xlu0 %v1910
          %v1912 = vpop.xlane.xlu0 %1911
          %v1913 = vsel %vm1496, %v1750, -inf
          %1914 = vmax.xlane.f32.xlu0 %v1913
          %v1915 = vpop.xlane.xlu0 %1914
          %v1916 = vsel %vm1496, %v1753, -inf
          %1917 = vmax.xlane.f32.xlu0 %v1916
          %v1918 = vpop.xlane.xlu0 %1917
          %v1919 = vsel %vm1496, %v1758, -inf
          %1920 = vmax.xlane.f32.xlu0 %v1919
          %v1921 = vpop.xlane.xlu0 %1920
          %v1922 = vsel %vm1496, %v1761, -inf
          %1923 = vmax.xlane.f32.xlu0 %v1922
          %v1924 = vpop.xlane.xlu0 %1923
          %v1925 = vsel %vm1496, %v1823, -inf
          %1926 = vmax.xlane.f32.xlu0 %v1925
          %v1927 = vpop.xlane.xlu0 %1926
          %v1928 = vsel %vm1496, %v1826, -inf
          %1929 = vmax.xlane.f32.xlu0 %v1928
          %v1930 = vpop.xlane.xlu0 %1929
          %v1931 = vsel %vm1496, %v1831, -inf
          %1932 = vmax.xlane.f32.xlu0 %v1931
          %v1933 = vpop.xlane.xlu0 %1932
          %v1934 = vsel %vm1496, %v1834, -inf
          %1935 = vmax.xlane.f32.xlu0 %v1934
          %v1936 = vpop.xlane.xlu0 %1935
          %v1937 = vsel %vm1496, %v1839, -inf
          %1938 = vmax.xlane.f32.xlu0 %v1937
          %v1939 = vpop.xlane.xlu0 %1938
          %v1940 = vsel %vm1496, %v1842, -inf
          %1941 = vmax.xlane.f32.xlu0 %v1940
          %v1942 = vpop.xlane.xlu0 %1941
          %v1943 = vsel %vm1496, %v1847, -inf
          %1944 = vmax.xlane.f32.xlu0 %v1943
          %v1945 = vpop.xlane.xlu0 %1944
          %v1946 = vsel %vm1496, %v1850, -inf
          %1947 = vmax.xlane.f32.xlu0 %v1946
          %v1948 = vpop.xlane.xlu0 %1947
          %v1949 = vsub.f32 %v1556, %v1855
          %v1950 = vsub.f32 %v1559, %v1858
          %v1951 = vsub.f32 %v1564, %v1861
          %v1952 = vsub.f32 %v1567, %v1864
          %v1953 = vsub.f32 %v1572, %v1867
          %v1954 = vsub.f32 %v1575, %v1870
          %v1955 = vsub.f32 %v1580, %v1873
          %v1956 = vsub.f32 %v1583, %v1876
          %v1957 = vsub.f32 %v1645, %v1879
          %v1958 = vsub.f32 %v1648, %v1882
          %v1959 = vsub.f32 %v1653, %v1885
          %v1960 = vsub.f32 %v1656, %v1888
          %v1961 = vsub.f32 %v1661, %v1891
          %v1962 = vsub.f32 %v1664, %v1894
          %v1963 = vsub.f32 %v1669, %v1897
          %v1964 = vsub.f32 %v1672, %v1900
          %v1965 = vsub.f32 %v1734, %v1903
          %v1966 = vsub.f32 %v1737, %v1906
          %v1967 = vsub.f32 %v1742, %v1909
          %v1968 = vsub.f32 %v1745, %v1912
          %v1969 = vsub.f32 %v1750, %v1915
          %v1970 = vsub.f32 %v1753, %v1918
          %v1971 = vsub.f32 %v1758, %v1921
          %v1972 = vsub.f32 %v1761, %v1924
          %v1973 = vsub.f32 %v1823, %v1927
          %v1974 = vsub.f32 %v1826, %v1930
          %v1975 = vsub.f32 %v1831, %v1933
          %v1976 = vsub.f32 %v1834, %v1936
          %v1977 = vsub.f32 %v1839, %v1939
          %v1978 = vsub.f32 %v1842, %v1942
          %v1979 = vsub.f32 %v1847, %v1945
          %v1980 = vsub.f32 %v1850, %v1948
          %v1981 = vmul.f32 %v1949, 1.442695
          %v1982 = vpow.pop %v1981
          %v1983 = vmul.f32 %v1950, 1.442695
          %v1984 = vpow.pop %v1983
          %v1985 = vmul.f32 %v1951, 1.442695
          %v1986 = vpow.pop %v1985
          %v1987 = vmul.f32 %v1952, 1.442695
          %v1988 = vpow.pop %v1987
          %v1989 = vmul.f32 %v1953, 1.442695
          %v1990 = vpow.pop %v1989
          %v1991 = vmul.f32 %v1954, 1.442695
          %v1992 = vpow.pop %v1991
          %v1993 = vmul.f32 %v1955, 1.442695
          %v1994 = vpow.pop %v1993
          %v1995 = vmul.f32 %v1956, 1.442695
          %v1996 = vpow.pop %v1995
          %v1997 = vmul.f32 %v1957, 1.442695
          %v1998 = vpow.pop %v1997
          %v1999 = vmul.f32 %v1958, 1.442695
          %v2000 = vpow.pop %v1999
          %v2001 = vmul.f32 %v1959, 1.442695
          %v2002 = vpow.pop %v2001
          %v2003 = vmul.f32 %v1960, 1.442695
          %v2004 = vpow.pop %v2003
          %v2005 = vmul.f32 %v1961, 1.442695
          %v2006 = vpow.pop %v2005
          %v2007 = vmul.f32 %v1962, 1.442695
          %v2008 = vpow.pop %v2007
          %v2009 = vmul.f32 %v1963, 1.442695
          %v2010 = vpow.pop %v2009
          %v2011 = vmul.f32 %v1964, 1.442695
          %v2012 = vpow.pop %v2011
          %v2013 = vmul.f32 %v1965, 1.442695
          %v2014 = vpow.pop %v2013
          %v2015 = vmul.f32 %v1966, 1.442695
          %v2016 = vpow.pop %v2015
          %v2017 = vmul.f32 %v1967, 1.442695
          %v2018 = vpow.pop %v2017
          %v2019 = vmul.f32 %v1968, 1.442695
          %v2020 = vpow.pop %v2019
          %v2021 = vmul.f32 %v1969, 1.442695
          %v2022 = vpow.pop %v2021
          %v2023 = vmul.f32 %v1970, 1.442695
          %v2024 = vpow.pop %v2023
          %v2025 = vmul.f32 %v1971, 1.442695
          %v2026 = vpow.pop %v2025
          %v2027 = vmul.f32 %v1972, 1.442695
          %v2028 = vpow.pop %v2027
          %v2029 = vmul.f32 %v1973, 1.442695
          %v2030 = vpow.pop %v2029
          %v2031 = vmul.f32 %v1974, 1.442695
          %v2032 = vpow.pop %v2031
          %v2033 = vmul.f32 %v1975, 1.442695
          %v2034 = vpow.pop %v2033
          %v2035 = vmul.f32 %v1976, 1.442695
          %v2036 = vpow.pop %v2035
          %v2037 = vmul.f32 %v1977, 1.442695
          %v2038 = vpow.pop %v2037
          %v2039 = vmul.f32 %v1978, 1.442695
          %v2040 = vpow.pop %v2039
          %v2041 = vmul.f32 %v1979, 1.442695
          %v2042 = vpow.pop %v2041
          %v2043 = vmul.f32 %v1980, 1.442695
          %v2044 = vpow.pop %v2043
          %v2045 = vsel %vm1496, %v1982, 0.0
          %2046 = vadd.xlane.f32.xlu0 %v2045
          %v2047 = vpop.xlane.xlu0 %2046
          %v2048 = vsel %vm1496, %v1984, 0.0
          %2049 = vadd.xlane.f32.xlu0 %v2048
          %v2050 = vpop.xlane.xlu0 %2049
          %v2051 = vsel %vm1496, %v1986, 0.0
          %2052 = vadd.xlane.f32.xlu0 %v2051
          %v2053 = vpop.xlane.xlu0 %2052
          %v2054 = vsel %vm1496, %v1988, 0.0
          %2055 = vadd.xlane.f32.xlu0 %v2054
          %v2056 = vpop.xlane.xlu0 %2055
          %v2057 = vsel %vm1496, %v1990, 0.0
          %2058 = vadd.xlane.f32.xlu0 %v2057
          %v2059 = vpop.xlane.xlu0 %2058
          %v2060 = vsel %vm1496, %v1992, 0.0
          %2061 = vadd.xlane.f32.xlu0 %v2060
          %v2062 = vpop.xlane.xlu0 %2061
          %v2063 = vsel %vm1496, %v1994, 0.0
          %2064 = vadd.xlane.f32.xlu0 %v2063
          %v2065 = vpop.xlane.xlu0 %2064
          %v2066 = vsel %vm1496, %v1996, 0.0
          %2067 = vadd.xlane.f32.xlu0 %v2066
          %v2068 = vpop.xlane.xlu0 %2067
          %v2069 = vsel %vm1496, %v1998, 0.0
          %2070 = vadd.xlane.f32.xlu0 %v2069
          %v2071 = vpop.xlane.xlu0 %2070
          %v2072 = vsel %vm1496, %v2000, 0.0
          %2073 = vadd.xlane.f32.xlu0 %v2072
          %v2074 = vpop.xlane.xlu0 %2073
          %v2075 = vsel %vm1496, %v2002, 0.0
          %2076 = vadd.xlane.f32.xlu0 %v2075
          %v2077 = vpop.xlane.xlu0 %2076
          %v2078 = vsel %vm1496, %v2004, 0.0
          %2079 = vadd.xlane.f32.xlu0 %v2078
          %v2080 = vpop.xlane.xlu0 %2079
          %v2081 = vsel %vm1496, %v2006, 0.0
          %2082 = vadd.xlane.f32.xlu0 %v2081
          %v2083 = vpop.xlane.xlu0 %2082
          %v2084 = vsel %vm1496, %v2008, 0.0
          %2085 = vadd.xlane.f32.xlu0 %v2084
          %v2086 = vpop.xlane.xlu0 %2085
          %v2087 = vsel %vm1496, %v2010, 0.0
          %2088 = vadd.xlane.f32.xlu0 %v2087
          %v2089 = vpop.xlane.xlu0 %2088
          %v2090 = vsel %vm1496, %v2012, 0.0
          %2091 = vadd.xlane.f32.xlu0 %v2090
          %v2092 = vpop.xlane.xlu0 %2091
          %v2093 = vsel %vm1496, %v2014, 0.0
          %2094 = vadd.xlane.f32.xlu0 %v2093
          %v2095 = vpop.xlane.xlu0 %2094
          %v2096 = vsel %vm1496, %v2016, 0.0
          %2097 = vadd.xlane.f32.xlu0 %v2096
          %v2098 = vpop.xlane.xlu0 %2097
          %v2099 = vsel %vm1496, %v2018, 0.0
          %2100 = vadd.xlane.f32.xlu0 %v2099
          %v2101 = vpop.xlane.xlu0 %2100
          %v2102 = vsel %vm1496, %v2020, 0.0
          %2103 = vadd.xlane.f32.xlu0 %v2102
          %v2104 = vpop.xlane.xlu0 %2103
          %v2105 = vsel %vm1496, %v2022, 0.0
          %2106 = vadd.xlane.f32.xlu0 %v2105
          %v2107 = vpop.xlane.xlu0 %2106
          %v2108 = vsel %vm1496, %v2024, 0.0
          %2109 = vadd.xlane.f32.xlu0 %v2108
          %v2110 = vpop.xlane.xlu0 %2109
          %v2111 = vsel %vm1496, %v2026, 0.0
          %2112 = vadd.xlane.f32.xlu0 %v2111
          %v2113 = vpop.xlane.xlu0 %2112
          %v2114 = vsel %vm1496, %v2028, 0.0
          %2115 = vadd.xlane.f32.xlu0 %v2114
          %v2116 = vpop.xlane.xlu0 %2115
          %v2117 = vsel %vm1496, %v2030, 0.0
          %2118 = vadd.xlane.f32.xlu0 %v2117
          %v2119 = vpop.xlane.xlu0 %2118
          %v2120 = vsel %vm1496, %v2032, 0.0
          %2121 = vadd.xlane.f32.xlu0 %v2120
          %v2122 = vpop.xlane.xlu0 %2121
          %v2123 = vsel %vm1496, %v2034, 0.0
          %2124 = vadd.xlane.f32.xlu0 %v2123
          %v2125 = vpop.xlane.xlu0 %2124
          %v2126 = vsel %vm1496, %v2036, 0.0
          %2127 = vadd.xlane.f32.xlu0 %v2126
          %v2128 = vpop.xlane.xlu0 %2127
          %v2129 = vsel %vm1496, %v2038, 0.0
          %2130 = vadd.xlane.f32.xlu0 %v2129
          %v2131 = vpop.xlane.xlu0 %2130
          %v2132 = vsel %vm1496, %v2040, 0.0
          %2133 = vadd.xlane.f32.xlu0 %v2132
          %v2134 = vpop.xlane.xlu0 %2133
          %v2135 = vsel %vm1496, %v2042, 0.0
          %2136 = vadd.xlane.f32.xlu0 %v2135
          %v2137 = vpop.xlane.xlu0 %2136
          %v2138 = vsel %vm1496, %v2044, 0.0
          %2139 = vadd.xlane.f32.xlu0 %v2138
          %v2140 = vpop.xlane.xlu0 %2139
          %v2141 = vpack.c.bf16 %v1984, %v1982
          %v2142 = vpack.c.bf16 %v1988, %v1986
          %v2143 = vpack.c.bf16 %v1992, %v1990
          %v2144 = vpack.c.bf16 %v1996, %v1994
          %v2145 = vpack.c.bf16 %v2000, %v1998
          %v2146 = vpack.c.bf16 %v2004, %v2002
          %v2147 = vpack.c.bf16 %v2008, %v2006
          %v2148 = vpack.c.bf16 %v2012, %v2010
          %v2149 = vpack.c.bf16 %v2016, %v2014
          %v2150 = vpack.c.bf16 %v2020, %v2018
          %v2151 = vpack.c.bf16 %v2024, %v2022
          %v2152 = vpack.c.bf16 %v2028, %v2026
          %v2153 = vpack.c.bf16 %v2032, %v2030
          %v2154 = vpack.c.bf16 %v2036, %v2034
          %v2155 = vpack.c.bf16 %v2040, %v2038
          %v2156 = vpack.c.bf16 %v2044, %v2042
          %v2158 = vsel %vm1496, %v2141, 0
          %v2161 = vsel %vm1496, %v2142, 0
          %v2164 = vsel %vm1496, %v2143, 0
          %v2167 = vsel %vm1496, %v2144, 0
          %2169 = vmatprep.subr.bf16.mxu0 0
          %2170 = vmatpush1.bf16.msra.mxu0 0
          %2171 = vmatprep.subr.bf16.mxu0 0
          %2172 = vmatpush1.bf16.msra.mxu0 0
          %2173 = vmatprep.subr.bf16.mxu0 0
          %2174 = vmatpush1.bf16.msra.mxu0 0
          %2175 = vmatprep.subr.bf16.mxu0 0
          %2176 = vmatpush1.bf16.msra.mxu0 0
          %2177 = vmatprep.subr.bf16.mxu0 0
          %2178 = vmatpush1.bf16.msra.mxu0 %v1483
          %2179 = vmatprep.subr.bf16.mxu0 0
          %2180 = vmatpush1.bf16.msra.mxu0 %v1482
          %2181 = vmatprep.subr.bf16.mxu0 0
          %2182 = vmatpush1.bf16.msra.mxu0 %v1481
          %2183 = vmatprep.subr.bf16.mxu0 0
          %2184 = vmatpush1.bf16.msra.mxu0 %v1480
          %2185 = vmatprep.subr.bf16.mxu0 0
          %2186 = vmatpush2.bf16.msra.mxu0 0
          %2187 = vmatprep.subr.bf16.mxu0 0
          %2188 = vmatpush2.bf16.msra.mxu0 0
          %2189 = vmatprep.subr.bf16.mxu0 0
          %2190 = vmatpush2.bf16.msra.mxu0 0
          %2191 = vmatprep.subr.bf16.mxu0 0
          %2192 = vmatpush2.bf16.msra.mxu0 0
          %2193 = vmatprep.subr.bf16.mxu0 0
          %2194 = vmatpush2.bf16.msra.mxu0 0
          %2195 = vmatprep.subr.bf16.mxu0 0
          %2196 = vmatpush2.bf16.msra.mxu0 0
          %2197 = vmatprep.subr.bf16.mxu0 0
          %2198 = vmatpush2.bf16.msra.mxu0 0
          %2199 = vmatprep.subr.bf16.mxu0 0
          %2200 = vmatpush2.bf16.msra.mxu0 0
          %2201 = vmatprep.mubr.bf16.mxu0 0
          %2202 = vmatmul.mubr.bf16.gmra.mxu0 %v2158
          %v2203 = vpop.f32.mrf.mxu0
          %v2204 = vadd.f32 0.0, %v2203
          %v2205 = vpop.f32.mrf.mxu0
          %v2206 = vpop.f32.mrf.mxu0
          %v2207 = vadd.f32 0.0, %v2206
          %v2208 = vpop.f32.mrf.mxu0
          %2209 = vmatprep.mubr.bf16.mxu0 0
          %2210 = vmatmul.mubr.bf16.gmra.mxu0 %v2161
          %v2211 = vpop.f32.mrf.mxu0
          %v2212 = vadd.f32 0.0, %v2211
          %v2213 = vpop.f32.mrf.mxu0
          %v2214 = vpop.f32.mrf.mxu0
          %v2215 = vadd.f32 0.0, %v2214
          %v2216 = vpop.f32.mrf.mxu0
          %2217 = vmatprep.mubr.bf16.mxu0 0
          %2218 = vmatmul.mubr.bf16.gmra.mxu0 %v2164
          %v2219 = vpop.f32.mrf.mxu0
          %v2220 = vadd.f32 0.0, %v2219
          %v2221 = vpop.f32.mrf.mxu0
          %v2222 = vpop.f32.mrf.mxu0
          %v2223 = vadd.f32 0.0, %v2222
          %v2224 = vpop.f32.mrf.mxu0
          %2225 = vmatprep.mubr.bf16.mxu0 0
          %2226 = vmatmul.mubr.bf16.gmra.mxu0 %v2167
          %v2227 = vpop.f32.mrf.mxu0
          %v2228 = vadd.f32 0.0, %v2227
          %v2229 = vpop.f32.mrf.mxu0
          %v2230 = vpop.f32.mrf.mxu0
          %v2231 = vadd.f32 0.0, %v2230
          %v2232 = vpop.f32.mrf.mxu0
          %2233 = vdwg.mxu0
          %v2235 = vsel %vm1496, %v2145, 0
          %v2238 = vsel %vm1496, %v2146, 0
          %v2241 = vsel %vm1496, %v2147, 0
          %v2244 = vsel %vm1496, %v2148, 0
          %2246 = vmatprep.subr.bf16.mxu0 0
          %2247 = vmatpush1.bf16.msra.mxu0 0
          %2248 = vmatprep.subr.bf16.mxu0 0
          %2249 = vmatpush1.bf16.msra.mxu0 0
          %2250 = vmatprep.subr.bf16.mxu0 0
          %2251 = vmatpush1.bf16.msra.mxu0 0
          %2252 = vmatprep.subr.bf16.mxu0 0
          %2253 = vmatpush1.bf16.msra.mxu0 0
          %2254 = vmatprep.subr.bf16.mxu0 0
          %2255 = vmatpush1.bf16.msra.mxu0 %v1487
          %2256 = vmatprep.subr.bf16.mxu0 0
          %2257 = vmatpush1.bf16.msra.mxu0 %v1486
          %2258 = vmatprep.subr.bf16.mxu0 0
          %2259 = vmatpush1.bf16.msra.mxu0 %v1485
          %2260 = vmatprep.subr.bf16.mxu0 0
          %2261 = vmatpush1.bf16.msra.mxu0 %v1484
          %2262 = vmatprep.subr.bf16.mxu0 0
          %2263 = vmatpush2.bf16.msra.mxu0 0
          %2264 = vmatprep.subr.bf16.mxu0 0
          %2265 = vmatpush2.bf16.msra.mxu0 0
          %2266 = vmatprep.subr.bf16.mxu0 0
          %2267 = vmatpush2.bf16.msra.mxu0 0
          %2268 = vmatprep.subr.bf16.mxu0 0
          %2269 = vmatpush2.bf16.msra.mxu0 0
          %2270 = vmatprep.subr.bf16.mxu0 0
          %2271 = vmatpush2.bf16.msra.mxu0 0
          %2272 = vmatprep.subr.bf16.mxu0 0
          %2273 = vmatpush2.bf16.msra.mxu0 0
          %2274 = vmatprep.subr.bf16.mxu0 0
          %2275 = vmatpush2.bf16.msra.mxu0 0
          %2276 = vmatprep.subr.bf16.mxu0 0
          %2277 = vmatpush2.bf16.msra.mxu0 0
          %2278 = vmatprep.mubr.bf16.mxu0 0
          %2279 = vmatmul.mubr.bf16.gmra.mxu0 %v2235
          %v2280 = vpop.f32.mrf.mxu0
          %v2281 = vadd.f32 0.0, %v2280
          %v2282 = vpop.f32.mrf.mxu0
          %v2283 = vpop.f32.mrf.mxu0
          %v2284 = vadd.f32 0.0, %v2283
          %v2285 = vpop.f32.mrf.mxu0
          %2286 = vmatprep.mubr.bf16.mxu0 0
          %2287 = vmatmul.mubr.bf16.gmra.mxu0 %v2238
          %v2288 = vpop.f32.mrf.mxu0
          %v2289 = vadd.f32 0.0, %v2288
          %v2290 = vpop.f32.mrf.mxu0
          %v2291 = vpop.f32.mrf.mxu0
          %v2292 = vadd.f32 0.0, %v2291
          %v2293 = vpop.f32.mrf.mxu0
          %2294 = vmatprep.mubr.bf16.mxu0 0
          %2295 = vmatmul.mubr.bf16.gmra.mxu0 %v2241
          %v2296 = vpop.f32.mrf.mxu0
          %v2297 = vadd.f32 0.0, %v2296
          %v2298 = vpop.f32.mrf.mxu0
          %v2299 = vpop.f32.mrf.mxu0
          %v2300 = vadd.f32 0.0, %v2299
          %v2301 = vpop.f32.mrf.mxu0
          %2302 = vmatprep.mubr.bf16.mxu0 0
          %2303 = vmatmul.mubr.bf16.gmra.mxu0 %v2244
          %v2304 = vpop.f32.mrf.mxu0
          %v2305 = vadd.f32 0.0, %v2304
          %v2306 = vpop.f32.mrf.mxu0
          %v2307 = vpop.f32.mrf.mxu0
          %v2308 = vadd.f32 0.0, %v2307
          %v2309 = vpop.f32.mrf.mxu0
          %2310 = vdwg.mxu0
          %v2312 = vsel %vm1496, %v2149, 0
          %v2315 = vsel %vm1496, %v2150, 0
          %v2318 = vsel %vm1496, %v2151, 0
          %v2321 = vsel %vm1496, %v2152, 0
          %2323 = vmatprep.subr.bf16.mxu0 0
          %2324 = vmatpush1.bf16.msra.mxu0 0
          %2325 = vmatprep.subr.bf16.mxu0 0
          %2326 = vmatpush1.bf16.msra.mxu0 0
          %2327 = vmatprep.subr.bf16.mxu0 0
          %2328 = vmatpush1.bf16.msra.mxu0 0
          %2329 = vmatprep.subr.bf16.mxu0 0
          %2330 = vmatpush1.bf16.msra.mxu0 0
          %2331 = vmatprep.subr.bf16.mxu0 0
          %2332 = vmatpush1.bf16.msra.mxu0 %v1491
          %2333 = vmatprep.subr.bf16.mxu0 0
          %2334 = vmatpush1.bf16.msra.mxu0 %v1490
          %2335 = vmatprep.subr.bf16.mxu0 0
          %2336 = vmatpush1.bf16.msra.mxu0 %v1489
          %2337 = vmatprep.subr.bf16.mxu0 0
          %2338 = vmatpush1.bf16.msra.mxu0 %v1488
          %2339 = vmatprep.subr.bf16.mxu0 0
          %2340 = vmatpush2.bf16.msra.mxu0 0
          %2341 = vmatprep.subr.bf16.mxu0 0
          %2342 = vmatpush2.bf16.msra.mxu0 0
          %2343 = vmatprep.subr.bf16.mxu0 0
          %2344 = vmatpush2.bf16.msra.mxu0 0
          %2345 = vmatprep.subr.bf16.mxu0 0
          %2346 = vmatpush2.bf16.msra.mxu0 0
          %2347 = vmatprep.subr.bf16.mxu0 0
          %2348 = vmatpush2.bf16.msra.mxu0 0
          %2349 = vmatprep.subr.bf16.mxu0 0
          %2350 = vmatpush2.bf16.msra.mxu0 0
          %2351 = vmatprep.subr.bf16.mxu0 0
          %2352 = vmatpush2.bf16.msra.mxu0 0
          %2353 = vmatprep.subr.bf16.mxu0 0
          %2354 = vmatpush2.bf16.msra.mxu0 0
          %2355 = vmatprep.mubr.bf16.mxu0 0
          %2356 = vmatmul.mubr.bf16.gmra.mxu0 %v2312
          %v2357 = vpop.f32.mrf.mxu0
          %v2358 = vadd.f32 0.0, %v2357
          %v2359 = vpop.f32.mrf.mxu0
          %v2360 = vpop.f32.mrf.mxu0
          %v2361 = vadd.f32 0.0, %v2360
          %v2362 = vpop.f32.mrf.mxu0
          %2363 = vmatprep.mubr.bf16.mxu0 0
          %2364 = vmatmul.mubr.bf16.gmra.mxu0 %v2315
          %v2365 = vpop.f32.mrf.mxu0
          %v2366 = vadd.f32 0.0, %v2365
          %v2367 = vpop.f32.mrf.mxu0
          %v2368 = vpop.f32.mrf.mxu0
          %v2369 = vadd.f32 0.0, %v2368
          %v2370 = vpop.f32.mrf.mxu0
          %2371 = vmatprep.mubr.bf16.mxu0 0
          %2372 = vmatmul.mubr.bf16.gmra.mxu0 %v2318
          %v2373 = vpop.f32.mrf.mxu0
          %v2374 = vadd.f32 0.0, %v2373
          %v2375 = vpop.f32.mrf.mxu0
          %v2376 = vpop.f32.mrf.mxu0
          %v2377 = vadd.f32 0.0, %v2376
          %v2378 = vpop.f32.mrf.mxu0
          %2379 = vmatprep.mubr.bf16.mxu0 0
          %2380 = vmatmul.mubr.bf16.gmra.mxu0 %v2321
          %v2381 = vpop.f32.mrf.mxu0
          %v2382 = vadd.f32 0.0, %v2381
          %v2383 = vpop.f32.mrf.mxu0
          %v2384 = vpop.f32.mrf.mxu0
          %v2385 = vadd.f32 0.0, %v2384
          %v2386 = vpop.f32.mrf.mxu0
          %2387 = vdwg.mxu0
          %v2389 = vsel %vm1496, %v2153, 0
          %v2392 = vsel %vm1496, %v2154, 0
          %v2395 = vsel %vm1496, %v2155, 0
          %v2398 = vsel %vm1496, %v2156, 0
          %2400 = vmatprep.subr.bf16.mxu0 0
          %2401 = vmatpush1.bf16.msra.mxu0 0
          %2402 = vmatprep.subr.bf16.mxu0 0
          %2403 = vmatpush1.bf16.msra.mxu0 0
          %2404 = vmatprep.subr.bf16.mxu0 0
          %2405 = vmatpush1.bf16.msra.mxu0 0
          %2406 = vmatprep.subr.bf16.mxu0 0
          %2407 = vmatpush1.bf16.msra.mxu0 0
          %2408 = vmatprep.subr.bf16.mxu0 0
          %2409 = vmatpush1.bf16.msra.mxu0 %v1495
          %2410 = vmatprep.subr.bf16.mxu0 0
          %2411 = vmatpush1.bf16.msra.mxu0 %v1494
          %2412 = vmatprep.subr.bf16.mxu0 0
          %2413 = vmatpush1.bf16.msra.mxu0 %v1493
          %2414 = vmatprep.subr.bf16.mxu0 0
          %2415 = vmatpush1.bf16.msra.mxu0 %v1492
          %2416 = vmatprep.subr.bf16.mxu0 0
          %2417 = vmatpush2.bf16.msra.mxu0 0
          %2418 = vmatprep.subr.bf16.mxu0 0
          %2419 = vmatpush2.bf16.msra.mxu0 0
          %2420 = vmatprep.subr.bf16.mxu0 0
          %2421 = vmatpush2.bf16.msra.mxu0 0
          %2422 = vmatprep.subr.bf16.mxu0 0
          %2423 = vmatpush2.bf16.msra.mxu0 0
          %2424 = vmatprep.subr.bf16.mxu0 0
          %2425 = vmatpush2.bf16.msra.mxu0 0
          %2426 = vmatprep.subr.bf16.mxu0 0
          %2427 = vmatpush2.bf16.msra.mxu0 0
          %2428 = vmatprep.subr.bf16.mxu0 0
          %2429 = vmatpush2.bf16.msra.mxu0 0
          %2430 = vmatprep.subr.bf16.mxu0 0
          %2431 = vmatpush2.bf16.msra.mxu0 0
          %2432 = vmatprep.mubr.bf16.mxu0 0
          %2433 = vmatmul.mubr.bf16.gmra.mxu0 %v2389
          %v2434 = vpop.f32.mrf.mxu0
          %v2435 = vadd.f32 0.0, %v2434
          %v2436 = vpop.f32.mrf.mxu0
          %v2437 = vpop.f32.mrf.mxu0
          %v2438 = vadd.f32 0.0, %v2437
          %v2439 = vpop.f32.mrf.mxu0
          %2440 = vmatprep.mubr.bf16.mxu0 0
          %2441 = vmatmul.mubr.bf16.gmra.mxu0 %v2392
          %v2442 = vpop.f32.mrf.mxu0
          %v2443 = vadd.f32 0.0, %v2442
          %v2444 = vpop.f32.mrf.mxu0
          %v2445 = vpop.f32.mrf.mxu0
          %v2446 = vadd.f32 0.0, %v2445
          %v2447 = vpop.f32.mrf.mxu0
          %2448 = vmatprep.mubr.bf16.mxu0 0
          %2449 = vmatmul.mubr.bf16.gmra.mxu0 %v2395
          %v2450 = vpop.f32.mrf.mxu0
          %v2451 = vadd.f32 0.0, %v2450
          %v2452 = vpop.f32.mrf.mxu0
          %v2453 = vpop.f32.mrf.mxu0
          %v2454 = vadd.f32 0.0, %v2453
          %v2455 = vpop.f32.mrf.mxu0
          %2456 = vmatprep.mubr.bf16.mxu0 0
          %2457 = vmatmul.mubr.bf16.gmra.mxu0 %v2398
          %v2458 = vpop.f32.mrf.mxu0
          %v2459 = vadd.f32 0.0, %v2458
          %v2460 = vpop.f32.mrf.mxu0
          %v2461 = vpop.f32.mrf.mxu0
          %v2462 = vadd.f32 0.0, %v2461
          %v2463 = vpop.f32.mrf.mxu0
          %2464 = vdwg.mxu0
          %v2465 = vrcp.pop %v2047
          %v2466 = vrcp.pop %v2050
          %v2467 = vrcp.pop %v2053
          %v2468 = vrcp.pop %v2056
          %v2469 = vrcp.pop %v2059
          %v2470 = vrcp.pop %v2062
          %v2471 = vrcp.pop %v2065
          %v2472 = vrcp.pop %v2068
          %v2473 = vrcp.pop %v2071
          %v2474 = vrcp.pop %v2074
          %v2475 = vrcp.pop %v2077
          %v2476 = vrcp.pop %v2080
          %v2477 = vrcp.pop %v2083
          %v2478 = vrcp.pop %v2086
          %v2479 = vrcp.pop %v2089
          %v2480 = vrcp.pop %v2092
          %v2481 = vrcp.pop %v2095
          %v2482 = vrcp.pop %v2098
          %v2483 = vrcp.pop %v2101
          %v2484 = vrcp.pop %v2104
          %v2485 = vrcp.pop %v2107
          %v2486 = vrcp.pop %v2110
          %v2487 = vrcp.pop %v2113
          %v2488 = vrcp.pop %v2116
          %v2489 = vrcp.pop %v2119
          %v2490 = vrcp.pop %v2122
          %v2491 = vrcp.pop %v2125
          %v2492 = vrcp.pop %v2128
          %v2493 = vrcp.pop %v2131
          %v2494 = vrcp.pop %v2134
          %v2495 = vrcp.pop %v2137
          %v2496 = vrcp.pop %v2140
          %v2497 = vmul.f32 %v2204, %v2465
          %v2498 = vmul.f32 %v2207, %v2466
          %v2499 = vmul.f32 %v2212, %v2467
          %v2500 = vmul.f32 %v2215, %v2468
          %v2501 = vmul.f32 %v2220, %v2469
          %v2502 = vmul.f32 %v2223, %v2470
          %v2503 = vmul.f32 %v2228, %v2471
          %v2504 = vmul.f32 %v2231, %v2472
          %v2505 = vmul.f32 %v2281, %v2473
          %v2506 = vmul.f32 %v2284, %v2474
          %v2507 = vmul.f32 %v2289, %v2475
          %v2508 = vmul.f32 %v2292, %v2476
          %v2509 = vmul.f32 %v2297, %v2477
          %v2510 = vmul.f32 %v2300, %v2478
          %v2511 = vmul.f32 %v2305, %v2479
          %v2512 = vmul.f32 %v2308, %v2480
          %v2513 = vmul.f32 %v2358, %v2481
          %v2514 = vmul.f32 %v2361, %v2482
          %v2515 = vmul.f32 %v2366, %v2483
          %v2516 = vmul.f32 %v2369, %v2484
          %v2517 = vmul.f32 %v2374, %v2485
          %v2518 = vmul.f32 %v2377, %v2486
          %v2519 = vmul.f32 %v2382, %v2487
          %v2520 = vmul.f32 %v2385, %v2488
          %v2521 = vmul.f32 %v2435, %v2489
          %v2522 = vmul.f32 %v2438, %v2490
          %v2523 = vmul.f32 %v2443, %v2491
          %v2524 = vmul.f32 %v2446, %v2492
          %v2525 = vmul.f32 %v2451, %v2493
          %v2526 = vmul.f32 %v2454, %v2494
          %v2527 = vmul.f32 %v2459, %v2495
          %v2528 = vmul.f32 %v2462, %v2496
          %2545 = vrot.lane.b32.xlu0 %v2513, 64
          %v2546 = vpop.permute.xlu0 %2545
          %2547 = vrot.lane.b32.xlu0 %v2514, 64
          %v2548 = vpop.permute.xlu0 %2547
          %2549 = vrot.lane.b32.xlu0 %v2515, 64
          %v2550 = vpop.permute.xlu0 %2549
          %2551 = vrot.lane.b32.xlu0 %v2516, 64
          %v2552 = vpop.permute.xlu0 %2551
          %2553 = vrot.lane.b32.xlu0 %v2517, 64
          %v2554 = vpop.permute.xlu0 %2553
          %2555 = vrot.lane.b32.xlu0 %v2518, 64
          %v2556 = vpop.permute.xlu0 %2555
          %2557 = vrot.lane.b32.xlu0 %v2519, 64
          %v2558 = vpop.permute.xlu0 %2557
          %2559 = vrot.lane.b32.xlu0 %v2520, 64
          %v2560 = vpop.permute.xlu0 %2559
          %2561 = vrot.lane.b32.xlu0 %v2521, 64
          %v2562 = vpop.permute.xlu0 %2561
          %2563 = vrot.lane.b32.xlu0 %v2522, 64
          %v2564 = vpop.permute.xlu0 %2563
          %2565 = vrot.lane.b32.xlu0 %v2523, 64
          %v2566 = vpop.permute.xlu0 %2565
          %2567 = vrot.lane.b32.xlu0 %v2524, 64
          %v2568 = vpop.permute.xlu0 %2567
          %2569 = vrot.lane.b32.xlu0 %v2525, 64
          %v2570 = vpop.permute.xlu0 %2569
          %2571 = vrot.lane.b32.xlu0 %v2526, 64
          %v2572 = vpop.permute.xlu0 %2571
          %2573 = vrot.lane.b32.xlu0 %v2527, 64
          %v2574 = vpop.permute.xlu0 %2573
          %2575 = vrot.lane.b32.xlu0 %v2528, 64
          %v2576 = vpop.permute.xlu0 %2575
          %v2593 = vsel %vm1496, %v2497, %v2546
          %v2594 = vsel %vm1496, %v2498, %v2548
          %v2595 = vsel %vm1496, %v2499, %v2550
          %v2596 = vsel %vm1496, %v2500, %v2552
          %v2597 = vsel %vm1496, %v2501, %v2554
          %v2598 = vsel %vm1496, %v2502, %v2556
          %v2599 = vsel %vm1496, %v2503, %v2558
          %v2600 = vsel %vm1496, %v2504, %v2560
          %v2601 = vsel %vm1496, %v2505, %v2562
          %v2602 = vsel %vm1496, %v2506, %v2564
          %v2603 = vsel %vm1496, %v2507, %v2566
          %v2604 = vsel %vm1496, %v2508, %v2568
          %v2605 = vsel %vm1496, %v2509, %v2570
          %v2606 = vsel %vm1496, %v2510, %v2572
          %v2607 = vsel %vm1496, %v2511, %v2574
          %v2608 = vsel %vm1496, %v2512, %v2576
          %v2609 = vpack.c.bf16 %v2594, %v2593
          %v2610 = vpack.c.bf16 %v2596, %v2595
          %v2611 = vpack.c.bf16 %v2598, %v2597
          %v2612 = vpack.c.bf16 %v2600, %v2599
          %v2613 = vpack.c.bf16 %v2602, %v2601
          %v2614 = vpack.c.bf16 %v2604, %v2603
          %v2615 = vpack.c.bf16 %v2606, %v2605
          %v2616 = vpack.c.bf16 %v2608, %v2607
          %v2617 = vld [vmem:[%s4] sm:$0xf]
          %v2618 = vld [vmem:[%s4 + $0x4] sm:$0xf]
          %v2619 = vld [vmem:[%s4 + $0x8] sm:$0xf]
          %v2620 = vld [vmem:[%s4 + $0xc] sm:$0xf]
          %v2621 = vld [vmem:[%s4 + $0x10] sm:$0xf]
          %v2622 = vld [vmem:[%s4 + $0x14] sm:$0xf]
          %v2623 = vld [vmem:[%s4 + $0x18] sm:$0xf]
          %v2624 = vld [vmem:[%s4 + $0x1c] sm:$0xf]
          %v2625 = vld [vmem:[%s4 + $0x20] sm:$0xf]
          %v2626 = vld [vmem:[%s4 + $0x24] sm:$0xf]
          %v2627 = vld [vmem:[%s4 + $0x28] sm:$0xf]
          %v2628 = vld [vmem:[%s4 + $0x2c] sm:$0xf]
          %v2629 = vld [vmem:[%s4 + $0x30] sm:$0xf]
          %v2630 = vld [vmem:[%s4 + $0x34] sm:$0xf]
          %v2631 = vld [vmem:[%s4 + $0x38] sm:$0xf]
          %v2632 = vld [vmem:[%s4 + $0x3c] sm:$0xf]
          %v2633 = vld [vmem:[%s5] sm:$0x1]
          %v2635 = vlaneseq
          %v2636 = vshrl.u32 %v2635, 7
          %v2637 = vsub.s32 0, %v2636
          %v2638 = vrot.slane %v2633, %v2637
          %v2656 = vunpack.c.l.b16 %v2617
          %v2657 = vunpack.c.l.b16 %v2618
          %v2658 = vunpack.c.l.b16 %v2619
          %v2659 = vunpack.c.l.b16 %v2620
          %v2660 = vunpack.c.l.b16 %v2621
          %v2661 = vunpack.c.l.b16 %v2622
          %v2662 = vunpack.c.l.b16 %v2623
          %v2663 = vunpack.c.l.b16 %v2624
          %v2664 = vunpack.c.l.b16 %v2625
          %v2665 = vunpack.c.l.b16 %v2626
          %v2666 = vunpack.c.l.b16 %v2627
          %v2667 = vunpack.c.l.b16 %v2628
          %v2668 = vunpack.c.l.b16 %v2629
          %v2669 = vunpack.c.l.b16 %v2630
          %v2670 = vunpack.c.l.b16 %v2631
          %v2671 = vunpack.c.l.b16 %v2632
          %v2672 = vpack.c.b16 %v2657, %v2656
          %v2673 = vpack.c.b16 %v2659, %v2658
          %v2674 = vpack.c.b16 %v2661, %v2660
          %v2675 = vpack.c.b16 %v2663, %v2662
          %v2676 = vpack.c.b16 %v2665, %v2664
          %v2677 = vpack.c.b16 %v2667, %v2666
          %v2678 = vpack.c.b16 %v2669, %v2668
          %v2679 = vpack.c.b16 %v2671, %v2670
          %2688 = vmatprep.subr.bf16.mxu0 0
          %2689 = vmatpush1.bf16.msra.mxu0 %v2679
          %2690 = vmatprep.subr.bf16.mxu0 0
          %2691 = vmatpush1.bf16.msra.mxu0 %v2678
          %2692 = vmatprep.subr.bf16.mxu0 0
          %2693 = vmatpush1.bf16.msra.mxu0 %v2677
          %2694 = vmatprep.subr.bf16.mxu0 0
          %2695 = vmatpush1.bf16.msra.mxu0 %v2676
          %2696 = vmatprep.subr.bf16.mxu0 0
          %2697 = vmatpush1.bf16.msra.mxu0 %v2675
          %2698 = vmatprep.subr.bf16.mxu0 0
          %2699 = vmatpush1.bf16.msra.mxu0 %v2674
          %2700 = vmatprep.subr.bf16.mxu0 0
          %2701 = vmatpush1.bf16.msra.mxu0 %v2673
          %2702 = vmatprep.subr.bf16.mxu0 0
          %2703 = vmatpush1.bf16.msra.mxu0 %v2672
          %2704 = vmatprep.subr.bf16.mxu0 0
          %2705 = vmatpush2.bf16.msra.mxu0 0
          %2706 = vmatprep.subr.bf16.mxu0 0
          %2707 = vmatpush2.bf16.msra.mxu0 0
          %2708 = vmatprep.subr.bf16.mxu0 0
          %2709 = vmatpush2.bf16.msra.mxu0 0
          %2710 = vmatprep.subr.bf16.mxu0 0
          %2711 = vmatpush2.bf16.msra.mxu0 0
          %2712 = vmatprep.subr.bf16.mxu0 0
          %2713 = vmatpush2.bf16.msra.mxu0 0
          %2714 = vmatprep.subr.bf16.mxu0 0
          %2715 = vmatpush2.bf16.msra.mxu0 0
          %2716 = vmatprep.subr.bf16.mxu0 0
          %2717 = vmatpush2.bf16.msra.mxu0 0
          %2718 = vmatprep.subr.bf16.mxu0 0
          %2719 = vmatpush2.bf16.msra.mxu0 0
          %2720 = vmatprep.mubr.bf16.mxu0 0
          %2721 = vmatmul.mubr.bf16.gmra.mxu0 %v2609
          %v2722 = vpop.f32.mrf.mxu0
          %v2723 = vadd.f32 %v2638, %v2722
          %v2724 = vpop.f32.mrf.mxu0
          %v2725 = vpop.f32.mrf.mxu0
          %v2726 = vadd.f32 %v2638, %v2725
          %v2727 = vpop.f32.mrf.mxu0
          %2728 = vmatprep.mubr.bf16.mxu0 0
          %2729 = vmatmul.mubr.bf16.gmra.mxu0 %v2610
          %v2730 = vpop.f32.mrf.mxu0
          %v2731 = vadd.f32 %v2638, %v2730
          %v2732 = vpop.f32.mrf.mxu0
          %v2733 = vpop.f32.mrf.mxu0
          %v2734 = vadd.f32 %v2638, %v2733
          %v2735 = vpop.f32.mrf.mxu0
          %2736 = vmatprep.mubr.bf16.mxu0 0
          %2737 = vmatmul.mubr.bf16.gmra.mxu0 %v2611
          %v2738 = vpop.f32.mrf.mxu0
          %v2739 = vadd.f32 %v2638, %v2738
          %v2740 = vpop.f32.mrf.mxu0
          %v2741 = vpop.f32.mrf.mxu0
          %v2742 = vadd.f32 %v2638, %v2741
          %v2743 = vpop.f32.mrf.mxu0
          %2744 = vmatprep.mubr.bf16.mxu0 0
          %2745 = vmatmul.mubr.bf16.gmra.mxu0 %v2612
          %v2746 = vpop.f32.mrf.mxu0
          %v2747 = vadd.f32 %v2638, %v2746
          %v2748 = vpop.f32.mrf.mxu0
          %v2749 = vpop.f32.mrf.mxu0
          %v2750 = vadd.f32 %v2638, %v2749
          %v2751 = vpop.f32.mrf.mxu0
          %2752 = vmatprep.mubr.bf16.mxu0 0
          %2753 = vmatmul.mubr.bf16.gmra.mxu0 %v2613
          %v2754 = vpop.f32.mrf.mxu0
          %v2755 = vadd.f32 %v2638, %v2754
          %v2756 = vpop.f32.mrf.mxu0
          %v2757 = vpop.f32.mrf.mxu0
          %v2758 = vadd.f32 %v2638, %v2757
          %v2759 = vpop.f32.mrf.mxu0
          %2760 = vmatprep.mubr.bf16.mxu0 0
          %2761 = vmatmul.mubr.bf16.gmra.mxu0 %v2614
          %v2762 = vpop.f32.mrf.mxu0
          %v2763 = vadd.f32 %v2638, %v2762
          %v2764 = vpop.f32.mrf.mxu0
          %v2765 = vpop.f32.mrf.mxu0
          %v2766 = vadd.f32 %v2638, %v2765
          %v2767 = vpop.f32.mrf.mxu0
          %2768 = vmatprep.mubr.bf16.mxu0 0
          %2769 = vmatmul.mubr.bf16.gmra.mxu0 %v2615
          %v2770 = vpop.f32.mrf.mxu0
          %v2771 = vadd.f32 %v2638, %v2770
          %v2772 = vpop.f32.mrf.mxu0
          %v2773 = vpop.f32.mrf.mxu0
          %v2774 = vadd.f32 %v2638, %v2773
          %v2775 = vpop.f32.mrf.mxu0
          %2776 = vmatprep.mubr.bf16.mxu0 0
          %2777 = vmatmul.mubr.bf16.gmra.mxu0 %v2616
          %v2778 = vpop.f32.mrf.mxu0
          %v2779 = vadd.f32 %v2638, %v2778
          %v2780 = vpop.f32.mrf.mxu0
          %v2781 = vpop.f32.mrf.mxu0
          %v2782 = vadd.f32 %v2638, %v2781
          %v2783 = vpop.f32.mrf.mxu0
          %2784 = vdwg.mxu0
          %v2785 = vadd.f32 %v799, %v2723
          %v2786 = vadd.f32 %v802, %v2726
          %v2787 = vadd.f32 %v807, %v2731
          %v2788 = vadd.f32 %v810, %v2734
          %v2789 = vadd.f32 %v815, %v2739
          %v2790 = vadd.f32 %v818, %v2742
          %v2791 = vadd.f32 %v823, %v2747
          %v2792 = vadd.f32 %v826, %v2750
          %v2793 = vadd.f32 %v831, %v2755
          %v2794 = vadd.f32 %v834, %v2758
          %v2795 = vadd.f32 %v839, %v2763
          %v2796 = vadd.f32 %v842, %v2766
          %v2797 = vadd.f32 %v847, %v2771
          %v2798 = vadd.f32 %v850, %v2774
          %v2799 = vadd.f32 %v855, %v2779
          %v2800 = vadd.f32 %v858, %v2782
          %v2801 = vld [vmem:[%s6] sm:$0x1]
          %v2802 = vld [vmem:[%s7] sm:$0x1]
          %2803 = vadd.xlane.f32.xlu0 %v2785
          %v2804 = vpop.xlane.xlu0 %2803
          %2805 = vadd.xlane.f32.xlu0 %v2786
          %v2806 = vpop.xlane.xlu0 %2805
          %2807 = vadd.xlane.f32.xlu0 %v2787
          %v2808 = vpop.xlane.xlu0 %2807
          %2809 = vadd.xlane.f32.xlu0 %v2788
          %v2810 = vpop.xlane.xlu0 %2809
          %2811 = vadd.xlane.f32.xlu0 %v2789
          %v2812 = vpop.xlane.xlu0 %2811
          %2813 = vadd.xlane.f32.xlu0 %v2790
          %v2814 = vpop.xlane.xlu0 %2813
          %2815 = vadd.xlane.f32.xlu0 %v2791
          %v2816 = vpop.xlane.xlu0 %2815
          %2817 = vadd.xlane.f32.xlu0 %v2792
          %v2818 = vpop.xlane.xlu0 %2817
          %2819 = vadd.xlane.f32.xlu0 %v2793
          %v2820 = vpop.xlane.xlu0 %2819
          %2821 = vadd.xlane.f32.xlu0 %v2794
          %v2822 = vpop.xlane.xlu0 %2821
          %2823 = vadd.xlane.f32.xlu0 %v2795
          %v2824 = vpop.xlane.xlu0 %2823
          %2825 = vadd.xlane.f32.xlu0 %v2796
          %v2826 = vpop.xlane.xlu0 %2825
          %2827 = vadd.xlane.f32.xlu0 %v2797
          %v2828 = vpop.xlane.xlu0 %2827
          %2829 = vadd.xlane.f32.xlu0 %v2798
          %v2830 = vpop.xlane.xlu0 %2829
          %2831 = vadd.xlane.f32.xlu0 %v2799
          %v2832 = vpop.xlane.xlu0 %2831
          %2833 = vadd.xlane.f32.xlu0 %v2800
          %v2834 = vpop.xlane.xlu0 %2833
          %v2835 = vmul.f32 %v2804, 0.0078125
          %v2836 = vmul.f32 %v2806, 0.0078125
          %v2837 = vmul.f32 %v2808, 0.0078125
          %v2838 = vmul.f32 %v2810, 0.0078125
          %v2839 = vmul.f32 %v2812, 0.0078125
          %v2840 = vmul.f32 %v2814, 0.0078125
          %v2841 = vmul.f32 %v2816, 0.0078125
          %v2842 = vmul.f32 %v2818, 0.0078125
          %v2843 = vmul.f32 %v2820, 0.0078125
          %v2844 = vmul.f32 %v2822, 0.0078125
          %v2845 = vmul.f32 %v2824, 0.0078125
          %v2846 = vmul.f32 %v2826, 0.0078125
          %v2847 = vmul.f32 %v2828, 0.0078125
          %v2848 = vmul.f32 %v2830, 0.0078125
          %v2849 = vmul.f32 %v2832, 0.0078125
          %v2850 = vmul.f32 %v2834, 0.0078125
          %v2851 = vmul.f32 %v2785, %v2785
          %v2852 = vmul.f32 %v2786, %v2786
          %v2853 = vmul.f32 %v2787, %v2787
          %v2854 = vmul.f32 %v2788, %v2788
          %v2855 = vmul.f32 %v2789, %v2789
          %v2856 = vmul.f32 %v2790, %v2790
          %v2857 = vmul.f32 %v2791, %v2791
          %v2858 = vmul.f32 %v2792, %v2792
          %v2859 = vmul.f32 %v2793, %v2793
          %v2860 = vmul.f32 %v2794, %v2794
          %v2861 = vmul.f32 %v2795, %v2795
          %v2862 = vmul.f32 %v2796, %v2796
          %v2863 = vmul.f32 %v2797, %v2797
          %v2864 = vmul.f32 %v2798, %v2798
          %v2865 = vmul.f32 %v2799, %v2799
          %v2866 = vmul.f32 %v2800, %v2800
          %2867 = vadd.xlane.f32.xlu0 %v2851
          %v2868 = vpop.xlane.xlu0 %2867
          %2869 = vadd.xlane.f32.xlu0 %v2852
          %v2870 = vpop.xlane.xlu0 %2869
          %2871 = vadd.xlane.f32.xlu0 %v2853
          %v2872 = vpop.xlane.xlu0 %2871
          %2873 = vadd.xlane.f32.xlu0 %v2854
          %v2874 = vpop.xlane.xlu0 %2873
          %2875 = vadd.xlane.f32.xlu0 %v2855
          %v2876 = vpop.xlane.xlu0 %2875
          %2877 = vadd.xlane.f32.xlu0 %v2856
          %v2878 = vpop.xlane.xlu0 %2877
          %2879 = vadd.xlane.f32.xlu0 %v2857
          %v2880 = vpop.xlane.xlu0 %2879
          %2881 = vadd.xlane.f32.xlu0 %v2858
          %v2882 = vpop.xlane.xlu0 %2881
          %2883 = vadd.xlane.f32.xlu0 %v2859
          %v2884 = vpop.xlane.xlu0 %2883
          %2885 = vadd.xlane.f32.xlu0 %v2860
          %v2886 = vpop.xlane.xlu0 %2885
          %2887 = vadd.xlane.f32.xlu0 %v2861
          %v2888 = vpop.xlane.xlu0 %2887
          %2889 = vadd.xlane.f32.xlu0 %v2862
          %v2890 = vpop.xlane.xlu0 %2889
          %2891 = vadd.xlane.f32.xlu0 %v2863
          %v2892 = vpop.xlane.xlu0 %2891
          %2893 = vadd.xlane.f32.xlu0 %v2864
          %v2894 = vpop.xlane.xlu0 %2893
          %2895 = vadd.xlane.f32.xlu0 %v2865
          %v2896 = vpop.xlane.xlu0 %2895
          %2897 = vadd.xlane.f32.xlu0 %v2866
          %v2898 = vpop.xlane.xlu0 %2897
          %v2899 = vmul.f32 %v2868, 0.0078125
          %v2900 = vmul.f32 %v2870, 0.0078125
          %v2901 = vmul.f32 %v2872, 0.0078125
          %v2902 = vmul.f32 %v2874, 0.0078125
          %v2903 = vmul.f32 %v2876, 0.0078125
          %v2904 = vmul.f32 %v2878, 0.0078125
          %v2905 = vmul.f32 %v2880, 0.0078125
          %v2906 = vmul.f32 %v2882, 0.0078125
          %v2907 = vmul.f32 %v2884, 0.0078125
          %v2908 = vmul.f32 %v2886, 0.0078125
          %v2909 = vmul.f32 %v2888, 0.0078125
          %v2910 = vmul.f32 %v2890, 0.0078125
          %v2911 = vmul.f32 %v2892, 0.0078125
          %v2912 = vmul.f32 %v2894, 0.0078125
          %v2913 = vmul.f32 %v2896, 0.0078125
          %v2914 = vmul.f32 %v2898, 0.0078125
          %v2915 = vmul.f32 %v2835, %v2835
          %v2916 = vmul.f32 %v2836, %v2836
          %v2917 = vmul.f32 %v2837, %v2837
          %v2918 = vmul.f32 %v2838, %v2838
          %v2919 = vmul.f32 %v2839, %v2839
          %v2920 = vmul.f32 %v2840, %v2840
          %v2921 = vmul.f32 %v2841, %v2841
          %v2922 = vmul.f32 %v2842, %v2842
          %v2923 = vmul.f32 %v2843, %v2843
          %v2924 = vmul.f32 %v2844, %v2844
          %v2925 = vmul.f32 %v2845, %v2845
          %v2926 = vmul.f32 %v2846, %v2846
          %v2927 = vmul.f32 %v2847, %v2847
          %v2928 = vmul.f32 %v2848, %v2848
          %v2929 = vmul.f32 %v2849, %v2849
          %v2930 = vmul.f32 %v2850, %v2850
          %v2931 = vsub.f32 %v2899, %v2915
          %v2932 = vsub.f32 %v2900, %v2916
          %v2933 = vsub.f32 %v2901, %v2917
          %v2934 = vsub.f32 %v2902, %v2918
          %v2935 = vsub.f32 %v2903, %v2919
          %v2936 = vsub.f32 %v2904, %v2920
          %v2937 = vsub.f32 %v2905, %v2921
          %v2938 = vsub.f32 %v2906, %v2922
          %v2939 = vsub.f32 %v2907, %v2923
          %v2940 = vsub.f32 %v2908, %v2924
          %v2941 = vsub.f32 %v2909, %v2925
          %v2942 = vsub.f32 %v2910, %v2926
          %v2943 = vsub.f32 %v2911, %v2927
          %v2944 = vsub.f32 %v2912, %v2928
          %v2945 = vsub.f32 %v2913, %v2929
          %v2946 = vsub.f32 %v2914, %v2930
          %v2947 = vmax.f32 %v2931, 0.0
          %v2948 = vmax.f32 %v2932, 0.0
          %v2949 = vmax.f32 %v2933, 0.0
          %v2950 = vmax.f32 %v2934, 0.0
          %v2951 = vmax.f32 %v2935, 0.0
          %v2952 = vmax.f32 %v2936, 0.0
          %v2953 = vmax.f32 %v2937, 0.0
          %v2954 = vmax.f32 %v2938, 0.0
          %v2955 = vmax.f32 %v2939, 0.0
          %v2956 = vmax.f32 %v2940, 0.0
          %v2957 = vmax.f32 %v2941, 0.0
          %v2958 = vmax.f32 %v2942, 0.0
          %v2959 = vmax.f32 %v2943, 0.0
          %v2960 = vmax.f32 %v2944, 0.0
          %v2961 = vmax.f32 %v2945, 0.0
          %v2962 = vmax.f32 %v2946, 0.0
          %v2963 = vsub.f32 %v2785, %v2835
          %v2964 = vsub.f32 %v2786, %v2836
          %v2965 = vsub.f32 %v2787, %v2837
          %v2966 = vsub.f32 %v2788, %v2838
          %v2967 = vsub.f32 %v2789, %v2839
          %v2968 = vsub.f32 %v2790, %v2840
          %v2969 = vsub.f32 %v2791, %v2841
          %v2970 = vsub.f32 %v2792, %v2842
          %v2971 = vsub.f32 %v2793, %v2843
          %v2972 = vsub.f32 %v2794, %v2844
          %v2973 = vsub.f32 %v2795, %v2845
          %v2974 = vsub.f32 %v2796, %v2846
          %v2975 = vsub.f32 %v2797, %v2847
          %v2976 = vsub.f32 %v2798, %v2848
          %v2977 = vsub.f32 %v2799, %v2849
          %v2978 = vsub.f32 %v2800, %v2850
          %v2979 = vadd.f32 %v2947, 1e-05
          %v2980 = vadd.f32 %v2948, 1e-05
          %v2981 = vadd.f32 %v2949, 1e-05
          %v2982 = vadd.f32 %v2950, 1e-05
          %v2983 = vadd.f32 %v2951, 1e-05
          %v2984 = vadd.f32 %v2952, 1e-05
          %v2985 = vadd.f32 %v2953, 1e-05
          %v2986 = vadd.f32 %v2954, 1e-05
          %v2987 = vadd.f32 %v2955, 1e-05
          %v2988 = vadd.f32 %v2956, 1e-05
          %v2989 = vadd.f32 %v2957, 1e-05
          %v2990 = vadd.f32 %v2958, 1e-05
          %v2991 = vadd.f32 %v2959, 1e-05
          %v2992 = vadd.f32 %v2960, 1e-05
          %v2993 = vadd.f32 %v2961, 1e-05
          %v2994 = vadd.f32 %v2962, 1e-05
          %v2995 = vrsqrt.pop %v2979
          %v2996 = vrsqrt.pop %v2980
          %v2997 = vrsqrt.pop %v2981
          %v2998 = vrsqrt.pop %v2982
          %v2999 = vrsqrt.pop %v2983
          %v3000 = vrsqrt.pop %v2984
          %v3001 = vrsqrt.pop %v2985
          %v3002 = vrsqrt.pop %v2986
          %v3003 = vrsqrt.pop %v2987
          %v3004 = vrsqrt.pop %v2988
          %v3005 = vrsqrt.pop %v2989
          %v3006 = vrsqrt.pop %v2990
          %v3007 = vrsqrt.pop %v2991
          %v3008 = vrsqrt.pop %v2992
          %v3009 = vrsqrt.pop %v2993
          %v3010 = vrsqrt.pop %v2994
          %v3011 = vmul.f32 %v2963, %v2995
          %v3012 = vmul.f32 %v2964, %v2996
          %v3013 = vmul.f32 %v2965, %v2997
          %v3014 = vmul.f32 %v2966, %v2998
          %v3015 = vmul.f32 %v2967, %v2999
          %v3016 = vmul.f32 %v2968, %v3000
          %v3017 = vmul.f32 %v2969, %v3001
          %v3018 = vmul.f32 %v2970, %v3002
          %v3019 = vmul.f32 %v2971, %v3003
          %v3020 = vmul.f32 %v2972, %v3004
          %v3021 = vmul.f32 %v2973, %v3005
          %v3022 = vmul.f32 %v2974, %v3006
          %v3023 = vmul.f32 %v2975, %v3007
          %v3024 = vmul.f32 %v2976, %v3008
          %v3025 = vmul.f32 %v2977, %v3009
          %v3026 = vmul.f32 %v2978, %v3010
          %v3028 = vlaneseq
          %v3029 = vshrl.u32 %v3028, 7
          %v3030 = vsub.s32 0, %v3029
          %v3031 = vrot.slane %v2801, %v3030
          %v3033 = vmul.f32 %v3011, %v3031
          %v3034 = vmul.f32 %v3012, %v3031
          %v3035 = vmul.f32 %v3013, %v3031
          %v3036 = vmul.f32 %v3014, %v3031
          %v3037 = vmul.f32 %v3015, %v3031
          %v3038 = vmul.f32 %v3016, %v3031
          %v3039 = vmul.f32 %v3017, %v3031
          %v3040 = vmul.f32 %v3018, %v3031
          %v3041 = vmul.f32 %v3019, %v3031
          %v3042 = vmul.f32 %v3020, %v3031
          %v3043 = vmul.f32 %v3021, %v3031
          %v3044 = vmul.f32 %v3022, %v3031
          %v3045 = vmul.f32 %v3023, %v3031
          %v3046 = vmul.f32 %v3024, %v3031
          %v3047 = vmul.f32 %v3025, %v3031
          %v3048 = vmul.f32 %v3026, %v3031
          %v3050 = vlaneseq
          %v3051 = vshrl.u32 %v3050, 7
          %v3052 = vsub.s32 0, %v3051
          %v3053 = vrot.slane %v2802, %v3052
          %v3055 = vadd.f32 %v3033, %v3053
          %v3056 = vadd.f32 %v3034, %v3053
          %v3057 = vadd.f32 %v3035, %v3053
          %v3058 = vadd.f32 %v3036, %v3053
          %v3059 = vadd.f32 %v3037, %v3053
          %v3060 = vadd.f32 %v3038, %v3053
          %v3061 = vadd.f32 %v3039, %v3053
          %v3062 = vadd.f32 %v3040, %v3053
          %v3063 = vadd.f32 %v3041, %v3053
          %v3064 = vadd.f32 %v3042, %v3053
          %v3065 = vadd.f32 %v3043, %v3053
          %v3066 = vadd.f32 %v3044, %v3053
          %v3067 = vadd.f32 %v3045, %v3053
          %v3068 = vadd.f32 %v3046, %v3053
          %v3069 = vadd.f32 %v3047, %v3053
          %v3070 = vadd.f32 %v3048, %v3053
          %3071 = vst [vmem:[#allocation2] sm:$0xff] %v3055
          %3072 = vst [vmem:[#allocation2 + $0x8] sm:$0xff] %v3056
          %3073 = vst [vmem:[#allocation2 + $0x10] sm:$0xff] %v3057
          %3074 = vst [vmem:[#allocation2 + $0x18] sm:$0xff] %v3058
          %3075 = vst [vmem:[#allocation2 + $0x20] sm:$0xff] %v3059
          %3076 = vst [vmem:[#allocation2 + $0x28] sm:$0xff] %v3060
          %3077 = vst [vmem:[#allocation2 + $0x30] sm:$0xff] %v3061
          %3078 = vst [vmem:[#allocation2 + $0x38] sm:$0xff] %v3062
          %3079 = vst [vmem:[#allocation2 + $0x40] sm:$0xff] %v3063
          %3080 = vst [vmem:[#allocation2 + $0x48] sm:$0xff] %v3064
          %3081 = vst [vmem:[#allocation2 + $0x50] sm:$0xff] %v3065
          %3082 = vst [vmem:[#allocation2 + $0x58] sm:$0xff] %v3066
          %3083 = vst [vmem:[#allocation2 + $0x60] sm:$0xff] %v3067
          %3084 = vst [vmem:[#allocation2 + $0x68] sm:$0xff] %v3068
          %3085 = vst [vmem:[#allocation2 + $0x70] sm:$0xff] %v3069
          %3086 = vst [vmem:[#allocation2 + $0x78] sm:$0xff] %v3070
          %3087 = vst [vmem:[#allocation3] sm:$0xff] 0.0
          %3088 = vst [vmem:[#allocation3 + $0x8] sm:$0xff] 0.0
          %3089 = vst [vmem:[#allocation3 + $0x10] sm:$0xff] 0.0
          %3090 = vst [vmem:[#allocation3 + $0x18] sm:$0xff] 0.0
          %3091 = vst [vmem:[#allocation3 + $0x20] sm:$0xff] 0.0
          %3092 = vst [vmem:[#allocation3 + $0x28] sm:$0xff] 0.0
          %3093 = vst [vmem:[#allocation3 + $0x30] sm:$0xff] 0.0
          %3094 = vst [vmem:[#allocation3 + $0x38] sm:$0xff] 0.0
          %3095 = vst [vmem:[#allocation3 + $0x40] sm:$0xff] 0.0
          %3096 = vst [vmem:[#allocation3 + $0x48] sm:$0xff] 0.0
          %3097 = vst [vmem:[#allocation3 + $0x50] sm:$0xff] 0.0
          %3098 = vst [vmem:[#allocation3 + $0x58] sm:$0xff] 0.0
          %3099 = vst [vmem:[#allocation3 + $0x60] sm:$0xff] 0.0
          %3100 = vst [vmem:[#allocation3 + $0x68] sm:$0xff] 0.0
          %3101 = vst [vmem:[#allocation3 + $0x70] sm:$0xff] 0.0
          %3102 = vst [vmem:[#allocation3 + $0x78] sm:$0xff] 0.0
        $region111: #{mobilevit_block.1} parent=102 // pred_fallthru
          _
        %v3103 = vld [vmem:[#allocation2] sm:$0xff]
        %v3104 = vld [vmem:[#allocation2 + $0x8] sm:$0xff]
        %v3105 = vld [vmem:[#allocation2 + $0x10] sm:$0xff]
        %v3106 = vld [vmem:[#allocation2 + $0x18] sm:$0xff]
        %v3107 = vld [vmem:[#allocation2 + $0x20] sm:$0xff]
        %v3108 = vld [vmem:[#allocation2 + $0x28] sm:$0xff]
        %v3109 = vld [vmem:[#allocation2 + $0x30] sm:$0xff]
        %v3110 = vld [vmem:[#allocation2 + $0x38] sm:$0xff]
        %v3111 = vld [vmem:[#allocation2 + $0x40] sm:$0xff]
        %v3112 = vld [vmem:[#allocation2 + $0x48] sm:$0xff]
        %v3113 = vld [vmem:[#allocation2 + $0x50] sm:$0xff]
        %v3114 = vld [vmem:[#allocation2 + $0x58] sm:$0xff]
        %v3115 = vld [vmem:[#allocation2 + $0x60] sm:$0xff]
        %v3116 = vld [vmem:[#allocation2 + $0x68] sm:$0xff]
        %v3117 = vld [vmem:[#allocation2 + $0x70] sm:$0xff]
        %v3118 = vld [vmem:[#allocation2 + $0x78] sm:$0xff]
        %v3119 = vpack.c.bf16 %v3104, %v3103
        %v3120 = vpack.c.bf16 %v3106, %v3105
        %v3121 = vpack.c.bf16 %v3108, %v3107
        %v3122 = vpack.c.bf16 %v3110, %v3109
        %v3123 = vpack.c.bf16 %v3112, %v3111
        %v3124 = vpack.c.bf16 %v3114, %v3113
        %v3125 = vpack.c.bf16 %v3116, %v3115
        %v3126 = vpack.c.bf16 %v3118, %v3117
        %v3127 = vld [vmem:[%s568] sm:$0xff]
        %v3128 = vld [vmem:[%s568 + $0x8] sm:$0xff]
        %v3129 = vld [vmem:[%s568 + $0x10] sm:$0xff]
        %v3130 = vld [vmem:[%s568 + $0x18] sm:$0xff]
        %v3131 = vld [vmem:[%s568 + $0x20] sm:$0xff]
        %v3132 = vld [vmem:[%s568 + $0x28] sm:$0xff]
        %v3133 = vld [vmem:[%s568 + $0x30] sm:$0xff]
        %v3134 = vld [vmem:[%s568 + $0x38] sm:$0xff]
        %v3135 = vld [vmem:[%s568 + $0x40] sm:$0xff]
        %v3136 = vld [vmem:[%s568 + $0x48] sm:$0xff]
        %v3137 = vld [vmem:[%s568 + $0x50] sm:$0xff]
        %v3138 = vld [vmem:[%s568 + $0x58] sm:$0xff]
        %v3139 = vld [vmem:[%s568 + $0x60] sm:$0xff]
        %v3140 = vld [vmem:[%s568 + $0x68] sm:$0xff]
        %v3141 = vld [vmem:[%s568 + $0x70] sm:$0xff]
        %v3142 = vld [vmem:[%s568 + $0x78] sm:$0xff]
        %v3143 = vld [vmem:[%s568 + $0x80] sm:$0xff]
        %v3144 = vld [vmem:[%s568 + $0x88] sm:$0xff]
        %v3145 = vld [vmem:[%s568 + $0x90] sm:$0xff]
        %v3146 = vld [vmem:[%s568 + $0x98] sm:$0xff]
        %v3147 = vld [vmem:[%s568 + $0xa0] sm:$0xff]
        %v3148 = vld [vmem:[%s568 + $0xa8] sm:$0xff]
        %v3149 = vld [vmem:[%s568 + $0xb0] sm:$0xff]
        %v3150 = vld [vmem:[%s568 + $0xb8] sm:$0xff]
        %v3151 = vld [vmem:[%s568 + $0xc0] sm:$0xff]
        %v3152 = vld [vmem:[%s568 + $0xc8] sm:$0xff]
        %v3153 = vld [vmem:[%s568 + $0xd0] sm:$0xff]
        %v3154 = vld [vmem:[%s568 + $0xd8] sm:$0xff]
        %v3155 = vld [vmem:[%s568 + $0xe0] sm:$0xff]
        %v3156 = vld [vmem:[%s568 + $0xe8] sm:$0xff]
        %v3157 = vld [vmem:[%s568 + $0xf0] sm:$0xff]
        %v3158 = vld [vmem:[%s568 + $0xf8] sm:$0xff]
        %v3159 = vld [vmem:[%s623] sm:$0xf]
        %v3161 = vlaneseq
        %v3162 = vshrl.u32 %v3161, 7
        %v3163 = vsub.s32 0, %v3162
        %v3164 = vrot.slane %v3159, %v3163
        %v3165 = vlaneseq
        %v3166 = vshrl.u32 %v3165, 7
        %v3167 = vsub.s32 1, %v3166
        %v3168 = vrot.slane %v3159, %v3167
        %v3169 = vlaneseq
        %v3170 = vshrl.u32 %v3169, 7
        %v3171 = vsub.s32 2, %v3170
        %v3172 = vrot.slane %v3159, %v3171
        %v3173 = vlaneseq
        %v3174 = vshrl.u32 %v3173, 7
        %v3175 = vsub.s32 3, %v3174
        %v3176 = vrot.slane %v3159, %v3175
        %v3213 = vunpack.c.l.b16 %v3127
        %v3214 = vunpack.c.h.b16 %v3127
        %v3215 = vunpack.c.l.b16 %v3128
        %v3216 = vunpack.c.h.b16 %v3128
        %v3217 = vunpack.c.l.b16 %v3129
        %v3218 = vunpack.c.h.b16 %v3129
        %v3219 = vunpack.c.l.b16 %v3130
        %v3220 = vunpack.c.h.b16 %v3130
        %v3221 = vunpack.c.l.b16 %v3131
        %v3222 = vunpack.c.h.b16 %v3131
        %v3223 = vunpack.c.l.b16 %v3132
        %v3224 = vunpack.c.h.b16 %v3132
        %v3225 = vunpack.c.l.b16 %v3133
        %v3226 = vunpack.c.h.b16 %v3133
        %v3227 = vunpack.c.l.b16 %v3134
        %v3228 = vunpack.c.h.b16 %v3134
        %v3229 = vunpack.c.l.b16 %v3135
        %v3230 = vunpack.c.h.b16 %v3135
        %v3231 = vunpack.c.l.b16 %v3136
        %v3232 = vunpack.c.h.b16 %v3136
        %v3233 = vunpack.c.l.b16 %v3137
        %v3234 = vunpack.c.h.b16 %v3137
        %v3235 = vunpack.c.l.b16 %v3138
        %v3236 = vunpack.c.h.b16 %v3138
        %v3237 = vunpack.c.l.b16 %v3139
        %v3238 = vunpack.c.h.b16 %v3139
        %v3239 = vunpack.c.l.b16 %v3140
        %v3240 = vunpack.c.h.b16 %v3140
        %v3241 = vunpack.c.l.b16 %v3141
        %v3242 = vunpack.c.h.b16 %v3141
        %v3243 = vunpack.c.l.b16 %v3142
        %v3244 = vunpack.c.h.b16 %v3142
        %v3245 = vunpack.c.l.b16 %v3143
        %v3246 = vunpack.c.h.b16 %v3143
        %v3247 = vunpack.c.l.b16 %v3144
        %v3248 = vunpack.c.h.b16 %v3144
        %v3249 = vunpack.c.l.b16 %v3145
        %v3250 = vunpack.c.h.b16 %v3145
        %v3251 = vunpack.c.l.b16 %v3146
        %v3252 = vunpack.c.h.b16 %v3146
        %v3253 = vunpack.c.l.b16 %v3147
        %v3254 = vunpack.c.h.b16 %v3147
        %v3255 = vunpack.c.l.b16 %v3148
        %v3256 = vunpack.c.h.b16 %v3148
        %v3257 = vunpack.c.l.b16 %v3149
        %v3258 = vunpack.c.h.b16 %v3149
        %v3259 = vunpack.c.l.b16 %v3150
        %v3260 = vunpack.c.h.b16 %v3150
        %v3261 = vunpack.c.l.b16 %v3151
        %v3262 = vunpack.c.h.b16 %v3151
        %v3263 = vunpack.c.l.b16 %v3152
        %v3264 = vunpack.c.h.b16 %v3152
        %v3265 = vunpack.c.l.b16 %v3153
        %v3266 = vunpack.c.h.b16 %v3153
        %v3267 = vunpack.c.l.b16 %v3154
        %v3268 = vunpack.c.h.b16 %v3154
        %v3269 = vunpack.c.l.b16 %v3155
        %v3270 = vunpack.c.h.b16 %v3155
        %v3271 = vunpack.c.l.b16 %v3156
        %v3272 = vunpack.c.h.b16 %v3156
        %v3273 = vunpack.c.l.b16 %v3157
        %v3274 = vunpack.c.h.b16 %v3157
        %v3275 = vunpack.c.l.b16 %v3158
        %v3276 = vunpack.c.h.b16 %v3158
        %v3277 = vpack.c.b16 %v3217, %v3213
        %v3278 = vpack.c.b16 %v3218, %v3214
        %v3279 = vpack.c.b16 %v3219, %v3215
        %v3280 = vpack.c.b16 %v3220, %v3216
        %v3281 = vpack.c.b16 %v3225, %v3221
        %v3282 = vpack.c.b16 %v3226, %v3222
        %v3283 = vpack.c.b16 %v3227, %v3223
        %v3284 = vpack.c.b16 %v3228, %v3224
        %v3285 = vpack.c.b16 %v3233, %v3229
        %v3286 = vpack.c.b16 %v3234, %v3230
        %v3287 = vpack.c.b16 %v3235, %v3231
        %v3288 = vpack.c.b16 %v3236, %v3232
        %v3289 = vpack.c.b16 %v3241, %v3237
        %v3290 = vpack.c.b16 %v3242, %v3238
        %v3291 = vpack.c.b16 %v3243, %v3239
        %v3292 = vpack.c.b16 %v3244, %v3240
        %v3293 = vpack.c.b16 %v3249, %v3245
        %v3294 = vpack.c.b16 %v3250, %v3246
        %v3295 = vpack.c.b16 %v3251, %v3247
        %v3296 = vpack.c.b16 %v3252, %v3248
        %v3297 = vpack.c.b16 %v3257, %v3253
        %v3298 = vpack.c.b16 %v3258, %v3254
        %v3299 = vpack.c.b16 %v3259, %v3255
        %v3300 = vpack.c.b16 %v3260, %v3256
        %v3301 = vpack.c.b16 %v3265, %v3261
        %v3302 = vpack.c.b16 %v3266, %v3262
        %v3303 = vpack.c.b16 %v3267, %v3263
        %v3304 = vpack.c.b16 %v3268, %v3264
        %v3305 = vpack.c.b16 %v3273, %v3269
        %v3306 = vpack.c.b16 %v3274, %v3270
        %v3307 = vpack.c.b16 %v3275, %v3271
        %v3308 = vpack.c.b16 %v3276, %v3272
        %3341 = vmatprep.subr.bf16.mxu0 %v3306
        %3342 = vmatpush1.bf16.msra.mxu0 %v3305
        %3343 = vmatprep.subr.bf16.mxu0 %v3302
        %3344 = vmatpush1.bf16.msra.mxu0 %v3301
        %3345 = vmatprep.subr.bf16.mxu0 %v3298
        %3346 = vmatpush1.bf16.msra.mxu0 %v3297
        %3347 = vmatprep.subr.bf16.mxu0 %v3294
        %3348 = vmatpush1.bf16.msra.mxu0 %v3293
        %3349 = vmatprep.subr.bf16.mxu0 %v3290
        %3350 = vmatpush1.bf16.msra.mxu0 %v3289
        %3351 = vmatprep.subr.bf16.mxu0 %v3286
        %3352 = vmatpush1.bf16.msra.mxu0 %v3285
        %3353 = vmatprep.subr.bf16.mxu0 %v3282
        %3354 = vmatpush1.bf16.msra.mxu0 %v3281
        %3355 = vmatprep.subr.bf16.mxu0 %v3278
        %3356 = vmatpush1.bf16.msra.mxu0 %v3277
        %3357 = vmatprep.subr.bf16.mxu0 0
        %3358 = vmatpush2.bf16.msra.mxu0 0
        %3359 = vmatprep.subr.bf16.mxu0 0
        %3360 = vmatpush2.bf16.msra.mxu0 0
        %3361 = vmatprep.subr.bf16.mxu0 0
        %3362 = vmatpush2.bf16.msra.mxu0 0
        %3363 = vmatprep.subr.bf16.mxu0 0
        %3364 = vmatpush2.bf16.msra.mxu0 0
        %3365 = vmatprep.subr.bf16.mxu0 0
        %3366 = vmatpush2.bf16.msra.mxu0 0
        %3367 = vmatprep.subr.bf16.mxu0 0
        %3368 = vmatpush2.bf16.msra.mxu0 0
        %3369 = vmatprep.subr.bf16.mxu0 0
        %3370 = vmatpush2.bf16.msra.mxu0 0
        %3371 = vmatprep.subr.bf16.mxu0 0
        %3372 = vmatpush2.bf16.msra.mxu0 0
        %3373 = vmatprep.mubr.bf16.mxu0 0
        %3374 = vmatmul.mubr.bf16.gmra.mxu0 %v3119
        %v3375 = vpop.f32.mrf.mxu0
        %v3376 = vadd.f32 %v3164, %v3375
        %v3377 = vpop.f32.mrf.mxu0
        %v3378 = vadd.f32 %v3168, %v3377
        %v3379 = vpop.f32.mrf.mxu0
        %v3380 = vadd.f32 %v3164, %v3379
        %v3381 = vpop.f32.mrf.mxu0
        %v3382 = vadd.f32 %v3168, %v3381
        %3383 = vmatprep.mubr.bf16.mxu0 0
        %3384 = vmatmul.mubr.bf16.gmra.mxu0 %v3120
        %v3385 = vpop.f32.mrf.mxu0
        %v3386 = vadd.f32 %v3164, %v3385
        %v3387 = vpop.f32.mrf.mxu0
        %v3388 = vadd.f32 %v3168, %v3387
        %v3389 = vpop.f32.mrf.mxu0
        %v3390 = vadd.f32 %v3164, %v3389
        %v3391 = vpop.f32.mrf.mxu0
        %v3392 = vadd.f32 %v3168, %v3391
        %3393 = vmatprep.mubr.bf16.mxu0 0
        %3394 = vmatmul.mubr.bf16.gmra.mxu0 %v3121
        %v3395 = vpop.f32.mrf.mxu0
        %v3396 = vadd.f32 %v3164, %v3395
        %v3397 = vpop.f32.mrf.mxu0
        %v3398 = vadd.f32 %v3168, %v3397
        %v3399 = vpop.f32.mrf.mxu0
        %v3400 = vadd.f32 %v3164, %v3399
        %v3401 = vpop.f32.mrf.mxu0
        %v3402 = vadd.f32 %v3168, %v3401
        %3403 = vmatprep.mubr.bf16.mxu0 0
        %3404 = vmatmul.mubr.bf16.gmra.mxu0 %v3122
        %v3405 = vpop.f32.mrf.mxu0
        %v3406 = vadd.f32 %v3164, %v3405
        %v3407 = vpop.f32.mrf.mxu0
        %v3408 = vadd.f32 %v3168, %v3407
        %v3409 = vpop.f32.mrf.mxu0
        %v3410 = vadd.f32 %v3164, %v3409
        %v3411 = vpop.f32.mrf.mxu0
        %v3412 = vadd.f32 %v3168, %v3411
        %3413 = vmatprep.mubr.bf16.mxu0 0
        %3414 = vmatmul.mubr.bf16.gmra.mxu0 %v3123
        %v3415 = vpop.f32.mrf.mxu0
        %v3416 = vadd.f32 %v3164, %v3415
        %v3417 = vpop.f32.mrf.mxu0
        %v3418 = vadd.f32 %v3168, %v3417
        %v3419 = vpop.f32.mrf.mxu0
        %v3420 = vadd.f32 %v3164, %v3419
        %v3421 = vpop.f32.mrf.mxu0
        %v3422 = vadd.f32 %v3168, %v3421
        %3423 = vmatprep.mubr.bf16.mxu0 0
        %3424 = vmatmul.mubr.bf16.gmra.mxu0 %v3124
        %v3425 = vpop.f32.mrf.mxu0
        %v3426 = vadd.f32 %v3164, %v3425
        %v3427 = vpop.f32.mrf.mxu0
        %v3428 = vadd.f32 %v3168, %v3427
        %v3429 = vpop.f32.mrf.mxu0
        %v3430 = vadd.f32 %v3164, %v3429
        %v3431 = vpop.f32.mrf.mxu0
        %v3432 = vadd.f32 %v3168, %v3431
        %3433 = vmatprep.mubr.bf16.mxu0 0
        %3434 = vmatmul.mubr.bf16.gmra.mxu0 %v3125
        %v3435 = vpop.f32.mrf.mxu0
        %v3436 = vadd.f32 %v3164, %v3435
        %v3437 = vpop.f32.mrf.mxu0
        %v3438 = vadd.f32 %v3168, %v3437
        %v3439 = vpop.f32.mrf.mxu0
        %v3440 = vadd.f32 %v3164, %v3439
        %v3441 = vpop.f32.mrf.mxu0
        %v3442 = vadd.f32 %v3168, %v3441
        %3443 = vmatprep.mubr.bf16.mxu0 0
        %3444 = vmatmul.mubr.bf16.gmra.mxu0 %v3126
        %v3445 = vpop.f32.mrf.mxu0
        %v3446 = vadd.f32 %v3164, %v3445
        %v3447 = vpop.f32.mrf.mxu0
        %v3448 = vadd.f32 %v3168, %v3447
        %v3449 = vpop.f32.mrf.mxu0
        %v3450 = vadd.f32 %v3164, %v3449
        %v3451 = vpop.f32.mrf.mxu0
        %v3452 = vadd.f32 %v3168, %v3451
        %3453 = vdwg.mxu0
        %3454 = vmatprep.subr.bf16.mxu0 %v3308
        %3455 = vmatpush1.bf16.msra.mxu0 %v3307
        %3456 = vmatprep.subr.bf16.mxu0 %v3304
        %3457 = vmatpush1.bf16.msra.mxu0 %v3303
        %3458 = vmatprep.subr.bf16.mxu0 %v3300
        %3459 = vmatpush1.bf16.msra.mxu0 %v3299
        %3460 = vmatprep.subr.bf16.mxu0 %v3296
        %3461 = vmatpush1.bf16.msra.mxu0 %v3295
        %3462 = vmatprep.subr.bf16.mxu0 %v3292
        %3463 = vmatpush1.bf16.msra.mxu0 %v3291
        %3464 = vmatprep.subr.bf16.mxu0 %v3288
        %3465 = vmatpush1.bf16.msra.mxu0 %v3287
        %3466 = vmatprep.subr.bf16.mxu0 %v3284
        %3467 = vmatpush1.bf16.msra.mxu0 %v3283
        %3468 = vmatprep.subr.bf16.mxu0 %v3280
        %3469 = vmatpush1.bf16.msra.mxu0 %v3279
        %3470 = vmatprep.subr.bf16.mxu0 0
        %3471 = vmatpush2.bf16.msra.mxu0 0
        %3472 = vmatprep.subr.bf16.mxu0 0
        %3473 = vmatpush2.bf16.msra.mxu0 0
        %3474 = vmatprep.subr.bf16.mxu0 0
        %3475 = vmatpush2.bf16.msra.mxu0 0
        %3476 = vmatprep.subr.bf16.mxu0 0
        %3477 = vmatpush2.bf16.msra.mxu0 0
        %3478 = vmatprep.subr.bf16.mxu0 0
        %3479 = vmatpush2.bf16.msra.mxu0 0
        %3480 = vmatprep.subr.bf16.mxu0 0
        %3481 = vmatpush2.bf16.msra.mxu0 0
        %3482 = vmatprep.subr.bf16.mxu0 0
        %3483 = vmatpush2.bf16.msra.mxu0 0
        %3484 = vmatprep.subr.bf16.mxu0 0
        %3485 = vmatpush2.bf16.msra.mxu0 0
        %3486 = vmatprep.mubr.bf16.mxu0 0
        %3487 = vmatmul.mubr.bf16.gmra.mxu0 %v3119
        %v3488 = vpop.f32.mrf.mxu0
        %v3489 = vadd.f32 %v3172, %v3488
        %v3490 = vpop.f32.mrf.mxu0
        %v3491 = vadd.f32 %v3176, %v3490
        %v3492 = vpop.f32.mrf.mxu0
        %v3493 = vadd.f32 %v3172, %v3492
        %v3494 = vpop.f32.mrf.mxu0
        %v3495 = vadd.f32 %v3176, %v3494
        %3496 = vmatprep.mubr.bf16.mxu0 0
        %3497 = vmatmul.mubr.bf16.gmra.mxu0 %v3120
        %v3498 = vpop.f32.mrf.mxu0
        %v3499 = vadd.f32 %v3172, %v3498
        %v3500 = vpop.f32.mrf.mxu0
        %v3501 = vadd.f32 %v3176, %v3500
        %v3502 = vpop.f32.mrf.mxu0
        %v3503 = vadd.f32 %v3172, %v3502
        %v3504 = vpop.f32.mrf.mxu0
        %v3505 = vadd.f32 %v3176, %v3504
        %3506 = vmatprep.mubr.bf16.mxu0 0
        %3507 = vmatmul.mubr.bf16.gmra.mxu0 %v3121
        %v3508 = vpop.f32.mrf.mxu0
        %v3509 = vadd.f32 %v3172, %v3508
        %v3510 = vpop.f32.mrf.mxu0
        %v3511 = vadd.f32 %v3176, %v3510
        %v3512 = vpop.f32.mrf.mxu0
        %v3513 = vadd.f32 %v3172, %v3512
        %v3514 = vpop.f32.mrf.mxu0
        %v3515 = vadd.f32 %v3176, %v3514
        %3516 = vmatprep.mubr.bf16.mxu0 0
        %3517 = vmatmul.mubr.bf16.gmra.mxu0 %v3122
        %v3518 = vpop.f32.mrf.mxu0
        %v3519 = vadd.f32 %v3172, %v3518
        %v3520 = vpop.f32.mrf.mxu0
        %v3521 = vadd.f32 %v3176, %v3520
        %v3522 = vpop.f32.mrf.mxu0
        %v3523 = vadd.f32 %v3172, %v3522
        %v3524 = vpop.f32.mrf.mxu0
        %v3525 = vadd.f32 %v3176, %v3524
        %3526 = vmatprep.mubr.bf16.mxu0 0
        %3527 = vmatmul.mubr.bf16.gmra.mxu0 %v3123
        %v3528 = vpop.f32.mrf.mxu0
        %v3529 = vadd.f32 %v3172, %v3528
        %v3530 = vpop.f32.mrf.mxu0
        %v3531 = vadd.f32 %v3176, %v3530
        %v3532 = vpop.f32.mrf.mxu0
        %v3533 = vadd.f32 %v3172, %v3532
        %v3534 = vpop.f32.mrf.mxu0
        %v3535 = vadd.f32 %v3176, %v3534
        %3536 = vmatprep.mubr.bf16.mxu0 0
        %3537 = vmatmul.mubr.bf16.gmra.mxu0 %v3124
        %v3538 = vpop.f32.mrf.mxu0
        %v3539 = vadd.f32 %v3172, %v3538
        %v3540 = vpop.f32.mrf.mxu0
        %v3541 = vadd.f32 %v3176, %v3540
        %v3542 = vpop.f32.mrf.mxu0
        %v3543 = vadd.f32 %v3172, %v3542
        %v3544 = vpop.f32.mrf.mxu0
        %v3545 = vadd.f32 %v3176, %v3544
        %3546 = vmatprep.mubr.bf16.mxu0 0
        %3547 = vmatmul.mubr.bf16.gmra.mxu0 %v3125
        %v3548 = vpop.f32.mrf.mxu0
        %v3549 = vadd.f32 %v3172, %v3548
        %v3550 = vpop.f32.mrf.mxu0
        %v3551 = vadd.f32 %v3176, %v3550
        %v3552 = vpop.f32.mrf.mxu0
        %v3553 = vadd.f32 %v3172, %v3552
        %v3554 = vpop.f32.mrf.mxu0
        %v3555 = vadd.f32 %v3176, %v3554
        %3556 = vmatprep.mubr.bf16.mxu0 0
        %3557 = vmatmul.mubr.bf16.gmra.mxu0 %v3126
        %v3558 = vpop.f32.mrf.mxu0
        %v3559 = vadd.f32 %v3172, %v3558
        %v3560 = vpop.f32.mrf.mxu0
        %v3561 = vadd.f32 %v3176, %v3560
        %v3562 = vpop.f32.mrf.mxu0
        %v3563 = vadd.f32 %v3172, %v3562
        %v3564 = vpop.f32.mrf.mxu0
        %v3565 = vadd.f32 %v3176, %v3564
        %3566 = vdwg.mxu0
        %v3567 = vmax.f32 %v3376, 0.0
        %v3568 = vmax.f32 %v3378, 0.0
        %v3569 = vmax.f32 %v3489, 0.0
        %v3570 = vmax.f32 %v3491, 0.0
        %v3571 = vmax.f32 %v3380, 0.0
        %v3572 = vmax.f32 %v3382, 0.0
        %v3573 = vmax.f32 %v3493, 0.0
        %v3574 = vmax.f32 %v3495, 0.0
        %v3575 = vmax.f32 %v3386, 0.0
        %v3576 = vmax.f32 %v3388, 0.0
        %v3577 = vmax.f32 %v3499, 0.0
        %v3578 = vmax.f32 %v3501, 0.0
        %v3579 = vmax.f32 %v3390, 0.0
        %v3580 = vmax.f32 %v3392, 0.0
        %v3581 = vmax.f32 %v3503, 0.0
        %v3582 = vmax.f32 %v3505, 0.0
        %v3583 = vmax.f32 %v3396, 0.0
        %v3584 = vmax.f32 %v3398, 0.0
        %v3585 = vmax.f32 %v3509, 0.0
        %v3586 = vmax.f32 %v3511, 0.0
        %v3587 = vmax.f32 %v3400, 0.0
        %v3588 = vmax.f32 %v3402, 0.0
        %v3589 = vmax.f32 %v3513, 0.0
        %v3590 = vmax.f32 %v3515, 0.0
        %v3591 = vmax.f32 %v3406, 0.0
        %v3592 = vmax.f32 %v3408, 0.0
        %v3593 = vmax.f32 %v3519, 0.0
        %v3594 = vmax.f32 %v3521, 0.0
        %v3595 = vmax.f32 %v3410, 0.0
        %v3596 = vmax.f32 %v3412, 0.0
        %v3597 = vmax.f32 %v3523, 0.0
        %v3598 = vmax.f32 %v3525, 0.0
        %v3599 = vmax.f32 %v3416, 0.0
        %v3600 = vmax.f32 %v3418, 0.0
        %v3601 = vmax.f32 %v3529, 0.0
        %v3602 = vmax.f32 %v3531, 0.0
        %v3603 = vmax.f32 %v3420, 0.0
        %v3604 = vmax.f32 %v3422, 0.0
        %v3605 = vmax.f32 %v3533, 0.0
        %v3606 = vmax.f32 %v3535, 0.0
        %v3607 = vmax.f32 %v3426, 0.0
        %v3608 = vmax.f32 %v3428, 0.0
        %v3609 = vmax.f32 %v3539, 0.0
        %v3610 = vmax.f32 %v3541, 0.0
        %v3611 = vmax.f32 %v3430, 0.0
        %v3612 = vmax.f32 %v3432, 0.0
        %v3613 = vmax.f32 %v3543, 0.0
        %v3614 = vmax.f32 %v3545, 0.0
        %v3615 = vmax.f32 %v3436, 0.0
        %v3616 = vmax.f32 %v3438, 0.0
        %v3617 = vmax.f32 %v3549, 0.0
        %v3618 = vmax.f32 %v3551, 0.0
        %v3619 = vmax.f32 %v3440, 0.0
        %v3620 = vmax.f32 %v3442, 0.0
        %v3621 = vmax.f32 %v3553, 0.0
        %v3622 = vmax.f32 %v3555, 0.0
        %v3623 = vmax.f32 %v3446, 0.0
        %v3624 = vmax.f32 %v3448, 0.0
        %v3625 = vmax.f32 %v3559, 0.0
        %v3626 = vmax.f32 %v3561, 0.0
        %v3627 = vmax.f32 %v3450, 0.0
        %v3628 = vmax.f32 %v3452, 0.0
        %v3629 = vmax.f32 %v3563, 0.0
        %v3630 = vmax.f32 %v3565, 0.0
        %v3631 = vpack.c.bf16 %v3571, %v3567
        %v3632 = vpack.c.bf16 %v3572, %v3568
        %v3633 = vpack.c.bf16 %v3573, %v3569
        %v3634 = vpack.c.bf16 %v3574, %v3570
        %v3635 = vpack.c.bf16 %v3579, %v3575
        %v3636 = vpack.c.bf16 %v3580, %v3576
        %v3637 = vpack.c.bf16 %v3581, %v3577
        %v3638 = vpack.c.bf16 %v3582, %v3578
        %v3639 = vpack.c.bf16 %v3587, %v3583
        %v3640 = vpack.c.bf16 %v3588, %v3584
        %v3641 = vpack.c.bf16 %v3589, %v3585
        %v3642 = vpack.c.bf16 %v3590, %v3586
        %v3643 = vpack.c.bf16 %v3595, %v3591
        %v3644 = vpack.c.bf16 %v3596, %v3592
        %v3645 = vpack.c.bf16 %v3597, %v3593
        %v3646 = vpack.c.bf16 %v3598, %v3594
        %v3647 = vpack.c.bf16 %v3603, %v3599
        %v3648 = vpack.c.bf16 %v3604, %v3600
        %v3649 = vpack.c.bf16 %v3605, %v3601
        %v3650 = vpack.c.bf16 %v3606, %v3602
        %v3651 = vpack.c.bf16 %v3611, %v3607
        %v3652 = vpack.c.bf16 %v3612, %v3608
        %v3653 = vpack.c.bf16 %v3613, %v3609
        %v3654 = vpack.c.bf16 %v3614, %v3610
        %v3655 = vpack.c.bf16 %v3619, %v3615
        %v3656 = vpack.c.bf16 %v3620, %v3616
        %v3657 = vpack.c.bf16 %v3621, %v3617
        %v3658 = vpack.c.bf16 %v3622, %v3618
        %v3659 = vpack.c.bf16 %v3627, %v3623
        %v3660 = vpack.c.bf16 %v3628, %v3624
        %v3661 = vpack.c.bf16 %v3629, %v3625
        %v3662 = vpack.c.bf16 %v3630, %v3626
        %v3663 = vld [vmem:[#allocation3] sm:$0xff]
        %v3664 = vld [vmem:[#allocation3 + $0x8] sm:$0xff]
        %v3665 = vld [vmem:[#allocation3 + $0x10] sm:$0xff]
        %v3666 = vld [vmem:[#allocation3 + $0x18] sm:$0xff]
        %v3667 = vld [vmem:[#allocation3 + $0x20] sm:$0xff]
        %v3668 = vld [vmem:[#allocation3 + $0x28] sm:$0xff]
        %v3669 = vld [vmem:[#allocation3 + $0x30] sm:$0xff]
        %v3670 = vld [vmem:[#allocation3 + $0x38] sm:$0xff]
        %v3671 = vld [vmem:[#allocation3 + $0x40] sm:$0xff]
        %v3672 = vld [vmem:[#allocation3 + $0x48] sm:$0xff]
        %v3673 = vld [vmem:[#allocation3 + $0x50] sm:$0xff]
        %v3674 = vld [vmem:[#allocation3 + $0x58] sm:$0xff]
        %v3675 = vld [vmem:[#allocation3 + $0x60] sm:$0xff]
        %v3676 = vld [vmem:[#allocation3 + $0x68] sm:$0xff]
        %v3677 = vld [vmem:[#allocation3 + $0x70] sm:$0xff]
        %v3678 = vld [vmem:[#allocation3 + $0x78] sm:$0xff]
        %v3679 = vld [vmem:[%s629] sm:$0xf]
        %v3680 = vld [vmem:[%s629 + $0x4] sm:$0xf]
        %v3681 = vld [vmem:[%s629 + $0x8] sm:$0xf]
        %v3682 = vld [vmem:[%s629 + $0xc] sm:$0xf]
        %v3683 = vld [vmem:[%s629 + $0x10] sm:$0xf]
        %v3684 = vld [vmem:[%s629 + $0x14] sm:$0xf]
        %v3685 = vld [vmem:[%s629 + $0x18] sm:$0xf]
        %v3686 = vld [vmem:[%s629 + $0x1c] sm:$0xf]
        %v3687 = vld [vmem:[%s629 + $0x20] sm:$0xf]
        %v3688 = vld [vmem:[%s629 + $0x24] sm:$0xf]
        %v3689 = vld [vmem:[%s629 + $0x28] sm:$0xf]
        %v3690 = vld [vmem:[%s629 + $0x2c] sm:$0xf]
        %v3691 = vld [vmem:[%s629 + $0x30] sm:$0xf]
        %v3692 = vld [vmem:[%s629 + $0x34] sm:$0xf]
        %v3693 = vld [vmem:[%s629 + $0x38] sm:$0xf]
        %v3694 = vld [vmem:[%s629 + $0x3c] sm:$0xf]
        %v3695 = vld [vmem:[%s629 + $0x40] sm:$0xf]
        %v3696 = vld [vmem:[%s629 + $0x44] sm:$0xf]
        %v3697 = vld [vmem:[%s629 + $0x48] sm:$0xf]
        %v3698 = vld [vmem:[%s629 + $0x4c] sm:$0xf]
        %v3699 = vld [vmem:[%s629 + $0x50] sm:$0xf]
        %v3700 = vld [vmem:[%s629 + $0x54] sm:$0xf]
        %v3701 = vld [vmem:[%s629 + $0x58] sm:$0xf]
        %v3702 = vld [vmem:[%s629 + $0x5c] sm:$0xf]
        %v3703 = vld [vmem:[%s629 + $0x60] sm:$0xf]
        %v3704 = vld [vmem:[%s629 + $0x64] sm:$0xf]
        %v3705 = vld [vmem:[%s629 + $0x68] sm:$0xf]
        %v3706 = vld [vmem:[%s629 + $0x6c] sm:$0xf]
        %v3707 = vld [vmem:[%s629 + $0x70] sm:$0xf]
        %v3708 = vld [vmem:[%s629 + $0x74] sm:$0xf]
        %v3709 = vld [vmem:[%s629 + $0x78] sm:$0xf]
        %v3710 = vld [vmem:[%s629 + $0x7c] sm:$0xf]
        %v3711 = vld [vmem:[%s629 + $0x80] sm:$0xf]
        %v3712 = vld [vmem:[%s629 + $0x84] sm:$0xf]
        %v3713 = vld [vmem:[%s629 + $0x88] sm:$0xf]
        %v3714 = vld [vmem:[%s629 + $0x8c] sm:$0xf]
        %v3715 = vld [vmem:[%s629 + $0x90] sm:$0xf]
        %v3716 = vld [vmem:[%s629 + $0x94] sm:$0xf]
        %v3717 = vld [vmem:[%s629 + $0x98] sm:$0xf]
        %v3718 = vld [vmem:[%s629 + $0x9c] sm:$0xf]
        %v3719 = vld [vmem:[%s629 + $0xa0] sm:$0xf]
        %v3720 = vld [vmem:[%s629 + $0xa4] sm:$0xf]
        %v3721 = vld [vmem:[%s629 + $0xa8] sm:$0xf]
        %v3722 = vld [vmem:[%s629 + $0xac] sm:$0xf]
        %v3723 = vld [vmem:[%s629 + $0xb0] sm:$0xf]
        %v3724 = vld [vmem:[%s629 + $0xb4] sm:$0xf]
        %v3725 = vld [vmem:[%s629 + $0xb8] sm:$0xf]
        %v3726 = vld [vmem:[%s629 + $0xbc] sm:$0xf]
        %v3727 = vld [vmem:[%s629 + $0xc0] sm:$0xf]
        %v3728 = vld [vmem:[%s629 + $0xc4] sm:$0xf]
        %v3729 = vld [vmem:[%s629 + $0xc8] sm:$0xf]
        %v3730 = vld [vmem:[%s629 + $0xcc] sm:$0xf]
        %v3731 = vld [vmem:[%s629 + $0xd0] sm:$0xf]
        %v3732 = vld [vmem:[%s629 + $0xd4] sm:$0xf]
        %v3733 = vld [vmem:[%s629 + $0xd8] sm:$0xf]
        %v3734 = vld [vmem:[%s629 + $0xdc] sm:$0xf]
        %v3735 = vld [vmem:[%s629 + $0xe0] sm:$0xf]
        %v3736 = vld [vmem:[%s629 + $0xe4] sm:$0xf]
        %v3737 = vld [vmem:[%s629 + $0xe8] sm:$0xf]
        %v3738 = vld [vmem:[%s629 + $0xec] sm:$0xf]
        %v3739 = vld [vmem:[%s629 + $0xf0] sm:$0xf]
        %v3740 = vld [vmem:[%s629 + $0xf4] sm:$0xf]
        %v3741 = vld [vmem:[%s629 + $0xf8] sm:$0xf]
        %v3742 = vld [vmem:[%s629 + $0xfc] sm:$0xf]
        %v3807 = vunpack.c.l.b16 %v3679
        %v3808 = vunpack.c.l.b16 %v3680
        %v3809 = vunpack.c.l.b16 %v3681
        %v3810 = vunpack.c.l.b16 %v3682
        %v3811 = vunpack.c.l.b16 %v3683
        %v3812 = vunpack.c.l.b16 %v3684
        %v3813 = vunpack.c.l.b16 %v3685
        %v3814 = vunpack.c.l.b16 %v3686
        %v3815 = vunpack.c.l.b16 %v3687
        %v3816 = vunpack.c.l.b16 %v3688
        %v3817 = vunpack.c.l.b16 %v3689
        %v3818 = vunpack.c.l.b16 %v3690
        %v3819 = vunpack.c.l.b16 %v3691
        %v3820 = vunpack.c.l.b16 %v3692
        %v3821 = vunpack.c.l.b16 %v3693
        %v3822 = vunpack.c.l.b16 %v3694
        %v3823 = vunpack.c.l.b16 %v3695
        %v3824 = vunpack.c.l.b16 %v3696
        %v3825 = vunpack.c.l.b16 %v3697
        %v3826 = vunpack.c.l.b16 %v3698
        %v3827 = vunpack.c.l.b16 %v3699
        %v3828 = vunpack.c.l.b16 %v3700
        %v3829 = vunpack.c.l.b16 %v3701
        %v3830 = vunpack.c.l.b16 %v3702
        %v3831 = vunpack.c.l.b16 %v3703
        %v3832 = vunpack.c.l.b16 %v3704
        %v3833 = vunpack.c.l.b16 %v3705
        %v3834 = vunpack.c.l.b16 %v3706
        %v3835 = vunpack.c.l.b16 %v3707
        %v3836 = vunpack.c.l.b16 %v3708
        %v3837 = vunpack.c.l.b16 %v3709
        %v3838 = vunpack.c.l.b16 %v3710
        %v3839 = vunpack.c.l.b16 %v3711
        %v3840 = vunpack.c.l.b16 %v3712
        %v3841 = vunpack.c.l.b16 %v3713
        %v3842 = vunpack.c.l.b16 %v3714
        %v3843 = vunpack.c.l.b16 %v3715
        %v3844 = vunpack.c.l.b16 %v3716
        %v3845 = vunpack.c.l.b16 %v3717
        %v3846 = vunpack.c.l.b16 %v3718
        %v3847 = vunpack.c.l.b16 %v3719
        %v3848 = vunpack.c.l.b16 %v3720
        %v3849 = vunpack.c.l.b16 %v3721
        %v3850 = vunpack.c.l.b16 %v3722
        %v3851 = vunpack.c.l.b16 %v3723
        %v3852 = vunpack.c.l.b16 %v3724
        %v3853 = vunpack.c.l.b16 %v3725
        %v3854 = vunpack.c.l.b16 %v3726
        %v3855 = vunpack.c.l.b16 %v3727
        %v3856 = vunpack.c.l.b16 %v3728
        %v3857 = vunpack.c.l.b16 %v3729
        %v3858 = vunpack.c.l.b16 %v3730
        %v3859 = vunpack.c.l.b16 %v3731
        %v3860 = vunpack.c.l.b16 %v3732
        %v3861 = vunpack.c.l.b16 %v3733
        %v3862 = vunpack.c.l.b16 %v3734
        %v3863 = vunpack.c.l.b16 %v3735
        %v3864 = vunpack.c.l.b16 %v3736
        %v3865 = vunpack.c.l.b16 %v3737
        %v3866 = vunpack.c.l.b16 %v3738
        %v3867 = vunpack.c.l.b16 %v3739
        %v3868 = vunpack.c.l.b16 %v3740
        %v3869 = vunpack.c.l.b16 %v3741
        %v3870 = vunpack.c.l.b16 %v3742
        %v3871 = vpack.c.b16 %v3808, %v3807
        %v3872 = vpack.c.b16 %v3810, %v3809
        %v3873 = vpack.c.b16 %v3812, %v3811
        %v3874 = vpack.c.b16 %v3814, %v3813
        %v3875 = vpack.c.b16 %v3816, %v3815
        %v3876 = vpack.c.b16 %v3818, %v3817
        %v3877 = vpack.c.b16 %v3820, %v3819
        %v3878 = vpack.c.b16 %v3822, %v3821
        %v3879 = vpack.c.b16 %v3824, %v3823
        %v3880 = vpack.c.b16 %v3826, %v3825
        %v3881 = vpack.c.b16 %v3828, %v3827
        %v3882 = vpack.c.b16 %v3830, %v3829
        %v3883 = vpack.c.b16 %v3832, %v3831
        %v3884 = vpack.c.b16 %v3834, %v3833
        %v3885 = vpack.c.b16 %v3836, %v3835
        %v3886 = vpack.c.b16 %v3838, %v3837
        %v3887 = vpack.c.b16 %v3840, %v3839
        %v3888 = vpack.c.b16 %v3842, %v3841
        %v3889 = vpack.c.b16 %v3844, %v3843
        %v3890 = vpack.c.b16 %v3846, %v3845
        %v3891 = vpack.c.b16 %v3848, %v3847
        %v3892 = vpack.c.b16 %v3850, %v3849
        %v3893 = vpack.c.b16 %v3852, %v3851
        %v3894 = vpack.c.b16 %v3854, %v3853
        %v3895 = vpack.c.b16 %v3856, %v3855
        %v3896 = vpack.c.b16 %v3858, %v3857
        %v3897 = vpack.c.b16 %v3860, %v3859
        %v3898 = vpack.c.b16 %v3862, %v3861
        %v3899 = vpack.c.b16 %v3864, %v3863
        %v3900 = vpack.c.b16 %v3866, %v3865
        %v3901 = vpack.c.b16 %v3868, %v3867
        %v3902 = vpack.c.b16 %v3870, %v3869
        %3935 = vmatprep.subr.bf16.mxu0 0
        %3936 = vmatpush1.bf16.msra.mxu0 %v3878
        %3937 = vmatprep.subr.bf16.mxu0 0
        %3938 = vmatpush1.bf16.msra.mxu0 %v3877
        %3939 = vmatprep.subr.bf16.mxu0 0
        %3940 = vmatpush1.bf16.msra.mxu0 %v3876
        %3941 = vmatprep.subr.bf16.mxu0 0
        %3942 = vmatpush1.bf16.msra.mxu0 %v3875
        %3943 = vmatprep.subr.bf16.mxu0 0
        %3944 = vmatpush1.bf16.msra.mxu0 %v3874
        %3945 = vmatprep.subr.bf16.mxu0 0
        %3946 = vmatpush1.bf16.msra.mxu0 %v3873
        %3947 = vmatprep.subr.bf16.mxu0 0
        %3948 = vmatpush1.bf16.msra.mxu0 %v3872
        %3949 = vmatprep.subr.bf16.mxu0 0
        %3950 = vmatpush1.bf16.msra.mxu0 %v3871
        %3951 = vmatprep.subr.bf16.mxu0 0
        %3952 = vmatpush2.bf16.msra.mxu0 %v3886
        %3953 = vmatprep.subr.bf16.mxu0 0
        %3954 = vmatpush2.bf16.msra.mxu0 %v3885
        %3955 = vmatprep.subr.bf16.mxu0 0
        %3956 = vmatpush2.bf16.msra.mxu0 %v3884
        %3957 = vmatprep.subr.bf16.mxu0 0
        %3958 = vmatpush2.bf16.msra.mxu0 %v3883
        %3959 = vmatprep.subr.bf16.mxu0 0
        %3960 = vmatpush2.bf16.msra.mxu0 %v3882
        %3961 = vmatprep.subr.bf16.mxu0 0
        %3962 = vmatpush2.bf16.msra.mxu0 %v3881
        %3963 = vmatprep.subr.bf16.mxu0 0
        %3964 = vmatpush2.bf16.msra.mxu0 %v3880
        %3965 = vmatprep.subr.bf16.mxu0 0
        %3966 = vmatpush2.bf16.msra.mxu0 %v3879
        %3967 = vmatprep.mubr.bf16.mxu0 %v3632
        %3968 = vmatmul.mubr.bf16.gmra.mxu0 %v3631
        %v3969 = vpop.f32.mrf.mxu0
        %v3970 = vadd.f32 0.0, %v3969
        %v3971 = vpop.f32.mrf.mxu0
        %v3972 = vpop.f32.mrf.mxu0
        %v3973 = vadd.f32 0.0, %v3972
        %v3974 = vpop.f32.mrf.mxu0
        %3975 = vmatprep.mubr.bf16.mxu0 %v3636
        %3976 = vmatmul.mubr.bf16.gmra.mxu0 %v3635
        %v3977 = vpop.f32.mrf.mxu0
        %v3978 = vadd.f32 0.0, %v3977
        %v3979 = vpop.f32.mrf.mxu0
        %v3980 = vpop.f32.mrf.mxu0
        %v3981 = vadd.f32 0.0, %v3980
        %v3982 = vpop.f32.mrf.mxu0
        %3983 = vmatprep.mubr.bf16.mxu0 %v3640
        %3984 = vmatmul.mubr.bf16.gmra.mxu0 %v3639
        %v3985 = vpop.f32.mrf.mxu0
        %v3986 = vadd.f32 0.0, %v3985
        %v3987 = vpop.f32.mrf.mxu0
        %v3988 = vpop.f32.mrf.mxu0
        %v3989 = vadd.f32 0.0, %v3988
        %v3990 = vpop.f32.mrf.mxu0
        %3991 = vmatprep.mubr.bf16.mxu0 %v3644
        %3992 = vmatmul.mubr.bf16.gmra.mxu0 %v3643
        %v3993 = vpop.f32.mrf.mxu0
        %v3994 = vadd.f32 0.0, %v3993
        %v3995 = vpop.f32.mrf.mxu0
        %v3996 = vpop.f32.mrf.mxu0
        %v3997 = vadd.f32 0.0, %v3996
        %v3998 = vpop.f32.mrf.mxu0
        %3999 = vmatprep.mubr.bf16.mxu0 %v3648
        %4000 = vmatmul.mubr.bf16.gmra.mxu0 %v3647
        %v4001 = vpop.f32.mrf.mxu0
        %v4002 = vadd.f32 0.0, %v4001
        %v4003 = vpop.f32.mrf.mxu0
        %v4004 = vpop.f32.mrf.mxu0
        %v4005 = vadd.f32 0.0, %v4004
        %v4006 = vpop.f32.mrf.mxu0
        %4007 = vmatprep.mubr.bf16.mxu0 %v3652
        %4008 = vmatmul.mubr.bf16.gmra.mxu0 %v3651
        %v4009 = vpop.f32.mrf.mxu0
        %v4010 = vadd.f32 0.0, %v4009
        %v4011 = vpop.f32.mrf.mxu0
        %v4012 = vpop.f32.mrf.mxu0
        %v4013 = vadd.f32 0.0, %v4012
        %v4014 = vpop.f32.mrf.mxu0
        %4015 = vmatprep.mubr.bf16.mxu0 %v3656
        %4016 = vmatmul.mubr.bf16.gmra.mxu0 %v3655
        %v4017 = vpop.f32.mrf.mxu0
        %v4018 = vadd.f32 0.0, %v4017
        %v4019 = vpop.f32.mrf.mxu0
        %v4020 = vpop.f32.mrf.mxu0
        %v4021 = vadd.f32 0.0, %v4020
        %v4022 = vpop.f32.mrf.mxu0
        %4023 = vmatprep.mubr.bf16.mxu0 %v3660
        %4024 = vmatmul.mubr.bf16.gmra.mxu0 %v3659
        %v4025 = vpop.f32.mrf.mxu0
        %v4026 = vadd.f32 0.0, %v4025
        %v4027 = vpop.f32.mrf.mxu0
        %v4028 = vpop.f32.mrf.mxu0
        %v4029 = vadd.f32 0.0, %v4028
        %v4030 = vpop.f32.mrf.mxu0
        %4031 = vdwg.mxu0
        %4032 = vmatprep.subr.bf16.mxu0 0
        %4033 = vmatpush1.bf16.msra.mxu0 %v3894
        %4034 = vmatprep.subr.bf16.mxu0 0
        %4035 = vmatpush1.bf16.msra.mxu0 %v3893
        %4036 = vmatprep.subr.bf16.mxu0 0
        %4037 = vmatpush1.bf16.msra.mxu0 %v3892
        %4038 = vmatprep.subr.bf16.mxu0 0
        %4039 = vmatpush1.bf16.msra.mxu0 %v3891
        %4040 = vmatprep.subr.bf16.mxu0 0
        %4041 = vmatpush1.bf16.msra.mxu0 %v3890
        %4042 = vmatprep.subr.bf16.mxu0 0
        %4043 = vmatpush1.bf16.msra.mxu0 %v3889
        %4044 = vmatprep.subr.bf16.mxu0 0
        %4045 = vmatpush1.bf16.msra.mxu0 %v3888
        %4046 = vmatprep.subr.bf16.mxu0 0
        %4047 = vmatpush1.bf16.msra.mxu0 %v3887
        %4048 = vmatprep.subr.bf16.mxu0 0
        %4049 = vmatpush2.bf16.msra.mxu0 %v3902
        %4050 = vmatprep.subr.bf16.mxu0 0
        %4051 = vmatpush2.bf16.msra.mxu0 %v3901
        %4052 = vmatprep.subr.bf16.mxu0 0
        %4053 = vmatpush2.bf16.msra.mxu0 %v3900
        %4054 = vmatprep.subr.bf16.mxu0 0
        %4055 = vmatpush2.bf16.msra.mxu0 %v3899
        %4056 = vmatprep.subr.bf16.mxu0 0
        %4057 = vmatpush2.bf16.msra.mxu0 %v3898
        %4058 = vmatprep.subr.bf16.mxu0 0
        %4059 = vmatpush2.bf16.msra.mxu0 %v3897
        %4060 = vmatprep.subr.bf16.mxu0 0
        %4061 = vmatpush2.bf16.msra.mxu0 %v3896
        %4062 = vmatprep.subr.bf16.mxu0 0
        %4063 = vmatpush2.bf16.msra.mxu0 %v3895
        %4064 = vmatprep.mubr.bf16.mxu0 %v3634
        %4065 = vmatmul.mubr.bf16.gmra.mxu0 %v3633
        %v4066 = vpop.f32.mrf.mxu0
        %v4067 = vadd.f32 %v3970, %v4066
        %v4068 = vpop.f32.mrf.mxu0
        %v4069 = vpop.f32.mrf.mxu0
        %v4070 = vadd.f32 %v3973, %v4069
        %v4071 = vpop.f32.mrf.mxu0
        %4072 = vmatprep.mubr.bf16.mxu0 %v3638
        %4073 = vmatmul.mubr.bf16.gmra.mxu0 %v3637
        %v4074 = vpop.f32.mrf.mxu0
        %v4075 = vadd.f32 %v3978, %v4074
        %v4076 = vpop.f32.mrf.mxu0
        %v4077 = vpop.f32.mrf.mxu0
        %v4078 = vadd.f32 %v3981, %v4077
        %v4079 = vpop.f32.mrf.mxu0
        %4080 = vmatprep.mubr.bf16.mxu0 %v3642
        %4081 = vmatmul.mubr.bf16.gmra.mxu0 %v3641
        %v4082 = vpop.f32.mrf.mxu0
        %v4083 = vadd.f32 %v3986, %v4082
        %v4084 = vpop.f32.mrf.mxu0
        %v4085 = vpop.f32.mrf.mxu0
        %v4086 = vadd.f32 %v3989, %v4085
        %v4087 = vpop.f32.mrf.mxu0
        %4088 = vmatprep.mubr.bf16.mxu0 %v3646
        %4089 = vmatmul.mubr.bf16.gmra.mxu0 %v3645
        %v4090 = vpop.f32.mrf.mxu0
        %v4091 = vadd.f32 %v3994, %v4090
        %v4092 = vpop.f32.mrf.mxu0
        %v4093 = vpop.f32.mrf.mxu0
        %v4094 = vadd.f32 %v3997, %v4093
        %v4095 = vpop.f32.mrf.mxu0
        %4096 = vmatprep.mubr.bf16.mxu0 %v3650
        %4097 = vmatmul.mubr.bf16.gmra.mxu0 %v3649
        %v4098 = vpop.f32.mrf.mxu0
        %v4099 = vadd.f32 %v4002, %v4098
        %v4100 = vpop.f32.mrf.mxu0
        %v4101 = vpop.f32.mrf.mxu0
        %v4102 = vadd.f32 %v4005, %v4101
        %v4103 = vpop.f32.mrf.mxu0
        %4104 = vmatprep.mubr.bf16.mxu0 %v3654
        %4105 = vmatmul.mubr.bf16.gmra.mxu0 %v3653
        %v4106 = vpop.f32.mrf.mxu0
        %v4107 = vadd.f32 %v4010, %v4106
        %v4108 = vpop.f32.mrf.mxu0
        %v4109 = vpop.f32.mrf.mxu0
        %v4110 = vadd.f32 %v4013, %v4109
        %v4111 = vpop.f32.mrf.mxu0
        %4112 = vmatprep.mubr.bf16.mxu0 %v3658
        %4113 = vmatmul.mubr.bf16.gmra.mxu0 %v3657
        %v4114 = vpop.f32.mrf.mxu0
        %v4115 = vadd.f32 %v4018, %v4114
        %v4116 = vpop.f32.mrf.mxu0
        %v4117 = vpop.f32.mrf.mxu0
        %v4118 = vadd.f32 %v4021, %v4117
        %v4119 = vpop.f32.mrf.mxu0
        %4120 = vmatprep.mubr.bf16.mxu0 %v3662
        %4121 = vmatmul.mubr.bf16.gmra.mxu0 %v3661
        %v4122 = vpop.f32.mrf.mxu0
        %v4123 = vadd.f32 %v4026, %v4122
        %v4124 = vpop.f32.mrf.mxu0
        %v4125 = vpop.f32.mrf.mxu0
        %v4126 = vadd.f32 %v4029, %v4125
        %v4127 = vpop.f32.mrf.mxu0
        %4128 = vdwg.mxu0
        %v4129 = vadd.f32 %v3663, %v4067
        %v4130 = vadd.f32 %v3664, %v4070
        %v4131 = vadd.f32 %v3665, %v4075
        %v4132 = vadd.f32 %v3666, %v4078
        %v4133 = vadd.f32 %v3667, %v4083
        %v4134 = vadd.f32 %v3668, %v4086
        %v4135 = vadd.f32 %v3669, %v4091
        %v4136 = vadd.f32 %v3670, %v4094
        %v4137 = vadd.f32 %v3671, %v4099
        %v4138 = vadd.f32 %v3672, %v4102
        %v4139 = vadd.f32 %v3673, %v4107
        %v4140 = vadd.f32 %v3674, %v4110
        %v4141 = vadd.f32 %v3675, %v4115
        %v4142 = vadd.f32 %v3676, %v4118
        %v4143 = vadd.f32 %v3677, %v4123
        %v4144 = vadd.f32 %v3678, %v4126
        %4145 = vst [vmem:[#allocation3] sm:$0xff] %v4129
        %4146 = vst [vmem:[#allocation3 + $0x8] sm:$0xff] %v4130
        %4147 = vst [vmem:[#allocation3 + $0x10] sm:$0xff] %v4131
        %4148 = vst [vmem:[#allocation3 + $0x18] sm:$0xff] %v4132
        %4149 = vst [vmem:[#allocation3 + $0x20] sm:$0xff] %v4133
        %4150 = vst [vmem:[#allocation3 + $0x28] sm:$0xff] %v4134
        %4151 = vst [vmem:[#allocation3 + $0x30] sm:$0xff] %v4135
        %4152 = vst [vmem:[#allocation3 + $0x38] sm:$0xff] %v4136
        %4153 = vst [vmem:[#allocation3 + $0x40] sm:$0xff] %v4137
        %4154 = vst [vmem:[#allocation3 + $0x48] sm:$0xff] %v4138
        %4155 = vst [vmem:[#allocation3 + $0x50] sm:$0xff] %v4139
        %4156 = vst [vmem:[#allocation3 + $0x58] sm:$0xff] %v4140
        %4157 = vst [vmem:[#allocation3 + $0x60] sm:$0xff] %v4141
        %4158 = vst [vmem:[#allocation3 + $0x68] sm:$0xff] %v4142
        %4159 = vst [vmem:[#allocation3 + $0x70] sm:$0xff] %v4143
        %4160 = vst [vmem:[#allocation3 + $0x78] sm:$0xff] %v4144
        %p4161 = scmp.eq.s32.totalorder %s27, 3
        // Predicated region
        $region112: #{mobilevit_block.1} parent=102 // pred_check
          %p4162 = pneg %p4161
        $region113: #{mobilevit_block.1} parent=102 // pred_check_branch
          %4164 = sbr.rel (%p4162) target = $region115
        $region114: #{mobilevit_block.1} parent=102 // pred_region
          %v4165 = vld [vmem:[#allocation3] sm:$0xff]
          %v4166 = vld [vmem:[#allocation3 + $0x8] sm:$0xff]
          %v4167 = vld [vmem:[#allocation3 + $0x10] sm:$0xff]
          %v4168 = vld [vmem:[#allocation3 + $0x18] sm:$0xff]
          %v4169 = vld [vmem:[#allocation3 + $0x20] sm:$0xff]
          %v4170 = vld [vmem:[#allocation3 + $0x28] sm:$0xff]
          %v4171 = vld [vmem:[#allocation3 + $0x30] sm:$0xff]
          %v4172 = vld [vmem:[#allocation3 + $0x38] sm:$0xff]
          %v4173 = vld [vmem:[#allocation3 + $0x40] sm:$0xff]
          %v4174 = vld [vmem:[#allocation3 + $0x48] sm:$0xff]
          %v4175 = vld [vmem:[#allocation3 + $0x50] sm:$0xff]
          %v4176 = vld [vmem:[#allocation3 + $0x58] sm:$0xff]
          %v4177 = vld [vmem:[#allocation3 + $0x60] sm:$0xff]
          %v4178 = vld [vmem:[#allocation3 + $0x68] sm:$0xff]
          %v4179 = vld [vmem:[#allocation3 + $0x70] sm:$0xff]
          %v4180 = vld [vmem:[#allocation3 + $0x78] sm:$0xff]
          %v4181 = vld [vmem:[%s11] sm:$0x1]
          %v4183 = vlaneseq
          %v4184 = vshrl.u32 %v4183, 7
          %v4185 = vsub.s32 0, %v4184
          %v4186 = vrot.slane %v4181, %v4185
          %v4188 = vadd.f32 %v4165, %v4186
          %v4189 = vadd.f32 %v4166, %v4186
          %v4190 = vadd.f32 %v4167, %v4186
          %v4191 = vadd.f32 %v4168, %v4186
          %v4192 = vadd.f32 %v4169, %v4186
          %v4193 = vadd.f32 %v4170, %v4186
          %v4194 = vadd.f32 %v4171, %v4186
          %v4195 = vadd.f32 %v4172, %v4186
          %v4196 = vadd.f32 %v4173, %v4186
          %v4197 = vadd.f32 %v4174, %v4186
          %v4198 = vadd.f32 %v4175, %v4186
          %v4199 = vadd.f32 %v4176, %v4186
          %v4200 = vadd.f32 %v4177, %v4186
          %v4201 = vadd.f32 %v4178, %v4186
          %v4202 = vadd.f32 %v4179, %v4186
          %v4203 = vadd.f32 %v4180, %v4186
          %v4204 = vld [vmem:[#allocation2] sm:$0xff]
          %v4205 = vld [vmem:[#allocation2 + $0x8] sm:$0xff]
          %v4206 = vld [vmem:[#allocation2 + $0x10] sm:$0xff]
          %v4207 = vld [vmem:[#allocation2 + $0x18] sm:$0xff]
          %v4208 = vld [vmem:[#allocation2 + $0x20] sm:$0xff]
          %v4209 = vld [vmem:[#allocation2 + $0x28] sm:$0xff]
          %v4210 = vld [vmem:[#allocation2 + $0x30] sm:$0xff]
          %v4211 = vld [vmem:[#allocation2 + $0x38] sm:$0xff]
          %v4212 = vld [vmem:[#allocation2 + $0x40] sm:$0xff]
          %v4213 = vld [vmem:[#allocation2 + $0x48] sm:$0xff]
          %v4214 = vld [vmem:[#allocation2 + $0x50] sm:$0xff]
          %v4215 = vld [vmem:[#allocation2 + $0x58] sm:$0xff]
          %v4216 = vld [vmem:[#allocation2 + $0x60] sm:$0xff]
          %v4217 = vld [vmem:[#allocation2 + $0x68] sm:$0xff]
          %v4218 = vld [vmem:[#allocation2 + $0x70] sm:$0xff]
          %v4219 = vld [vmem:[#allocation2 + $0x78] sm:$0xff]
          %v4220 = vadd.f32 %v4204, %v4188
          %v4221 = vadd.f32 %v4205, %v4189
          %v4222 = vadd.f32 %v4206, %v4190
          %v4223 = vadd.f32 %v4207, %v4191
          %v4224 = vadd.f32 %v4208, %v4192
          %v4225 = vadd.f32 %v4209, %v4193
          %v4226 = vadd.f32 %v4210, %v4194
          %v4227 = vadd.f32 %v4211, %v4195
          %v4228 = vadd.f32 %v4212, %v4196
          %v4229 = vadd.f32 %v4213, %v4197
          %v4230 = vadd.f32 %v4214, %v4198
          %v4231 = vadd.f32 %v4215, %v4199
          %v4232 = vadd.f32 %v4216, %v4200
          %v4233 = vadd.f32 %v4217, %v4201
          %v4234 = vadd.f32 %v4218, %v4202
          %v4235 = vadd.f32 %v4219, %v4203
          %v4236 = vld [vmem:[%s12] sm:$0x1]
          %v4237 = vld [vmem:[%s13] sm:$0x1]
          %4238 = vadd.xlane.f32.xlu0 %v4220
          %v4239 = vpop.xlane.xlu0 %4238
          %4240 = vadd.xlane.f32.xlu0 %v4221
          %v4241 = vpop.xlane.xlu0 %4240
          %4242 = vadd.xlane.f32.xlu0 %v4222
          %v4243 = vpop.xlane.xlu0 %4242
          %4244 = vadd.xlane.f32.xlu0 %v4223
          %v4245 = vpop.xlane.xlu0 %4244
          %4246 = vadd.xlane.f32.xlu0 %v4224
          %v4247 = vpop.xlane.xlu0 %4246
          %4248 = vadd.xlane.f32.xlu0 %v4225
          %v4249 = vpop.xlane.xlu0 %4248
          %4250 = vadd.xlane.f32.xlu0 %v4226
          %v4251 = vpop.xlane.xlu0 %4250
          %4252 = vadd.xlane.f32.xlu0 %v4227
          %v4253 = vpop.xlane.xlu0 %4252
          %4254 = vadd.xlane.f32.xlu0 %v4228
          %v4255 = vpop.xlane.xlu0 %4254
          %4256 = vadd.xlane.f32.xlu0 %v4229
          %v4257 = vpop.xlane.xlu0 %4256
          %4258 = vadd.xlane.f32.xlu0 %v4230
          %v4259 = vpop.xlane.xlu0 %4258
          %4260 = vadd.xlane.f32.xlu0 %v4231
          %v4261 = vpop.xlane.xlu0 %4260
          %4262 = vadd.xlane.f32.xlu0 %v4232
          %v4263 = vpop.xlane.xlu0 %4262
          %4264 = vadd.xlane.f32.xlu0 %v4233
          %v4265 = vpop.xlane.xlu0 %4264
          %4266 = vadd.xlane.f32.xlu0 %v4234
          %v4267 = vpop.xlane.xlu0 %4266
          %4268 = vadd.xlane.f32.xlu0 %v4235
          %v4269 = vpop.xlane.xlu0 %4268
          %v4270 = vmul.f32 %v4239, 0.0078125
          %v4271 = vmul.f32 %v4241, 0.0078125
          %v4272 = vmul.f32 %v4243, 0.0078125
          %v4273 = vmul.f32 %v4245, 0.0078125
          %v4274 = vmul.f32 %v4247, 0.0078125
          %v4275 = vmul.f32 %v4249, 0.0078125
          %v4276 = vmul.f32 %v4251, 0.0078125
          %v4277 = vmul.f32 %v4253, 0.0078125
          %v4278 = vmul.f32 %v4255, 0.0078125
          %v4279 = vmul.f32 %v4257, 0.0078125
          %v4280 = vmul.f32 %v4259, 0.0078125
          %v4281 = vmul.f32 %v4261, 0.0078125
          %v4282 = vmul.f32 %v4263, 0.0078125
          %v4283 = vmul.f32 %v4265, 0.0078125
          %v4284 = vmul.f32 %v4267, 0.0078125
          %v4285 = vmul.f32 %v4269, 0.0078125
          %v4286 = vmul.f32 %v4220, %v4220
          %v4287 = vmul.f32 %v4221, %v4221
          %v4288 = vmul.f32 %v4222, %v4222
          %v4289 = vmul.f32 %v4223, %v4223
          %v4290 = vmul.f32 %v4224, %v4224
          %v4291 = vmul.f32 %v4225, %v4225
          %v4292 = vmul.f32 %v4226, %v4226
          %v4293 = vmul.f32 %v4227, %v4227
          %v4294 = vmul.f32 %v4228, %v4228
          %v4295 = vmul.f32 %v4229, %v4229
          %v4296 = vmul.f32 %v4230, %v4230
          %v4297 = vmul.f32 %v4231, %v4231
          %v4298 = vmul.f32 %v4232, %v4232
          %v4299 = vmul.f32 %v4233, %v4233
          %v4300 = vmul.f32 %v4234, %v4234
          %v4301 = vmul.f32 %v4235, %v4235
          %4302 = vadd.xlane.f32.xlu0 %v4286
          %v4303 = vpop.xlane.xlu0 %4302
          %4304 = vadd.xlane.f32.xlu0 %v4287
          %v4305 = vpop.xlane.xlu0 %4304
          %4306 = vadd.xlane.f32.xlu0 %v4288
          %v4307 = vpop.xlane.xlu0 %4306
          %4308 = vadd.xlane.f32.xlu0 %v4289
          %v4309 = vpop.xlane.xlu0 %4308
          %4310 = vadd.xlane.f32.xlu0 %v4290
          %v4311 = vpop.xlane.xlu0 %4310
          %4312 = vadd.xlane.f32.xlu0 %v4291
          %v4313 = vpop.xlane.xlu0 %4312
          %4314 = vadd.xlane.f32.xlu0 %v4292
          %v4315 = vpop.xlane.xlu0 %4314
          %4316 = vadd.xlane.f32.xlu0 %v4293
          %v4317 = vpop.xlane.xlu0 %4316
          %4318 = vadd.xlane.f32.xlu0 %v4294
          %v4319 = vpop.xlane.xlu0 %4318
          %4320 = vadd.xlane.f32.xlu0 %v4295
          %v4321 = vpop.xlane.xlu0 %4320
          %4322 = vadd.xlane.f32.xlu0 %v4296
          %v4323 = vpop.xlane.xlu0 %4322
          %4324 = vadd.xlane.f32.xlu0 %v4297
          %v4325 = vpop.xlane.xlu0 %4324
          %4326 = vadd.xlane.f32.xlu0 %v4298
          %v4327 = vpop.xlane.xlu0 %4326
          %4328 = vadd.xlane.f32.xlu0 %v4299
          %v4329 = vpop.xlane.xlu0 %4328
          %4330 = vadd.xlane.f32.xlu0 %v4300
          %v4331 = vpop.xlane.xlu0 %4330
          %4332 = vadd.xlane.f32.xlu0 %v4301
          %v4333 = vpop.xlane.xlu0 %4332
          %v4334 = vmul.f32 %v4303, 0.0078125
          %v4335 = vmul.f32 %v4305, 0.0078125
          %v4336 = vmul.f32 %v4307, 0.0078125
          %v4337 = vmul.f32 %v4309, 0.0078125
          %v4338 = vmul.f32 %v4311, 0.0078125
          %v4339 = vmul.f32 %v4313, 0.0078125
          %v4340 = vmul.f32 %v4315, 0.0078125
          %v4341 = vmul.f32 %v4317, 0.0078125
          %v4342 = vmul.f32 %v4319, 0.0078125
          %v4343 = vmul.f32 %v4321, 0.0078125
          %v4344 = vmul.f32 %v4323, 0.0078125
          %v4345 = vmul.f32 %v4325, 0.0078125
          %v4346 = vmul.f32 %v4327, 0.0078125
          %v4347 = vmul.f32 %v4329, 0.0078125
          %v4348 = vmul.f32 %v4331, 0.0078125
          %v4349 = vmul.f32 %v4333, 0.0078125
          %v4350 = vmul.f32 %v4270, %v4270
          %v4351 = vmul.f32 %v4271, %v4271
          %v4352 = vmul.f32 %v4272, %v4272
          %v4353 = vmul.f32 %v4273, %v4273
          %v4354 = vmul.f32 %v4274, %v4274
          %v4355 = vmul.f32 %v4275, %v4275
          %v4356 = vmul.f32 %v4276, %v4276
          %v4357 = vmul.f32 %v4277, %v4277
          %v4358 = vmul.f32 %v4278, %v4278
          %v4359 = vmul.f32 %v4279, %v4279
          %v4360 = vmul.f32 %v4280, %v4280
          %v4361 = vmul.f32 %v4281, %v4281
          %v4362 = vmul.f32 %v4282, %v4282
          %v4363 = vmul.f32 %v4283, %v4283
          %v4364 = vmul.f32 %v4284, %v4284
          %v4365 = vmul.f32 %v4285, %v4285
          %v4366 = vsub.f32 %v4334, %v4350
          %v4367 = vsub.f32 %v4335, %v4351
          %v4368 = vsub.f32 %v4336, %v4352
          %v4369 = vsub.f32 %v4337, %v4353
          %v4370 = vsub.f32 %v4338, %v4354
          %v4371 = vsub.f32 %v4339, %v4355
          %v4372 = vsub.f32 %v4340, %v4356
          %v4373 = vsub.f32 %v4341, %v4357
          %v4374 = vsub.f32 %v4342, %v4358
          %v4375 = vsub.f32 %v4343, %v4359
          %v4376 = vsub.f32 %v4344, %v4360
          %v4377 = vsub.f32 %v4345, %v4361
          %v4378 = vsub.f32 %v4346, %v4362
          %v4379 = vsub.f32 %v4347, %v4363
          %v4380 = vsub.f32 %v4348, %v4364
          %v4381 = vsub.f32 %v4349, %v4365
          %v4382 = vmax.f32 %v4366, 0.0
          %v4383 = vmax.f32 %v4367, 0.0
          %v4384 = vmax.f32 %v4368, 0.0
          %v4385 = vmax.f32 %v4369, 0.0
          %v4386 = vmax.f32 %v4370, 0.0
          %v4387 = vmax.f32 %v4371, 0.0
          %v4388 = vmax.f32 %v4372, 0.0
          %v4389 = vmax.f32 %v4373, 0.0
          %v4390 = vmax.f32 %v4374, 0.0
          %v4391 = vmax.f32 %v4375, 0.0
          %v4392 = vmax.f32 %v4376, 0.0
          %v4393 = vmax.f32 %v4377, 0.0
          %v4394 = vmax.f32 %v4378, 0.0
          %v4395 = vmax.f32 %v4379, 0.0
          %v4396 = vmax.f32 %v4380, 0.0
          %v4397 = vmax.f32 %v4381, 0.0
          %v4398 = vsub.f32 %v4220, %v4270
          %v4399 = vsub.f32 %v4221, %v4271
          %v4400 = vsub.f32 %v4222, %v4272
          %v4401 = vsub.f32 %v4223, %v4273
          %v4402 = vsub.f32 %v4224, %v4274
          %v4403 = vsub.f32 %v4225, %v4275
          %v4404 = vsub.f32 %v4226, %v4276
          %v4405 = vsub.f32 %v4227, %v4277
          %v4406 = vsub.f32 %v4228, %v4278
          %v4407 = vsub.f32 %v4229, %v4279
          %v4408 = vsub.f32 %v4230, %v4280
          %v4409 = vsub.f32 %v4231, %v4281
          %v4410 = vsub.f32 %v4232, %v4282
          %v4411 = vsub.f32 %v4233, %v4283
          %v4412 = vsub.f32 %v4234, %v4284
          %v4413 = vsub.f32 %v4235, %v4285
          %v4414 = vadd.f32 %v4382, 1e-05
          %v4415 = vadd.f32 %v4383, 1e-05
          %v4416 = vadd.f32 %v4384, 1e-05
          %v4417 = vadd.f32 %v4385, 1e-05
          %v4418 = vadd.f32 %v4386, 1e-05
          %v4419 = vadd.f32 %v4387, 1e-05
          %v4420 = vadd.f32 %v4388, 1e-05
          %v4421 = vadd.f32 %v4389, 1e-05
          %v4422 = vadd.f32 %v4390, 1e-05
          %v4423 = vadd.f32 %v4391, 1e-05
          %v4424 = vadd.f32 %v4392, 1e-05
          %v4425 = vadd.f32 %v4393, 1e-05
          %v4426 = vadd.f32 %v4394, 1e-05
          %v4427 = vadd.f32 %v4395, 1e-05
          %v4428 = vadd.f32 %v4396, 1e-05
          %v4429 = vadd.f32 %v4397, 1e-05
          %v4430 = vrsqrt.pop %v4414
          %v4431 = vrsqrt.pop %v4415
          %v4432 = vrsqrt.pop %v4416
          %v4433 = vrsqrt.pop %v4417
          %v4434 = vrsqrt.pop %v4418
          %v4435 = vrsqrt.pop %v4419
          %v4436 = vrsqrt.pop %v4420
          %v4437 = vrsqrt.pop %v4421
          %v4438 = vrsqrt.pop %v4422
          %v4439 = vrsqrt.pop %v4423
          %v4440 = vrsqrt.pop %v4424
          %v4441 = vrsqrt.pop %v4425
          %v4442 = vrsqrt.pop %v4426
          %v4443 = vrsqrt.pop %v4427
          %v4444 = vrsqrt.pop %v4428
          %v4445 = vrsqrt.pop %v4429
          %v4446 = vmul.f32 %v4398, %v4430
          %v4447 = vmul.f32 %v4399, %v4431
          %v4448 = vmul.f32 %v4400, %v4432
          %v4449 = vmul.f32 %v4401, %v4433
          %v4450 = vmul.f32 %v4402, %v4434
          %v4451 = vmul.f32 %v4403, %v4435
          %v4452 = vmul.f32 %v4404, %v4436
          %v4453 = vmul.f32 %v4405, %v4437
          %v4454 = vmul.f32 %v4406, %v4438
          %v4455 = vmul.f32 %v4407, %v4439
          %v4456 = vmul.f32 %v4408, %v4440
          %v4457 = vmul.f32 %v4409, %v4441
          %v4458 = vmul.f32 %v4410, %v4442
          %v4459 = vmul.f32 %v4411, %v4443
          %v4460 = vmul.f32 %v4412, %v4444
          %v4461 = vmul.f32 %v4413, %v4445
          %v4463 = vlaneseq
          %v4464 = vshrl.u32 %v4463, 7
          %v4465 = vsub.s32 0, %v4464
          %v4466 = vrot.slane %v4236, %v4465
          %v4468 = vmul.f32 %v4446, %v4466
          %v4469 = vmul.f32 %v4447, %v4466
          %v4470 = vmul.f32 %v4448, %v4466
          %v4471 = vmul.f32 %v4449, %v4466
          %v4472 = vmul.f32 %v4450, %v4466
          %v4473 = vmul.f32 %v4451, %v4466
          %v4474 = vmul.f32 %v4452, %v4466
          %v4475 = vmul.f32 %v4453, %v4466
          %v4476 = vmul.f32 %v4454, %v4466
          %v4477 = vmul.f32 %v4455, %v4466
          %v4478 = vmul.f32 %v4456, %v4466
          %v4479 = vmul.f32 %v4457, %v4466
          %v4480 = vmul.f32 %v4458, %v4466
          %v4481 = vmul.f32 %v4459, %v4466
          %v4482 = vmul.f32 %v4460, %v4466
          %v4483 = vmul.f32 %v4461, %v4466
          %v4485 = vlaneseq
          %v4486 = vshrl.u32 %v4485, 7
          %v4487 = vsub.s32 0, %v4486
          %v4488 = vrot.slane %v4237, %v4487
          %v4490 = vadd.f32 %v4468, %v4488
          %v4491 = vadd.f32 %v4469, %v4488
          %v4492 = vadd.f32 %v4470, %v4488
          %v4493 = vadd.f32 %v4471, %v4488
          %v4494 = vadd.f32 %v4472, %v4488
          %v4495 = vadd.f32 %v4473, %v4488
          %v4496 = vadd.f32 %v4474, %v4488
          %v4497 = vadd.f32 %v4475, %v4488
          %v4498 = vadd.f32 %v4476, %v4488
          %v4499 = vadd.f32 %v4477, %v4488
          %v4500 = vadd.f32 %v4478, %v4488
          %v4501 = vadd.f32 %v4479, %v4488
          %v4502 = vadd.f32 %v4480, %v4488
          %v4503 = vadd.f32 %v4481, %v4488
          %v4504 = vadd.f32 %v4482, %v4488
          %v4505 = vadd.f32 %v4483, %v4488
          %v4506 = vpack.c.bf16 %v4491, %v4490
          %v4507 = vpack.c.bf16 %v4493, %v4492
          %v4508 = vpack.c.bf16 %v4495, %v4494
          %v4509 = vpack.c.bf16 %v4497, %v4496
          %v4510 = vpack.c.bf16 %v4499, %v4498
          %v4511 = vpack.c.bf16 %v4501, %v4500
          %v4512 = vpack.c.bf16 %v4503, %v4502
          %v4513 = vpack.c.bf16 %v4505, %v4504
          %v4514 = vld [vmem:[%s14] sm:$0xf]
          %v4515 = vld [vmem:[%s14 + $0x4] sm:$0xf]
          %v4516 = vld [vmem:[%s14 + $0x8] sm:$0xf]
          %v4517 = vld [vmem:[%s14 + $0xc] sm:$0xf]
          %v4518 = vld [vmem:[%s14 + $0x10] sm:$0xf]
          %v4519 = vld [vmem:[%s14 + $0x14] sm:$0xf]
          %v4520 = vld [vmem:[%s14 + $0x18] sm:$0xf]
          %v4521 = vld [vmem:[%s14 + $0x1c] sm:$0xf]
          %v4522 = vld [vmem:[%s14 + $0x20] sm:$0xf]
          %v4523 = vld [vmem:[%s14 + $0x24] sm:$0xf]
          %v4524 = vld [vmem:[%s14 + $0x28] sm:$0xf]
          %v4525 = vld [vmem:[%s14 + $0x2c] sm:$0xf]
          %v4526 = vld [vmem:[%s14 + $0x30] sm:$0xf]
          %v4527 = vld [vmem:[%s14 + $0x34] sm:$0xf]
          %v4528 = vld [vmem:[%s14 + $0x38] sm:$0xf]
          %v4529 = vld [vmem:[%s14 + $0x3c] sm:$0xf]
          %v4530 = vld [vmem:[%s15] sm:$0x1]
          %v4532 = vlaneseq
          %v4533 = vshrl.u32 %v4532, 7
          %v4534 = vsub.s32 0, %v4533
          %v4535 = vrot.slane %v4530, %v4534
          %v4553 = vunpack.c.l.b16 %v4514
          %v4554 = vunpack.c.l.b16 %v4515
          %v4555 = vunpack.c.l.b16 %v4516
          %v4556 = vunpack.c.l.b16 %v4517
          %v4557 = vunpack.c.l.b16 %v4518
          %v4558 = vunpack.c.l.b16 %v4519
          %v4559 = vunpack.c.l.b16 %v4520
          %v4560 = vunpack.c.l.b16 %v4521
          %v4561 = vunpack.c.l.b16 %v4522
          %v4562 = vunpack.c.l.b16 %v4523
          %v4563 = vunpack.c.l.b16 %v4524
          %v4564 = vunpack.c.l.b16 %v4525
          %v4565 = vunpack.c.l.b16 %v4526
          %v4566 = vunpack.c.l.b16 %v4527
          %v4567 = vunpack.c.l.b16 %v4528
          %v4568 = vunpack.c.l.b16 %v4529
          %v4569 = vpack.c.b16 %v4554, %v4553
          %v4570 = vpack.c.b16 %v4556, %v4555
          %v4571 = vpack.c.b16 %v4558, %v4557
          %v4572 = vpack.c.b16 %v4560, %v4559
          %v4573 = vpack.c.b16 %v4562, %v4561
          %v4574 = vpack.c.b16 %v4564, %v4563
          %v4575 = vpack.c.b16 %v4566, %v4565
          %v4576 = vpack.c.b16 %v4568, %v4567
          %4585 = vmatprep.subr.bf16.mxu0 0
          %4586 = vmatpush1.bf16.msra.mxu0 %v4576
          %4587 = vmatprep.subr.bf16.mxu0 0
          %4588 = vmatpush1.bf16.msra.mxu0 %v4575
          %4589 = vmatprep.subr.bf16.mxu0 0
          %4590 = vmatpush1.bf16.msra.mxu0 %v4574
          %4591 = vmatprep.subr.bf16.mxu0 0
          %4592 = vmatpush1.bf16.msra.mxu0 %v4573
          %4593 = vmatprep.subr.bf16.mxu0 0
          %4594 = vmatpush1.bf16.msra.mxu0 %v4572
          %4595 = vmatprep.subr.bf16.mxu0 0
          %4596 = vmatpush1.bf16.msra.mxu0 %v4571
          %4597 = vmatprep.subr.bf16.mxu0 0
          %4598 = vmatpush1.bf16.msra.mxu0 %v4570
          %4599 = vmatprep.subr.bf16.mxu0 0
          %4600 = vmatpush1.bf16.msra.mxu0 %v4569
          %4601 = vmatprep.subr.bf16.mxu0 0
          %4602 = vmatpush2.bf16.msra.mxu0 0
          %4603 = vmatprep.subr.bf16.mxu0 0
          %4604 = vmatpush2.bf16.msra.mxu0 0
          %4605 = vmatprep.subr.bf16.mxu0 0
          %4606 = vmatpush2.bf16.msra.mxu0 0
          %4607 = vmatprep.subr.bf16.mxu0 0
          %4608 = vmatpush2.bf16.msra.mxu0 0
          %4609 = vmatprep.subr.bf16.mxu0 0
          %4610 = vmatpush2.bf16.msra.mxu0 0
          %4611 = vmatprep.subr.bf16.mxu0 0
          %4612 = vmatpush2.bf16.msra.mxu0 0
          %4613 = vmatprep.subr.bf16.mxu0 0
          %4614 = vmatpush2.bf16.msra.mxu0 0
          %4615 = vmatprep.subr.bf16.mxu0 0
          %4616 = vmatpush2.bf16.msra.mxu0 0
          %4617 = vmatprep.mubr.bf16.mxu0 0
          %4618 = vmatmul.mubr.bf16.gmra.mxu0 %v4506
          %v4619 = vpop.f32.mrf.mxu0
          %v4620 = vadd.f32 %v4535, %v4619
          %v4621 = vpop.f32.mrf.mxu0
          %v4622 = vpop.f32.mrf.mxu0
          %v4623 = vadd.f32 %v4535, %v4622
          %v4624 = vpop.f32.mrf.mxu0
          %4625 = vmatprep.mubr.bf16.mxu0 0
          %4626 = vmatmul.mubr.bf16.gmra.mxu0 %v4507
          %v4627 = vpop.f32.mrf.mxu0
          %v4628 = vadd.f32 %v4535, %v4627
          %v4629 = vpop.f32.mrf.mxu0
          %v4630 = vpop.f32.mrf.mxu0
          %v4631 = vadd.f32 %v4535, %v4630
          %v4632 = vpop.f32.mrf.mxu0
          %4633 = vmatprep.mubr.bf16.mxu0 0
          %4634 = vmatmul.mubr.bf16.gmra.mxu0 %v4508
          %v4635 = vpop.f32.mrf.mxu0
          %v4636 = vadd.f32 %v4535, %v4635
          %v4637 = vpop.f32.mrf.mxu0
          %v4638 = vpop.f32.mrf.mxu0
          %v4639 = vadd.f32 %v4535, %v4638
          %v4640 = vpop.f32.mrf.mxu0
          %4641 = vmatprep.mubr.bf16.mxu0 0
          %4642 = vmatmul.mubr.bf16.gmra.mxu0 %v4509
          %v4643 = vpop.f32.mrf.mxu0
          %v4644 = vadd.f32 %v4535, %v4643
          %v4645 = vpop.f32.mrf.mxu0
          %v4646 = vpop.f32.mrf.mxu0
          %v4647 = vadd.f32 %v4535, %v4646
          %v4648 = vpop.f32.mrf.mxu0
          %4649 = vmatprep.mubr.bf16.mxu0 0
          %4650 = vmatmul.mubr.bf16.gmra.mxu0 %v4510
          %v4651 = vpop.f32.mrf.mxu0
          %v4652 = vadd.f32 %v4535, %v4651
          %v4653 = vpop.f32.mrf.mxu0
          %v4654 = vpop.f32.mrf.mxu0
          %v4655 = vadd.f32 %v4535, %v4654
          %v4656 = vpop.f32.mrf.mxu0
          %4657 = vmatprep.mubr.bf16.mxu0 0
          %4658 = vmatmul.mubr.bf16.gmra.mxu0 %v4511
          %v4659 = vpop.f32.mrf.mxu0
          %v4660 = vadd.f32 %v4535, %v4659
          %v4661 = vpop.f32.mrf.mxu0
          %v4662 = vpop.f32.mrf.mxu0
          %v4663 = vadd.f32 %v4535, %v4662
          %v4664 = vpop.f32.mrf.mxu0
          %4665 = vmatprep.mubr.bf16.mxu0 0
          %4666 = vmatmul.mubr.bf16.gmra.mxu0 %v4512
          %v4667 = vpop.f32.mrf.mxu0
          %v4668 = vadd.f32 %v4535, %v4667
          %v4669 = vpop.f32.mrf.mxu0
          %v4670 = vpop.f32.mrf.mxu0
          %v4671 = vadd.f32 %v4535, %v4670
          %v4672 = vpop.f32.mrf.mxu0
          %4673 = vmatprep.mubr.bf16.mxu0 0
          %4674 = vmatmul.mubr.bf16.gmra.mxu0 %v4513
          %v4675 = vpop.f32.mrf.mxu0
          %v4676 = vadd.f32 %v4535, %v4675
          %v4677 = vpop.f32.mrf.mxu0
          %v4678 = vpop.f32.mrf.mxu0
          %v4679 = vadd.f32 %v4535, %v4678
          %v4680 = vpop.f32.mrf.mxu0
          %4681 = vdwg.mxu0
          %4682 = vst [vmem:[%s16] sm:$0xff] %v4620
          %4683 = vst [vmem:[%s16 + $0x8] sm:$0xff] %v4623
          %4684 = vst [vmem:[%s16 + $0x10] sm:$0xff] %v4628
          %4685 = vst [vmem:[%s16 + $0x18] sm:$0xff] %v4631
          %4686 = vst [vmem:[%s16 + $0x20] sm:$0xff] %v4636
          %4687 = vst [vmem:[%s16 + $0x28] sm:$0xff] %v4639
          %4688 = vst [vmem:[%s16 + $0x30] sm:$0xff] %v4644
          %4689 = vst [vmem:[%s16 + $0x38] sm:$0xff] %v4647
          %4690 = vst [vmem:[%s16 + $0x40] sm:$0xff] %v4652
          %4691 = vst [vmem:[%s16 + $0x48] sm:$0xff] %v4655
          %4692 = vst [vmem:[%s16 + $0x50] sm:$0xff] %v4660
          %4693 = vst [vmem:[%s16 + $0x58] sm:$0xff] %v4663
          %4694 = vst [vmem:[%s16 + $0x60] sm:$0xff] %v4668
          %4695 = vst [vmem:[%s16 + $0x68] sm:$0xff] %v4671
          %4696 = vst [vmem:[%s16 + $0x70] sm:$0xff] %v4676
          %4697 = vst [vmem:[%s16 + $0x78] sm:$0xff] %v4679
        $region115: #{mobilevit_block.1} parent=102 // pred_fallthru
          _
        // Predicated region
        $region116: #{mobilevit_block.1} parent=102 // pred_check
          %p4698 = pneg %p391
        $region117: #{mobilevit_block.1} parent=102 // pred_check_branch
          %4700 = sbr.rel (%p4698) target = $region119
        $region118: #{mobilevit_block.1} parent=102 // pred_region
          _
        $region119: #{mobilevit_block.1} parent=102 // pred_fallthru
          _
        // Predicated region
        $region120: #{mobilevit_block.1} parent=102 // pred_check
          %p4701 = pneg %p391
        $region121: #{mobilevit_block.1} parent=102 // pred_check_branch
          %4703 = sbr.rel (%p4701) target = $region123
        $region122: #{mobilevit_block.1} parent=102 // pred_region
          _
        $region123: #{mobilevit_block.1} parent=102 // pred_fallthru
          _
      $region103: #{mobilevit_block.1} parent=5 // pred_fallthru
        _
      %p4704 = scmp.le.s32.totalorder 2, %s22
      // Predicated region
      $region124: #{mobilevit_block.1} parent=5 // pred_check
        %p4705 = pneg %p4704
      $region125: #{mobilevit_block.1} parent=5 // pred_check_branch
        %4707 = sbr.rel (%p4705) target = $region127
      $region126: #{mobilevit_block.1} parent=5 // pred_region
        %s4708 = ssub.s32 %s22, 2
      $region127: #{mobilevit_block.1} parent=5 // pred_fallthru
        _
    $region6: #{mobilevit_block.1} parent=1 // loop_footer
      %s26 = sadd.s32 1, %s22
    $region7: #{mobilevit_block.1} parent=1 // loop_footer_branch
      %21 = sbr.rel target = $region3
    $region8: #{mobilevit_block.1} parent=1 // loop_exit
      _

</llo_original>
